<compile_context>
chip_gen: v5e
topology: v5e:2x2
jax: 0.10.0
libtpu: 0.0.40
codegen_flags: <defaults>
</compile_context>

<pallas_src>
import functools

import jax
import jax.numpy as jnp
from jax import lax
from jax.experimental import pallas as pl
from jax.experimental.pallas import tpu as pltpu

_NEG = -1e30  # fc-bias pad value so padded logit lanes vanish in the log-softmax


def _round_up(x, m):
    return ((x + m - 1) // m) * m


def _vmem_budget_bytes():
    """~3/4 of physical VMEM: 128 MiB (v5e/v6e) -> 96 MiB, 64 MiB (v7x) -> 48 MiB."""
    cap = 64 * 1024 * 1024  # conservative fallback (v7x physical)
    try:
        info = pltpu.get_tpu_info()
        cap = int(getattr(info, "vmem_capacity_bytes", cap))
    except Exception:
        pass
    return (3 * cap) // 4


def _select_tiles(Bp, T, Hp, Op, budget):
    """VMEM-budget-driven (B_blk, t_block) selection."""
    G = 4 * Hp
    # Batch-tile candidates: multiples of 16 (bf16 sublane tile) dividing Bp, largest first.
    cands = [d for d in range(Bp, 0, -16) if Bp % d == 0] or [Bp]
    # v7x megacore: keep >= 2 batch tiles whenever tiles can stay >= 16 rows.
    if Bp >= 32:
        halved = [d for d in cands if d <= Bp // 2]
        if halved:
            cands = halved

    # Resident (tile-size-independent) operands, assume double-buffered by the pipeline.
    resident = 2 * (2 * Hp * G * 2 + Hp * Op * 2 + G * 4 + Op * 4)

    def est(tb, bb):
        x_stream = 2 * tb * bb * Hp * 2              # double-buffered bf16 embedding chunk
        gx = 2 * tb * bb * G * 4                     # f32 preact scratch + matmul temp
        state = 2 * 2 * bb * Hp * 4                  # h0/c0 (double-buffered)
        outs = 2 * (bb * Op * 4 + 2 * bb * Hp * 4)   # out / h_n / c_n (double-buffered)
        carry = 2 * bb * Hp * 4                      # h/c scratch
        temps = 3 * bb * G * 4 + 6 * bb * Hp * 4     # per-step gates / activation temporaries
        return resident + x_stream + gx + state + outs + carry + temps

    headroom = 4 * 1024 * 1024
    for bb in cands:                                 # prefer bigger batch tile (MXU rows/step)
        for tb in range(min(T, 64), 0, -1):          # then the biggest T-chunk that fits
            if est(tb, bb) + headroom <= budget:
                return bb, tb
    return cands[-1], 1


def lstm_kernel(x_ref, h0_ref, c0_ref, w_ih_ref, b_ref, w_hh_ref, w_fc_ref, b_fc_ref,
                out_ref, hout_ref, cout_ref,
                h_scr, c_scr, gx_scr,
                *, seq_len, needs_mask, unroll):
    # x_ref : (T_blk, B_blk, Hp) bf16  streamed embeddings (time-major)
    # h0/c0 : (B_blk, Hp) f32          initial state for this batch tile
    # w_ih/w_hh : (Hp, 4*Hp) bf16      gate-blockwise padded weights (resident)
    # b     : (1, 4*Hp) f32            b_ih + b_hh, gate-blockwise padded
    # w_fc  : (Hp, Op) bf16 ; b_fc : (1, Op) f32 (padded lanes = -1e30)
    # out   : (B_blk, Op) f32 log-softmax ; hout/cout : (B_blk, Hp) f32 final state
    # h_scr/c_scr : (B_blk, Hp) f32 carry across the T-chunk grid axis
    # gx_scr : (T_blk, B_blk, 4*Hp) f32 per-chunk gate preactivations
    t_idx = pl.program_id(1)
    T_blk, B_blk, Hp = x_ref.shape
    G = 4 * Hp

    @pl.when(t_idx == 0)
    def _():
        h_scr[...] = h0_ref[...]
        c_scr[...] = c0_ref[...]

    # Per-chunk input projection: one (T_blk*B_blk, Hp) @ (Hp, 4Hp) MXU matmul,
    # amortized over all timesteps of the chunk (off the per-step serial path).
    x_flat = x_ref[...].reshape(T_blk * B_blk, Hp)
    gx = jnp.dot(x_flat, w_ih_ref[...], preferred_element_type=jnp.float32) + b_ref[...]
    gx_scr[...] = gx.reshape(T_blk, B_blk, G)

    # TODO(synk): hold W_hh stationary in the MXU across the steps via
    # pltpu.matmul_push_rhs / matmul_acc_lhs / matmul_pop once validated on-target;
    # the jnp.dot path below re-pushes the (Hp, 4Hp) weight every timestep.
    w_hh = w_hh_ref[...]  # hoisted: VMEM-resident across the recurrence

    def step(t, carry):
        h, c = carry
        # Only the h-dependent matmul is on the serial path.
        gates = gx_scr[t] + jnp.dot(h.astype(w_hh.dtype), w_hh,
                                    preferred_element_type=jnp.float32)
        i = jax.nn.sigmoid(gates[:, 0 * Hp:1 * Hp])   # lane-aligned slices (Hp % 128 == 0)
        f = jax.nn.sigmoid(gates[:, 1 * Hp:2 * Hp])
        g = jnp.tanh(gates[:, 2 * Hp:3 * Hp])
        o = jax.nn.sigmoid(gates[:, 3 * Hp:4 * Hp])
        c_new = f * c + i * g
        h_new = o * jnp.tanh(c_new)
        if needs_mask:  # tail timesteps beyond the true sequence length are no-ops
            valid = ((t_idx * T_blk + t) < seq_len).astype(jnp.float32)
            h_new = valid * h_new + (1.0 - valid) * h
            c_new = valid * c_new + (1.0 - valid) * c
        return h_new, c_new

    h, c = lax.fori_loop(0, T_blk, step, (h_scr[...], c_scr[...]), unroll=unroll)
    h_scr[...] = h
    c_scr[...] = c

    @pl.when(t_idx == pl.num_programs(1) - 1)
    def _():
        # output[:, -1, :] -> fc -> LogSoftmax(dim=1); padded logit lanes are ~-1e30.
        logits = (jnp.dot(h.astype(w_fc_ref.dtype), w_fc_ref[...],
                          preferred_element_type=jnp.float32) + b_fc_ref[...])
        m = jnp.max(logits, axis=1, keepdims=True)
        z = logits - m
        lse = jnp.log(jnp.sum(jnp.exp(z), axis=1, keepdims=True))
        out_ref[...] = z - lse
        hout_ref[...] = h
        cout_ref[...] = c


def simple_lstm_forward(tokens, hidden, params, *, t_block=None):
    """tokens: (B, T) int32; hidden: (h0, c0) each (1, B, H). Returns (logprobs, (h_n, c_n))."""
    emb, w_ih, w_hh, b_ih, b_hh, w_fc, b_fc = params
    h0, c0 = hidden
    B, T = tokens.shape
    H = emb.shape[1]
    O = w_fc.shape[0]

    Hp = _round_up(H, 128)   # lanes
    Op = _round_up(O, 128)   # lane-dense output slab
    Bp = _round_up(B, 16)    # bf16 native sublane tile (16, 128)
    G = 4 * Hp

    budget = _vmem_budget_bytes()
    B_blk, auto_tb = _select_tiles(Bp, T, Hp, Op, budget)
    if t_block is None:
        t_block = auto_tb
    nb = Bp // B_blk
    nt = -(-T // t_block)          # t_block need NOT divide T; tail is masked in-kernel
    Tp = nt * t_block
    needs_mask = (Tp != T)

    # --- Embedding gather; stream bf16 embeddings (x@W_ih is done in-kernel per chunk).
    emb_p = jnp.pad(emb.astype(jnp.float32), ((0, 0), (0, Hp - H))).astype(jnp.bfloat16)
    x = jnp.take(emb_p, tokens, axis=0)                 # (B, T, Hp)
    x = jnp.transpose(x, (1, 0, 2))                     # (T, B, Hp) time-major
    x = jnp.pad(x, ((0, Tp - T), (0, Bp - B), (0, 0)))  # (Tp, Bp, Hp)

    # --- Weights, gate-blockwise padded, bf16 MXU operands.
    def pad_gate_w(w):                                  # (4H, H) -> (Hp, 4Hp)
        wt = w.T.reshape(H, 4, H)
        wt = jnp.pad(wt, ((0, Hp - H), (0, 0), (0, Hp - H)))
        return wt.reshape(Hp, G).astype(jnp.bfloat16)

    w_ih_t = pad_gate_w(w_ih)
    w_hh_t = pad_gate_w(w_hh)
    b = (b_ih + b_hh).astype(jnp.float32).reshape(4, H)
    b = jnp.pad(b, ((0, 0), (0, Hp - H))).reshape(1, G)

    # --- FC weights/bias (padded logit lanes get -1e30 so log-softmax masks them).
    w_fc_t = jnp.pad(w_fc.T, ((0, Hp - H), (0, Op - O))).astype(jnp.bfloat16)   # (Hp, Op)
    b_fc_p = jnp.pad(b_fc.astype(jnp.float32), (0, Op - O),
                     constant_values=_NEG).reshape(1, Op)

    # --- Initial state, zero-padded (padded H lanes provably stay zero).
    h0p = jnp.pad(h0[0].astype(jnp.float32), ((0, Bp - B), (0, Hp - H)))
    c0p = jnp.pad(c0[0].astype(jnp.float32), ((0, Bp - B), (0, Hp - H)))

    kernel = functools.partial(lstm_kernel, seq_len=T, needs_mask=needs_mask,
                               unroll=min(8, t_block))

    grid_spec = pltpu.PrefetchScalarGridSpec(
        num_scalar_prefetch=0,
        grid=(nb, nt),
        in_specs=[
            pl.BlockSpec((t_block, B_blk, Hp), lambda bi, ti: (ti, bi, 0)),  # embeddings stream
            pl.BlockSpec((B_blk, Hp), lambda bi, ti: (bi, 0)),               # h0
            pl.BlockSpec((B_blk, Hp), lambda bi, ti: (bi, 0)),               # c0
            pl.BlockSpec((Hp, G), lambda bi, ti: (0, 0)),                    # W_ih (resident)
            pl.BlockSpec((1, G), lambda bi, ti: (0, 0)),                     # b_ih + b_hh
            pl.BlockSpec((Hp, G), lambda bi, ti: (0, 0)),                    # W_hh (resident)
            pl.BlockSpec((Hp, Op), lambda bi, ti: (0, 0)),                   # W_fc (resident)
            pl.BlockSpec((1, Op), lambda bi, ti: (0, 0)),                    # b_fc
        ],
        out_specs=(
            pl.BlockSpec((B_blk, Op), lambda bi, ti: (bi, 0)),               # log-softmax
            pl.BlockSpec((B_blk, Hp), lambda bi, ti: (bi, 0)),               # h_n
            pl.BlockSpec((B_blk, Hp), lambda bi, ti: (bi, 0)),               # c_n
        ),
        scratch_shapes=[
            pltpu.VMEM((B_blk, Hp), jnp.float32),                            # h carry
            pltpu.VMEM((B_blk, Hp), jnp.float32),                            # c carry
            pltpu.VMEM((t_block, B_blk, G), jnp.float32),                    # chunk gate preacts
        ],
    )

    out_p, h_p, c_p = pl.pallas_call(
        kernel,
        out_shape=(
            jax.ShapeDtypeStruct((Bp, Op), jnp.float32),
            jax.ShapeDtypeStruct((Bp, Hp), jnp.float32),
            jax.ShapeDtypeStruct((Bp, Hp), jnp.float32),
        ),
        grid_spec=grid_spec,
        compiler_params=pltpu.CompilerParams(
            dimension_semantics=("parallel", "arbitrary"),
            vmem_limit_bytes=int(budget),   # chip-derived budget (96 MiB v5e/v6e, 48 MiB v7x)
        ),
    )(x, h0p, c0p, w_ih_t, b, w_hh_t, w_fc_t, b_fc_p)

    logprobs = out_p[:B, :O]
    h_n = h_p[:B, :H][None]
    c_n = c_p[:B, :H][None]
    # TODO(synk): only num_layers=1 (the module default) is implemented; stacked layers
    # would chain this kernel call per layer.
    return logprobs, (h_n, c_n)


def _reference(tokens, hidden, params):
    """Pure-JAX f32 reference matching the PyTorch module semantics."""
    emb, w_ih, w_hh, b_ih, b_hh, w_fc, b_fc = params
    h, c = hidden[0][0], hidden[1][0]
    x = jnp.take(emb, tokens, axis=0)  # (B, T, H)
    H = emb.shape[1]
    for t in range(x.shape[1]):
        g = x[:, t] @ w_ih.T + b_ih + h @ w_hh.T + b_hh
        i = jax.nn.sigmoid(g[:, :H])
        f = jax.nn.sigmoid(g[:, H:2 * H])
        gg = jnp.tanh(g[:, 2 * H:3 * H])
        o = jax.nn.sigmoid(g[:, 3 * H:])
        c = f * c + i * gg
        h = o * jnp.tanh(c)
    logits = h @ w_fc.T + b_fc
    return jax.nn.log_softmax(logits, axis=1), h, c


if __name__ == "__main__":
    vocab_size, hidden_size, output_size = 16, 32, 10
    batch, seq = 2, 8

    key = jax.random.PRNGKey(0)
    ks = jax.random.split(key, 8)
    emb = (0.1 * jax.random.normal(ks[0], (vocab_size, hidden_size))).astype(jnp.float32)
    w_ih = (0.1 * jax.random.normal(ks[1], (4 * hidden_size, hidden_size))).astype(jnp.float32)
    w_hh = (0.1 * jax.random.normal(ks[2], (4 * hidden_size, hidden_size))).astype(jnp.float32)
    b_ih = (0.1 * jax.random.normal(ks[3], (4 * hidden_size,))).astype(jnp.float32)
    b_hh = (0.1 * jax.random.normal(ks[4], (4 * hidden_size,))).astype(jnp.float32)
    w_fc = (0.1 * jax.random.normal(ks[5], (output_size, hidden_size))).astype(jnp.float32)
    b_fc = (0.1 * jax.random.normal(ks[6], (output_size,))).astype(jnp.float32)
    params = (emb, w_ih, w_hh, b_ih, b_hh, w_fc, b_fc)

    tokens = jax.random.randint(ks[7], (batch, seq), 0, vocab_size, dtype=jnp.int32)
    # initHidden() analogue (zeros), broadcast to the actual batch size.
    h0 = jnp.zeros((1, batch, hidden_size), jnp.float32)
    c0 = jnp.zeros((1, batch, hidden_size), jnp.float32)

    logprobs, (h_n, c_n) = simple_lstm_forward(tokens, (h0, c0), params)
    jax.block_until_ready((logprobs, h_n, c_n))

    assert logprobs.shape == (batch, output_size)
    assert h_n.shape == (1, batch, hidden_size) and c_n.shape == (1, batch, hidden_size)

    # Correctness vs pure-JAX reference (loose tolerance: bf16 MXU operands).
    ref_lp, ref_h, ref_c = _reference(tokens, (h0, c0), params)
    err = max(float(jnp.max(jnp.abs(logprobs - ref_lp))),
              float(jnp.max(jnp.abs(h_n[0] - ref_h))),
              float(jnp.max(jnp.abs(c_n[0] - ref_c))))
    assert err < 5e-2, f"mismatch vs reference: {err}"

    print("KERNEL_OK")
</pallas_src>

<mosaic_0001>
module attributes {stable_mosaic.version = 11 : i64} {
  func.func @lstm_kernel(%arg0: i32, %arg1: i32, %arg2: memref<8x16x128xbf16, #tpu.memory_space<vmem>>, %arg3: memref<16x128xf32, #tpu.memory_space<vmem>>, %arg4: memref<16x128xf32, #tpu.memory_space<vmem>>, %arg5: memref<128x512xbf16, #tpu.memory_space<vmem>>, %arg6: memref<1x512xf32, #tpu.memory_space<vmem>>, %arg7: memref<128x512xbf16, #tpu.memory_space<vmem>>, %arg8: memref<128x128xbf16, #tpu.memory_space<vmem>>, %arg9: memref<1x128xf32, #tpu.memory_space<vmem>>, %arg10: memref<16x128xf32, #tpu.memory_space<vmem>>, %arg11: memref<16x128xf32, #tpu.memory_space<vmem>>, %arg12: memref<16x128xf32, #tpu.memory_space<vmem>>, %arg13: memref<16x128xf32, #tpu.memory_space<vmem>>, %arg14: memref<16x128xf32, #tpu.memory_space<vmem>>, %arg15: memref<8x16x512xf32, #tpu.memory_space<vmem>>) attributes {dimension_semantics = [#tpu.dimension_semantics<parallel>, #tpu.dimension_semantics<arbitrary>], iteration_bounds = array<i64: 1, 1>, scalar_prefetch = 0 : i64, scratch_operands = 3 : i64, tpu.core_type = #tpu.core_type<tc>, window_params = [{transform_indices = @transform_0, window_bounds = array<i64: 8, 16, 128>}, {transform_indices = @transform_1, window_bounds = array<i64: 16, 128>}, {transform_indices = @transform_2, window_bounds = array<i64: 16, 128>}, {pipeline_mode = #tpu.pipeline_mode<synchronous>, transform_indices = @transform_3, window_bounds = array<i64: 128, 512>}, {pipeline_mode = #tpu.pipeline_mode<synchronous>, transform_indices = @transform_4, window_bounds = array<i64: 1, 512>}, {pipeline_mode = #tpu.pipeline_mode<synchronous>, transform_indices = @transform_5, window_bounds = array<i64: 128, 512>}, {pipeline_mode = #tpu.pipeline_mode<synchronous>, transform_indices = @transform_6, window_bounds = array<i64: 128, 128>}, {pipeline_mode = #tpu.pipeline_mode<synchronous>, transform_indices = @transform_7, window_bounds = array<i64: 1, 128>}, {transform_indices = @transform_8, window_bounds = array<i64: 16, 128>}, {transform_indices = @transform_9, window_bounds = array<i64: 16, 128>}, {transform_indices = @transform_10, window_bounds = array<i64: 16, 128>}]} {
    %c0_i32 = arith.constant 0 : i32
    %0 = arith.cmpi eq, %arg1, %c0_i32 : i32
    %1 = arith.extui %0 : i1 to i32
    %c0_i32_0 = arith.constant 0 : i32
    %2 = arith.cmpi ne, %1, %c0_i32_0 : i32
    scf.if %2 {
      %c0_71 = arith.constant 0 : index
      %c0_72 = arith.constant 0 : index
      %268 = vector.load %arg3[%c0_71, %c0_72] : memref<16x128xf32, #tpu.memory_space<vmem>>, vector<16x128xf32>
      %c0_73 = arith.constant 0 : index
      %c0_74 = arith.constant 0 : index
      %269 = vector.load %arg13[%c0_73, %c0_74] : memref<16x128xf32, #tpu.memory_space<vmem>>, vector<16x128xf32>
      tpu.vector_store %arg13[%c0_73, %c0_74], %268 {strides = array<i32>} : memref<16x128xf32, #tpu.memory_space<vmem>>, vector<16x128xf32>,
      %c0_75 = arith.constant 0 : index
      %c0_76 = arith.constant 0 : index
      %270 = vector.load %arg4[%c0_75, %c0_76] : memref<16x128xf32, #tpu.memory_space<vmem>>, vector<16x128xf32>
      %c0_77 = arith.constant 0 : index
      %c0_78 = arith.constant 0 : index
      %271 = vector.load %arg14[%c0_77, %c0_78] : memref<16x128xf32, #tpu.memory_space<vmem>>, vector<16x128xf32>
      tpu.vector_store %arg14[%c0_77, %c0_78], %270 {strides = array<i32>} : memref<16x128xf32, #tpu.memory_space<vmem>>, vector<16x128xf32>,
    } else {
    }
    %c0 = arith.constant 0 : index
    %c0_1 = arith.constant 0 : index
    %c0_2 = arith.constant 0 : index
    %3 = vector.load %arg2[%c0, %c0_1, %c0_2] : memref<8x16x128xbf16, #tpu.memory_space<vmem>>, vector<8x16x128xbf16>
    %4 = vector.shape_cast %3 : vector<8x16x128xbf16> to vector<128x128xbf16>
    %c0_3 = arith.constant 0 : index
    %c0_4 = arith.constant 0 : index
    %5 = vector.load %arg5[%c0_3, %c0_4] : memref<128x512xbf16, #tpu.memory_space<vmem>>, vector<128x512xbf16>
    %cst = arith.constant dense<0.000000e+00> : vector<128x512xf32>
    %6 = tpu.matmul %4, %5, %cst {dimension_numbers = #tpu.dot_dimension_numbers<[1], [0], [0], [1], [0, 0, 1, 1], [], []>} : vector<128x128xbf16>, vector<128x512xbf16>, vector<128x512xf32> -> vector<128x512xf32>
    %c0_5 = arith.constant 0 : index
    %c0_6 = arith.constant 0 : index
    %7 = vector.load %arg6[%c0_5, %c0_6] : memref<1x512xf32, #tpu.memory_space<vmem>>, vector<1x512xf32>
    %8 = vector.broadcast %7 : vector<1x512xf32> to vector<128x512xf32>
    %9 = arith.addf %6, %8 : vector<128x512xf32>
    %10 = vector.shape_cast %9 : vector<128x512xf32> to vector<8x16x512xf32>
    %c0_7 = arith.constant 0 : index
    %c0_8 = arith.constant 0 : index
    %c0_9 = arith.constant 0 : index
    %11 = vector.load %arg15[%c0_7, %c0_8, %c0_9] : memref<8x16x512xf32, #tpu.memory_space<vmem>>, vector<8x16x512xf32>
    tpu.vector_store %arg15[%c0_7, %c0_8, %c0_9], %10 {strides = array<i32>} : memref<8x16x512xf32, #tpu.memory_space<vmem>>, vector<8x16x512xf32>,
    %c0_10 = arith.constant 0 : index
    %c0_11 = arith.constant 0 : index
    %12 = vector.load %arg7[%c0_10, %c0_11] : memref<128x512xbf16, #tpu.memory_space<vmem>>, vector<128x512xbf16>
    %c0_12 = arith.constant 0 : index
    %c0_13 = arith.constant 0 : index
    %13 = vector.load %arg13[%c0_12, %c0_13] : memref<16x128xf32, #tpu.memory_space<vmem>>, vector<16x128xf32>
    %c0_14 = arith.constant 0 : index
    %c0_15 = arith.constant 0 : index
    %14 = vector.load %arg14[%c0_14, %c0_15] : memref<16x128xf32, #tpu.memory_space<vmem>>, vector<16x128xf32>
    %c0_i32_16 = arith.constant 0 : i32
    %15 = arith.index_cast %c0_i32_16 : i32 to index
    %c0_17 = arith.constant 0 : index
    %c0_18 = arith.constant 0 : index
    %16 = vector.load %arg15[%15, %c0_17, %c0_18] : memref<8x16x512xf32, #tpu.memory_space<vmem>>, vector<1x16x512xf32>
    %17 = vector.shape_cast %16 : vector<1x16x512xf32> to vector<16x512xf32>
    %18 = arith.truncf %13 : vector<16x128xf32> to vector<16x128xbf16>
    %cst_19 = arith.constant dense<0.000000e+00> : vector<16x512xf32>
    %19 = tpu.matmul %18, %12, %cst_19 {dimension_numbers = #tpu.dot_dimension_numbers<[1], [0], [0], [1], [0, 0, 1, 1], [], []>} : vector<16x128xbf16>, vector<128x512xbf16>, vector<16x512xf32> -> vector<16x512xf32>
    %20 = arith.addf %17, %19 : vector<16x512xf32>
    %21 = vector.extract_strided_slice %20 {offsets = [0, 0], sizes = [16, 128], strides = [1, 1]} : vector<16x512xf32> to vector<16x128xf32>
    %22 = arith.negf %21 : vector<16x128xf32>
    %23 = math.exp %22 : vector<16x128xf32>
    %cst_20 = arith.constant 1.000000e+00 : f32
    %24 = vector.broadcast %cst_20 : f32 to vector<16x128xf32>
    %25 = arith.addf %24, %23 : vector<16x128xf32>
    %26 = arith.divf %24, %25 : vector<16x128xf32>
    %27 = vector.extract_strided_slice %20 {offsets = [0, 128], sizes = [16, 128], strides = [1, 1]} : vector<16x512xf32> to vector<16x128xf32>
    %28 = arith.negf %27 : vector<16x128xf32>
    %29 = math.exp %28 : vector<16x128xf32>
    %cst_21 = arith.constant 1.000000e+00 : f32
    %30 = vector.broadcast %cst_21 : f32 to vector<16x128xf32>
    %31 = arith.addf %30, %29 : vector<16x128xf32>
    %32 = arith.divf %30, %31 : vector<16x128xf32>
    %33 = vector.extract_strided_slice %20 {offsets = [0, 256], sizes = [16, 128], strides = [1, 1]} : vector<16x512xf32> to vector<16x128xf32>
    %34 = math.tanh %33 : vector<16x128xf32>
    %35 = vector.extract_strided_slice %20 {offsets = [0, 384], sizes = [16, 128], strides = [1, 1]} : vector<16x512xf32> to vector<16x128xf32>
    %36 = arith.negf %35 : vector<16x128xf32>
    %37 = math.exp %36 : vector<16x128xf32>
    %cst_22 = arith.constant 1.000000e+00 : f32
    %38 = vector.broadcast %cst_22 : f32 to vector<16x128xf32>
    %39 = arith.addf %38, %37 : vector<16x128xf32>
    %40 = arith.divf %38, %39 : vector<16x128xf32>
    %41 = arith.mulf %32, %14 : vector<16x128xf32>
    %42 = arith.mulf %26, %34 : vector<16x128xf32>
    %43 = arith.addf %41, %42 : vector<16x128xf32>
    %44 = math.tanh %43 : vector<16x128xf32>
    %45 = arith.mulf %40, %44 : vector<16x128xf32>
    %c1_i32 = arith.constant 1 : i32
    %46 = arith.index_cast %c1_i32 : i32 to index
    %c0_23 = arith.constant 0 : index
    %c0_24 = arith.constant 0 : index
    %47 = vector.load %arg15[%46, %c0_23, %c0_24] : memref<8x16x512xf32, #tpu.memory_space<vmem>>, vector<1x16x512xf32>
    %48 = vector.shape_cast %47 : vector<1x16x512xf32> to vector<16x512xf32>
    %49 = arith.truncf %45 : vector<16x128xf32> to vector<16x128xbf16>
    %cst_25 = arith.constant dense<0.000000e+00> : vector<16x512xf32>
    %50 = tpu.matmul %49, %12, %cst_25 {dimension_numbers = #tpu.dot_dimension_numbers<[1], [0], [0], [1], [0, 0, 1, 1], [], []>} : vector<16x128xbf16>, vector<128x512xbf16>, vector<16x512xf32> -> vector<16x512xf32>
    %51 = arith.addf %48, %50 : vector<16x512xf32>
    %52 = vector.extract_strided_slice %51 {offsets = [0, 0], sizes = [16, 128], strides = [1, 1]} : vector<16x512xf32> to vector<16x128xf32>
    %53 = arith.negf %52 : vector<16x128xf32>
    %54 = math.exp %53 : vector<16x128xf32>
    %cst_26 = arith.constant 1.000000e+00 : f32
    %55 = vector.broadcast %cst_26 : f32 to vector<16x128xf32>
    %56 = arith.addf %55, %54 : vector<16x128xf32>
    %57 = arith.divf %55, %56 : vector<16x128xf32>
    %58 = vector.extract_strided_slice %51 {offsets = [0, 128], sizes = [16, 128], strides = [1, 1]} : vector<16x512xf32> to vector<16x128xf32>
    %59 = arith.negf %58 : vector<16x128xf32>
    %60 = math.exp %59 : vector<16x128xf32>
    %cst_27 = arith.constant 1.000000e+00 : f32
    %61 = vector.broadcast %cst_27 : f32 to vector<16x128xf32>
    %62 = arith.addf %61, %60 : vector<16x128xf32>
    %63 = arith.divf %61, %62 : vector<16x128xf32>
    %64 = vector.extract_strided_slice %51 {offsets = [0, 256], sizes = [16, 128], strides = [1, 1]} : vector<16x512xf32> to vector<16x128xf32>
    %65 = math.tanh %64 : vector<16x128xf32>
    %66 = vector.extract_strided_slice %51 {offsets = [0, 384], sizes = [16, 128], strides = [1, 1]} : vector<16x512xf32> to vector<16x128xf32>
    %67 = arith.negf %66 : vector<16x128xf32>
    %68 = math.exp %67 : vector<16x128xf32>
    %cst_28 = arith.constant 1.000000e+00 : f32
    %69 = vector.broadcast %cst_28 : f32 to vector<16x128xf32>
    %70 = arith.addf %69, %68 : vector<16x128xf32>
    %71 = arith.divf %69, %70 : vector<16x128xf32>
    %72 = arith.mulf %63, %43 : vector<16x128xf32>
    %73 = arith.mulf %57, %65 : vector<16x128xf32>
    %74 = arith.addf %72, %73 : vector<16x128xf32>
    %75 = math.tanh %74 : vector<16x128xf32>
    %76 = arith.mulf %71, %75 : vector<16x128xf32>
    %c2_i32 = arith.constant 2 : i32
    %77 = arith.index_cast %c2_i32 : i32 to index
    %c0_29 = arith.constant 0 : index
    %c0_30 = arith.constant 0 : index
    %78 = vector.load %arg15[%77, %c0_29, %c0_30] : memref<8x16x512xf32, #tpu.memory_space<vmem>>, vector<1x16x512xf32>
    %79 = vector.shape_cast %78 : vector<1x16x512xf32> to vector<16x512xf32>
    %80 = arith.truncf %76 : vector<16x128xf32> to vector<16x128xbf16>
    %cst_31 = arith.constant dense<0.000000e+00> : vector<16x512xf32>
    %81 = tpu.matmul %80, %12, %cst_31 {dimension_numbers = #tpu.dot_dimension_numbers<[1], [0], [0], [1], [0, 0, 1, 1], [], []>} : vector<16x128xbf16>, vector<128x512xbf16>, vector<16x512xf32> -> vector<16x512xf32>
    %82 = arith.addf %79, %81 : vector<16x512xf32>
    %83 = vector.extract_strided_slice %82 {offsets = [0, 0], sizes = [16, 128], strides = [1, 1]} : vector<16x512xf32> to vector<16x128xf32>
    %84 = arith.negf %83 : vector<16x128xf32>
    %85 = math.exp %84 : vector<16x128xf32>
    %cst_32 = arith.constant 1.000000e+00 : f32
    %86 = vector.broadcast %cst_32 : f32 to vector<16x128xf32>
    %87 = arith.addf %86, %85 : vector<16x128xf32>
    %88 = arith.divf %86, %87 : vector<16x128xf32>
    %89 = vector.extract_strided_slice %82 {offsets = [0, 128], sizes = [16, 128], strides = [1, 1]} : vector<16x512xf32> to vector<16x128xf32>
    %90 = arith.negf %89 : vector<16x128xf32>
    %91 = math.exp %90 : vector<16x128xf32>
    %cst_33 = arith.constant 1.000000e+00 : f32
    %92 = vector.broadcast %cst_33 : f32 to vector<16x128xf32>
    %93 = arith.addf %92, %91 : vector<16x128xf32>
    %94 = arith.divf %92, %93 : vector<16x128xf32>
    %95 = vector.extract_strided_slice %82 {offsets = [0, 256], sizes = [16, 128], strides = [1, 1]} : vector<16x512xf32> to vector<16x128xf32>
    %96 = math.tanh %95 : vector<16x128xf32>
    %97 = vector.extract_strided_slice %82 {offsets = [0, 384], sizes = [16, 128], strides = [1, 1]} : vector<16x512xf32> to vector<16x128xf32>
    %98 = arith.negf %97 : vector<16x128xf32>
    %99 = math.exp %98 : vector<16x128xf32>
    %cst_34 = arith.constant 1.000000e+00 : f32
    %100 = vector.broadcast %cst_34 : f32 to vector<16x128xf32>
    %101 = arith.addf %100, %99 : vector<16x128xf32>
    %102 = arith.divf %100, %101 : vector<16x128xf32>
    %103 = arith.mulf %94, %74 : vector<16x128xf32>
    %104 = arith.mulf %88, %96 : vector<16x128xf32>
    %105 = arith.addf %103, %104 : vector<16x128xf32>
    %106 = math.tanh %105 : vector<16x128xf32>
    %107 = arith.mulf %102, %106 : vector<16x128xf32>
    %c3_i32 = arith.constant 3 : i32
    %108 = arith.index_cast %c3_i32 : i32 to index
    %c0_35 = arith.constant 0 : index
    %c0_36 = arith.constant 0 : index
    %109 = vector.load %arg15[%108, %c0_35, %c0_36] : memref<8x16x512xf32, #tpu.memory_space<vmem>>, vector<1x16x512xf32>
    %110 = vector.shape_cast %109 : vector<1x16x512xf32> to vector<16x512xf32>
    %111 = arith.truncf %107 : vector<16x128xf32> to vector<16x128xbf16>
    %cst_37 = arith.constant dense<0.000000e+00> : vector<16x512xf32>
    %112 = tpu.matmul %111, %12, %cst_37 {dimension_numbers = #tpu.dot_dimension_numbers<[1], [0], [0], [1], [0, 0, 1, 1], [], []>} : vector<16x128xbf16>, vector<128x512xbf16>, vector<16x512xf32> -> vector<16x512xf32>
    %113 = arith.addf %110, %112 : vector<16x512xf32>
    %114 = vector.extract_strided_slice %113 {offsets = [0, 0], sizes = [16, 128], strides = [1, 1]} : vector<16x512xf32> to vector<16x128xf32>
    %115 = arith.negf %114 : vector<16x128xf32>
    %116 = math.exp %115 : vector<16x128xf32>
    %cst_38 = arith.constant 1.000000e+00 : f32
    %117 = vector.broadcast %cst_38 : f32 to vector<16x128xf32>
    %118 = arith.addf %117, %116 : vector<16x128xf32>
    %119 = arith.divf %117, %118 : vector<16x128xf32>
    %120 = vector.extract_strided_slice %113 {offsets = [0, 128], sizes = [16, 128], strides = [1, 1]} : vector<16x512xf32> to vector<16x128xf32>
    %121 = arith.negf %120 : vector<16x128xf32>
    %122 = math.exp %121 : vector<16x128xf32>
    %cst_39 = arith.constant 1.000000e+00 : f32
    %123 = vector.broadcast %cst_39 : f32 to vector<16x128xf32>
    %124 = arith.addf %123, %122 : vector<16x128xf32>
    %125 = arith.divf %123, %124 : vector<16x128xf32>
    %126 = vector.extract_strided_slice %113 {offsets = [0, 256], sizes = [16, 128], strides = [1, 1]} : vector<16x512xf32> to vector<16x128xf32>
    %127 = math.tanh %126 : vector<16x128xf32>
    %128 = vector.extract_strided_slice %113 {offsets = [0, 384], sizes = [16, 128], strides = [1, 1]} : vector<16x512xf32> to vector<16x128xf32>
    %129 = arith.negf %128 : vector<16x128xf32>
    %130 = math.exp %129 : vector<16x128xf32>
    %cst_40 = arith.constant 1.000000e+00 : f32
    %131 = vector.broadcast %cst_40 : f32 to vector<16x128xf32>
    %132 = arith.addf %131, %130 : vector<16x128xf32>
    %133 = arith.divf %131, %132 : vector<16x128xf32>
    %134 = arith.mulf %125, %105 : vector<16x128xf32>
    %135 = arith.mulf %119, %127 : vector<16x128xf32>
    %136 = arith.addf %134, %135 : vector<16x128xf32>
    %137 = math.tanh %136 : vector<16x128xf32>
    %138 = arith.mulf %133, %137 : vector<16x128xf32>
    %c4_i32 = arith.constant 4 : i32
    %139 = arith.index_cast %c4_i32 : i32 to index
    %c0_41 = arith.constant 0 : index
    %c0_42 = arith.constant 0 : index
    %140 = vector.load %arg15[%139, %c0_41, %c0_42] : memref<8x16x512xf32, #tpu.memory_space<vmem>>, vector<1x16x512xf32>
    %141 = vector.shape_cast %140 : vector<1x16x512xf32> to vector<16x512xf32>
    %142 = arith.truncf %138 : vector<16x128xf32> to vector<16x128xbf16>
    %cst_43 = arith.constant dense<0.000000e+00> : vector<16x512xf32>
    %143 = tpu.matmul %142, %12, %cst_43 {dimension_numbers = #tpu.dot_dimension_numbers<[1], [0], [0], [1], [0, 0, 1, 1], [], []>} : vector<16x128xbf16>, vector<128x512xbf16>, vector<16x512xf32> -> vector<16x512xf32>
    %144 = arith.addf %141, %143 : vector<16x512xf32>
    %145 = vector.extract_strided_slice %144 {offsets = [0, 0], sizes = [16, 128], strides = [1, 1]} : vector<16x512xf32> to vector<16x128xf32>
    %146 = arith.negf %145 : vector<16x128xf32>
    %147 = math.exp %146 : vector<16x128xf32>
    %cst_44 = arith.constant 1.000000e+00 : f32
    %148 = vector.broadcast %cst_44 : f32 to vector<16x128xf32>
    %149 = arith.addf %148, %147 : vector<16x128xf32>
    %150 = arith.divf %148, %149 : vector<16x128xf32>
    %151 = vector.extract_strided_slice %144 {offsets = [0, 128], sizes = [16, 128], strides = [1, 1]} : vector<16x512xf32> to vector<16x128xf32>
    %152 = arith.negf %151 : vector<16x128xf32>
    %153 = math.exp %152 : vector<16x128xf32>
    %cst_45 = arith.constant 1.000000e+00 : f32
    %154 = vector.broadcast %cst_45 : f32 to vector<16x128xf32>
    %155 = arith.addf %154, %153 : vector<16x128xf32>
    %156 = arith.divf %154, %155 : vector<16x128xf32>
    %157 = vector.extract_strided_slice %144 {offsets = [0, 256], sizes = [16, 128], strides = [1, 1]} : vector<16x512xf32> to vector<16x128xf32>
    %158 = math.tanh %157 : vector<16x128xf32>
    %159 = vector.extract_strided_slice %144 {offsets = [0, 384], sizes = [16, 128], strides = [1, 1]} : vector<16x512xf32> to vector<16x128xf32>
    %160 = arith.negf %159 : vector<16x128xf32>
    %161 = math.exp %160 : vector<16x128xf32>
    %cst_46 = arith.constant 1.000000e+00 : f32
    %162 = vector.broadcast %cst_46 : f32 to vector<16x128xf32>
    %163 = arith.addf %162, %161 : vector<16x128xf32>
    %164 = arith.divf %162, %163 : vector<16x128xf32>
    %165 = arith.mulf %156, %136 : vector<16x128xf32>
    %166 = arith.mulf %150, %158 : vector<16x128xf32>
    %167 = arith.addf %165, %166 : vector<16x128xf32>
    %168 = math.tanh %167 : vector<16x128xf32>
    %169 = arith.mulf %164, %168 : vector<16x128xf32>
    %c5_i32 = arith.constant 5 : i32
    %170 = arith.index_cast %c5_i32 : i32 to index
    %c0_47 = arith.constant 0 : index
    %c0_48 = arith.constant 0 : index
    %171 = vector.load %arg15[%170, %c0_47, %c0_48] : memref<8x16x512xf32, #tpu.memory_space<vmem>>, vector<1x16x512xf32>
    %172 = vector.shape_cast %171 : vector<1x16x512xf32> to vector<16x512xf32>
    %173 = arith.truncf %169 : vector<16x128xf32> to vector<16x128xbf16>
    %cst_49 = arith.constant dense<0.000000e+00> : vector<16x512xf32>
    %174 = tpu.matmul %173, %12, %cst_49 {dimension_numbers = #tpu.dot_dimension_numbers<[1], [0], [0], [1], [0, 0, 1, 1], [], []>} : vector<16x128xbf16>, vector<128x512xbf16>, vector<16x512xf32> -> vector<16x512xf32>
    %175 = arith.addf %172, %174 : vector<16x512xf32>
    %176 = vector.extract_strided_slice %175 {offsets = [0, 0], sizes = [16, 128], strides = [1, 1]} : vector<16x512xf32> to vector<16x128xf32>
    %177 = arith.negf %176 : vector<16x128xf32>
    %178 = math.exp %177 : vector<16x128xf32>
    %cst_50 = arith.constant 1.000000e+00 : f32
    %179 = vector.broadcast %cst_50 : f32 to vector<16x128xf32>
    %180 = arith.addf %179, %178 : vector<16x128xf32>
    %181 = arith.divf %179, %180 : vector<16x128xf32>
    %182 = vector.extract_strided_slice %175 {offsets = [0, 128], sizes = [16, 128], strides = [1, 1]} : vector<16x512xf32> to vector<16x128xf32>
    %183 = arith.negf %182 : vector<16x128xf32>
    %184 = math.exp %183 : vector<16x128xf32>
    %cst_51 = arith.constant 1.000000e+00 : f32
    %185 = vector.broadcast %cst_51 : f32 to vector<16x128xf32>
    %186 = arith.addf %185, %184 : vector<16x128xf32>
    %187 = arith.divf %185, %186 : vector<16x128xf32>
    %188 = vector.extract_strided_slice %175 {offsets = [0, 256], sizes = [16, 128], strides = [1, 1]} : vector<16x512xf32> to vector<16x128xf32>
    %189 = math.tanh %188 : vector<16x128xf32>
    %190 = vector.extract_strided_slice %175 {offsets = [0, 384], sizes = [16, 128], strides = [1, 1]} : vector<16x512xf32> to vector<16x128xf32>
    %191 = arith.negf %190 : vector<16x128xf32>
    %192 = math.exp %191 : vector<16x128xf32>
    %cst_52 = arith.constant 1.000000e+00 : f32
    %193 = vector.broadcast %cst_52 : f32 to vector<16x128xf32>
    %194 = arith.addf %193, %192 : vector<16x128xf32>
    %195 = arith.divf %193, %194 : vector<16x128xf32>
    %196 = arith.mulf %187, %167 : vector<16x128xf32>
    %197 = arith.mulf %181, %189 : vector<16x128xf32>
    %198 = arith.addf %196, %197 : vector<16x128xf32>
    %199 = math.tanh %198 : vector<16x128xf32>
    %200 = arith.mulf %195, %199 : vector<16x128xf32>
    %c6_i32 = arith.constant 6 : i32
    %201 = arith.index_cast %c6_i32 : i32 to index
    %c0_53 = arith.constant 0 : index
    %c0_54 = arith.constant 0 : index
    %202 = vector.load %arg15[%201, %c0_53, %c0_54] : memref<8x16x512xf32, #tpu.memory_space<vmem>>, vector<1x16x512xf32>
    %203 = vector.shape_cast %202 : vector<1x16x512xf32> to vector<16x512xf32>
    %204 = arith.truncf %200 : vector<16x128xf32> to vector<16x128xbf16>
    %cst_55 = arith.constant dense<0.000000e+00> : vector<16x512xf32>
    %205 = tpu.matmul %204, %12, %cst_55 {dimension_numbers = #tpu.dot_dimension_numbers<[1], [0], [0], [1], [0, 0, 1, 1], [], []>} : vector<16x128xbf16>, vector<128x512xbf16>, vector<16x512xf32> -> vector<16x512xf32>
    %206 = arith.addf %203, %205 : vector<16x512xf32>
    %207 = vector.extract_strided_slice %206 {offsets = [0, 0], sizes = [16, 128], strides = [1, 1]} : vector<16x512xf32> to vector<16x128xf32>
    %208 = arith.negf %207 : vector<16x128xf32>
    %209 = math.exp %208 : vector<16x128xf32>
    %cst_56 = arith.constant 1.000000e+00 : f32
    %210 = vector.broadcast %cst_56 : f32 to vector<16x128xf32>
    %211 = arith.addf %210, %209 : vector<16x128xf32>
    %212 = arith.divf %210, %211 : vector<16x128xf32>
    %213 = vector.extract_strided_slice %206 {offsets = [0, 128], sizes = [16, 128], strides = [1, 1]} : vector<16x512xf32> to vector<16x128xf32>
    %214 = arith.negf %213 : vector<16x128xf32>
    %215 = math.exp %214 : vector<16x128xf32>
    %cst_57 = arith.constant 1.000000e+00 : f32
    %216 = vector.broadcast %cst_57 : f32 to vector<16x128xf32>
    %217 = arith.addf %216, %215 : vector<16x128xf32>
    %218 = arith.divf %216, %217 : vector<16x128xf32>
    %219 = vector.extract_strided_slice %206 {offsets = [0, 256], sizes = [16, 128], strides = [1, 1]} : vector<16x512xf32> to vector<16x128xf32>
    %220 = math.tanh %219 : vector<16x128xf32>
    %221 = vector.extract_strided_slice %206 {offsets = [0, 384], sizes = [16, 128], strides = [1, 1]} : vector<16x512xf32> to vector<16x128xf32>
    %222 = arith.negf %221 : vector<16x128xf32>
    %223 = math.exp %222 : vector<16x128xf32>
    %cst_58 = arith.constant 1.000000e+00 : f32
    %224 = vector.broadcast %cst_58 : f32 to vector<16x128xf32>
    %225 = arith.addf %224, %223 : vector<16x128xf32>
    %226 = arith.divf %224, %225 : vector<16x128xf32>
    %227 = arith.mulf %218, %198 : vector<16x128xf32>
    %228 = arith.mulf %212, %220 : vector<16x128xf32>
    %229 = arith.addf %227, %228 : vector<16x128xf32>
    %230 = math.tanh %229 : vector<16x128xf32>
    %231 = arith.mulf %226, %230 : vector<16x128xf32>
    %c7_i32 = arith.constant 7 : i32
    %232 = arith.index_cast %c7_i32 : i32 to index
    %c0_59 = arith.constant 0 : index
    %c0_60 = arith.constant 0 : index
    %233 = vector.load %arg15[%232, %c0_59, %c0_60] : memref<8x16x512xf32, #tpu.memory_space<vmem>>, vector<1x16x512xf32>
    %234 = vector.shape_cast %233 : vector<1x16x512xf32> to vector<16x512xf32>
    %235 = arith.truncf %231 : vector<16x128xf32> to vector<16x128xbf16>
    %cst_61 = arith.constant dense<0.000000e+00> : vector<16x512xf32>
    %236 = tpu.matmul %235, %12, %cst_61 {dimension_numbers = #tpu.dot_dimension_numbers<[1], [0], [0], [1], [0, 0, 1, 1], [], []>} : vector<16x128xbf16>, vector<128x512xbf16>, vector<16x512xf32> -> vector<16x512xf32>
    %237 = arith.addf %234, %236 : vector<16x512xf32>
    %238 = vector.extract_strided_slice %237 {offsets = [0, 0], sizes = [16, 128], strides = [1, 1]} : vector<16x512xf32> to vector<16x128xf32>
    %239 = arith.negf %238 : vector<16x128xf32>
    %240 = math.exp %239 : vector<16x128xf32>
    %cst_62 = arith.constant 1.000000e+00 : f32
    %241 = vector.broadcast %cst_62 : f32 to vector<16x128xf32>
    %242 = arith.addf %241, %240 : vector<16x128xf32>
    %243 = arith.divf %241, %242 : vector<16x128xf32>
    %244 = vector.extract_strided_slice %237 {offsets = [0, 128], sizes = [16, 128], strides = [1, 1]} : vector<16x512xf32> to vector<16x128xf32>
    %245 = arith.negf %244 : vector<16x128xf32>
    %246 = math.exp %245 : vector<16x128xf32>
    %cst_63 = arith.constant 1.000000e+00 : f32
    %247 = vector.broadcast %cst_63 : f32 to vector<16x128xf32>
    %248 = arith.addf %247, %246 : vector<16x128xf32>
    %249 = arith.divf %247, %248 : vector<16x128xf32>
    %250 = vector.extract_strided_slice %237 {offsets = [0, 256], sizes = [16, 128], strides = [1, 1]} : vector<16x512xf32> to vector<16x128xf32>
    %251 = math.tanh %250 : vector<16x128xf32>
    %252 = vector.extract_strided_slice %237 {offsets = [0, 384], sizes = [16, 128], strides = [1, 1]} : vector<16x512xf32> to vector<16x128xf32>
    %253 = arith.negf %252 : vector<16x128xf32>
    %254 = math.exp %253 : vector<16x128xf32>
    %cst_64 = arith.constant 1.000000e+00 : f32
    %255 = vector.broadcast %cst_64 : f32 to vector<16x128xf32>
    %256 = arith.addf %255, %254 : vector<16x128xf32>
    %257 = arith.divf %255, %256 : vector<16x128xf32>
    %258 = arith.mulf %249, %229 : vector<16x128xf32>
    %259 = arith.mulf %243, %251 : vector<16x128xf32>
    %260 = arith.addf %258, %259 : vector<16x128xf32>
    %261 = math.tanh %260 : vector<16x128xf32>
    %262 = arith.mulf %257, %261 : vector<16x128xf32>
    %c8_i32 = arith.constant 8 : i32
    %c0_65 = arith.constant 0 : index
    %c0_66 = arith.constant 0 : index
    %263 = vector.load %arg13[%c0_65, %c0_66] : memref<16x128xf32, #tpu.memory_space<vmem>>, vector<16x128xf32>
    tpu.vector_store %arg13[%c0_65, %c0_66], %262 {strides = array<i32>} : memref<16x128xf32, #tpu.memory_space<vmem>>, vector<16x128xf32>,
    %c0_67 = arith.constant 0 : index
    %c0_68 = arith.constant 0 : index
    %264 = vector.load %arg14[%c0_67, %c0_68] : memref<16x128xf32, #tpu.memory_space<vmem>>, vector<16x128xf32>
    tpu.vector_store %arg14[%c0_67, %c0_68], %260 {strides = array<i32>} : memref<16x128xf32, #tpu.memory_space<vmem>>, vector<16x128xf32>,
    %c0_i32_69 = arith.constant 0 : i32
    %265 = arith.cmpi eq, %arg1, %c0_i32_69 : i32
    %266 = arith.extui %265 : i1 to i32
    %c0_i32_70 = arith.constant 0 : i32
    %267 = arith.cmpi ne, %266, %c0_i32_70 : i32
    scf.if %267 {
      %268 = arith.truncf %262 : vector<16x128xf32> to vector<16x128xbf16>
      %c0_71 = arith.constant 0 : index
      %c0_72 = arith.constant 0 : index
      %269 = vector.load %arg8[%c0_71, %c0_72] : memref<128x128xbf16, #tpu.memory_space<vmem>>, vector<128x128xbf16>
      %cst_73 = arith.constant dense<0.000000e+00> : vector<16x128xf32>
      %270 = tpu.matmul %268, %269, %cst_73 {dimension_numbers = #tpu.dot_dimension_numbers<[1], [0], [0], [1], [0, 0, 1, 1], [], []>} : vector<16x128xbf16>, vector<128x128xbf16>, vector<16x128xf32> -> vector<16x128xf32>
      %c0_74 = arith.constant 0 : index
      %c0_75 = arith.constant 0 : index
      %271 = vector.load %arg9[%c0_74, %c0_75] : memref<1x128xf32, #tpu.memory_space<vmem>>, vector<1x128xf32>
      %272 = vector.broadcast %271 : vector<1x128xf32> to vector<16x128xf32>
      %273 = arith.addf %270, %272 : vector<16x128xf32>
      %cst_76 = arith.constant dense<0xFF800000> : vector<16xf32>
      %274 = vector.multi_reduction <maximumf>, %273, %cst_76 [1] : vector<16x128xf32> to vector<16xf32>
      %275 = vector.shape_cast %274 : vector<16xf32> to vector<16x1xf32>
      %276 = vector.broadcast %275 : vector<16x1xf32> to vector<16x128xf32>
      %277 = arith.subf %273, %276 : vector<16x128xf32>
      %278 = math.exp %277 : vector<16x128xf32>
      %cst_77 = arith.constant dense<0.000000e+00> : vector<16xf32>
      %279 = vector.multi_reduction <add>, %278, %cst_77 [1] : vector<16x128xf32> to vector<16xf32>
      %280 = vector.shape_cast %279 : vector<16xf32> to vector<16x1xf32>
      %281 = math.log %280 : vector<16x1xf32>
      %282 = vector.broadcast %281 : vector<16x1xf32> to vector<16x128xf32>
      %283 = arith.subf %277, %282 : vector<16x128xf32>
      %c0_78 = arith.constant 0 : index
      %c0_79 = arith.constant 0 : index
      %284 = vector.load %arg10[%c0_78, %c0_79] : memref<16x128xf32, #tpu.memory_space<vmem>>, vector<16x128xf32>
      tpu.vector_store %arg10[%c0_78, %c0_79], %283 {strides = array<i32>} : memref<16x128xf32, #tpu.memory_space<vmem>>, vector<16x128xf32>,
      %c0_80 = arith.constant 0 : index
      %c0_81 = arith.constant 0 : index
      %285 = vector.load %arg11[%c0_80, %c0_81] : memref<16x128xf32, #tpu.memory_space<vmem>>, vector<16x128xf32>
      tpu.vector_store %arg11[%c0_80, %c0_81], %262 {strides = array<i32>} : memref<16x128xf32, #tpu.memory_space<vmem>>, vector<16x128xf32>,
      %c0_82 = arith.constant 0 : index
      %c0_83 = arith.constant 0 : index
      %286 = vector.load %arg12[%c0_82, %c0_83] : memref<16x128xf32, #tpu.memory_space<vmem>>, vector<16x128xf32>
      tpu.vector_store %arg12[%c0_82, %c0_83], %260 {strides = array<i32>} : memref<16x128xf32, #tpu.memory_space<vmem>>, vector<16x128xf32>,
    } else {
    }
    return
  }
  func.func @transform_0(%arg0: i32, %arg1: i32) -> (i32, i32, i32) {
    %c0_i32 = arith.constant 0 : i32
    %c0_i32_0 = arith.constant 0 : i32
    return %arg1, %arg0, %c0_i32 : i32, i32, i32
  }
  func.func @transform_1(%arg0: i32, %arg1: i32) -> (i32, i32) {
    %c0_i32 = arith.constant 0 : i32
    %c0_i32_0 = arith.constant 0 : i32
    return %arg0, %c0_i32 : i32, i32
  }
  func.func @transform_2(%arg0: i32, %arg1: i32) -> (i32, i32) {
    %c0_i32 = arith.constant 0 : i32
    %c0_i32_0 = arith.constant 0 : i32
    return %arg0, %c0_i32 : i32, i32
  }
  func.func @transform_3(%arg0: i32, %arg1: i32) -> (i32, i32) {
    %c0_i32 = arith.constant 0 : i32
    %c0_i32_0 = arith.constant 0 : i32
    %c0_i32_1 = arith.constant 0 : i32
    return %c0_i32, %c0_i32_0 : i32, i32
  }
  func.func @transform_4(%arg0: i32, %arg1: i32) -> (i32, i32) {
    %c0_i32 = arith.constant 0 : i32
    %c0_i32_0 = arith.constant 0 : i32
    %c0_i32_1 = arith.constant 0 : i32
    return %c0_i32, %c0_i32_0 : i32, i32
  }
  func.func @transform_5(%arg0: i32, %arg1: i32) -> (i32, i32) {
    %c0_i32 = arith.constant 0 : i32
    %c0_i32_0 = arith.constant 0 : i32
    %c0_i32_1 = arith.constant 0 : i32
    return %c0_i32, %c0_i32_0 : i32, i32
  }
  func.func @transform_6(%arg0: i32, %arg1: i32) -> (i32, i32) {
    %c0_i32 = arith.constant 0 : i32
    %c0_i32_0 = arith.constant 0 : i32
    %c0_i32_1 = arith.constant 0 : i32
    return %c0_i32, %c0_i32_0 : i32, i32
  }
  func.func @transform_7(%arg0: i32, %arg1: i32) -> (i32, i32) {
    %c0_i32 = arith.constant 0 : i32
    %c0_i32_0 = arith.constant 0 : i32
    %c0_i32_1 = arith.constant 0 : i32
    return %c0_i32, %c0_i32_0 : i32, i32
  }
  func.func @transform_8(%arg0: i32, %arg1: i32) -> (i32, i32) {
    %c0_i32 = arith.constant 0 : i32
    %c0_i32_0 = arith.constant 0 : i32
    return %arg0, %c0_i32 : i32, i32
  }
  func.func @transform_9(%arg0: i32, %arg1: i32) -> (i32, i32) {
    %c0_i32 = arith.constant 0 : i32
    %c0_i32_0 = arith.constant 0 : i32
    return %arg0, %c0_i32 : i32, i32
  }
  func.func @transform_10(%arg0: i32, %arg1: i32) -> (i32, i32) {
    %c0_i32 = arith.constant 0 : i32
    %c0_i32_0 = arith.constant 0 : i32
    return %arg0, %c0_i32 : i32, i32
  }
}

</mosaic_0001>

<llo_original>
// kernel: tpu_custom_call.1
$region0: #{tpu_custom_call.1}
  #allocation0 [shape = 'u32[]', space=smem, size = 0x4, offset = 0x4, fixed_abs, tag = 'smem constant byte address 0x4 - core index']
  #allocation1 [shape = 'u32[72,128]{1,0:T(1,128)}', space=vmem, size = 0x9000, scoped, tag = 'internal scratch']
  #allocation2 [shape = 'f32[16,128]{1,0:T(8,128)}', space=vmem, size = 0x2000, scoped, tag = 'scratch operand']
  #allocation3 [shape = 'f32[16,128]{1,0:T(8,128)}', space=vmem, size = 0x2000, scoped, tag = 'scratch operand']
  #allocation4 [shape = 'f32[8,16,512]{2,1,0:T(8,128)}', space=vmem, size = 0x40000, scoped, tag = 'scratch operand']
  %s0 = inlined_call_operand.hbm [shape: bf16[8,16,128], index: 0, kind: input, shape index: {}]
  %s1 = inlined_call_operand.hbm [shape: f32[16,128], index: 1, kind: input, shape index: {}]
  %s2 = inlined_call_operand.hbm [shape: f32[16,128], index: 2, kind: input, shape index: {}]
  %s3 = inlined_call_operand.hbm [shape: bf16[128,512], index: 3, kind: input, shape index: {}]
  %s4 = inlined_call_operand.hbm [shape: f32[1,512], index: 4, kind: input, shape index: {}]
  %s5 = inlined_call_operand.hbm [shape: bf16[128,512], index: 5, kind: input, shape index: {}]
  %s6 = inlined_call_operand.hbm [shape: bf16[128,128], index: 6, kind: input, shape index: {}]
  %s7 = inlined_call_operand.vmem [shape: f32[1,128], index: 7, kind: input, shape index: {}]
  %s8 = inlined_call_operand.hbm [shape: f32[16,128], index: 8, kind: output, shape index: {0}]
  %s9 = inlined_call_operand.hbm [shape: f32[16,128], index: 9, kind: output, shape index: {1}]
  %s10 = inlined_call_operand.hbm [shape: f32[16,128], index: 10, kind: output, shape index: {2}]
  %11 = xla_tuple %s8, %s9, %s10
  %s12 = sld [smem:[#allocation0]]
  $region94: #{tpu_custom_call.1} parent=0
    _
  %s14 = ssub.s32 1, %s12
  %s15 = scalar_select 0, %s14, %s12
  $region1: #{tpu_custom_call.1} parent=0
    #allocation5 [shape = 'u8[32768]{0}', space=vmem, size = 0x8000, scoped, tag = 'input window, operand 0, single buffered']
    #allocation6 [shape = 's32[1]{0}', space=sflag, size = 0x4, scoped, tag = 'scoped memory for tpu_custom_call.1']
    #allocation7 [shape = 's32[1]{0}', space=sflag, size = 0x4, scoped, tag = 'scoped memory for tpu_custom_call.1']
    #allocation8 [shape = 'u8[8192]{0}', space=vmem, size = 0x2000, scoped, tag = 'input window, operand 1, single buffered']
    #allocation9 [shape = 's32[1]{0}', space=sflag, size = 0x4, scoped, tag = 'scoped memory for tpu_custom_call.1']
    #allocation10 [shape = 'u8[8192]{0}', space=vmem, size = 0x2000, scoped, tag = 'input window, operand 2, single buffered']
    #allocation11 [shape = 'u8[131072]{0}', space=vmem, size = 0x20000, scoped, tag = 'input window, operand 3, single buffered']
    #allocation12 [shape = 's32[1]{0}', space=sflag, size = 0x4, scoped, tag = 'scoped memory for tpu_custom_call.1']
    #allocation13 [shape = 'u8[2048]{0}', space=vmem, size = 0x800, scoped, tag = 'input window, operand 4, single buffered']
    #allocation14 [shape = 'u8[131072]{0}', space=vmem, size = 0x20000, scoped, tag = 'input window, operand 5, single buffered']
    #allocation15 [shape = 's32[1]{0}', space=sflag, size = 0x4, scoped, tag = 'scoped memory for tpu_custom_call.1']
    #allocation16 [shape = 'u8[32768]{0}', space=vmem, size = 0x8000, scoped, tag = 'input window, operand 6, single buffered']
    #allocation17 [shape = 'u8[8192]{0}', space=vmem, size = 0x2000, scoped, tag = 'output window, operand 0, single buffered']
    #allocation18 [shape = 'u8[8192]{0}', space=vmem, size = 0x2000, scoped, tag = 'output window, operand 1, single buffered']
    #allocation19 [shape = 's32[1]{0}', space=sflag, size = 0x4, scoped, tag = 'scoped memory for tpu_custom_call.1']
    #allocation20 [shape = 'u8[8192]{0}', space=vmem, size = 0x2000, scoped, tag = 'output window, operand 2, single buffered']
    %16 = vsyncpa [#allocation6], 0
    %17 = vsyncpa [#allocation9], 0
    %18 = vsyncpa [#allocation12], 0
    %19 = vsyncpa [#allocation15], 0
    %20 = vsyncpa [#allocation7], 0
    %21 = vsyncpa [#allocation19], 0
    // Predicated region
    $region2: #{tpu_custom_call.1} parent=1 // pred_check
      _
    $region3: #{tpu_custom_call.1} parent=1 // pred_check_branch
      %23 = sbr.rel (0) target = $region5
    $region4: #{tpu_custom_call.1} parent=1 // pred_region
      %25 = vsyncadd [#allocation6], 0
      %s26 = sshll.u32 %s0, 4
      %s27 = int_to_ptr.hbm [resolvable:$true] %s26
      %s28 = sshll.u32 [#allocation5], 4
      %s29 = int_to_ptr.vmem [resolvable:$true] %s28
      %34 = dma.hbm_to_vmem [thread:$0]  %s27, 1024, %s29, [#allocation6], 64, 64, 4
    $region5: #{tpu_custom_call.1} parent=1 // pred_fallthru
      _
    // Predicated region
    $region6: #{tpu_custom_call.1} parent=1 // pred_check
      _
    $region7: #{tpu_custom_call.1} parent=1 // pred_check_branch
      %36 = sbr.rel (0) target = $region9
    $region8: #{tpu_custom_call.1} parent=1 // pred_region
      %38 = vsyncadd [#allocation9], 0
      %s39 = sshll.u32 %s1, 4
      %s40 = int_to_ptr.hbm [resolvable:$true] %s39
      %s41 = sshll.u32 [#allocation8], 4
      %s42 = int_to_ptr.vmem [resolvable:$true] %s41
      %47 = dma.hbm_to_vmem [thread:$0]  %s40, 256, %s42, [#allocation9], 128, 128, 8
    $region9: #{tpu_custom_call.1} parent=1 // pred_fallthru
      _
    // Predicated region
    $region10: #{tpu_custom_call.1} parent=1 // pred_check
      _
    $region11: #{tpu_custom_call.1} parent=1 // pred_check_branch
      %49 = sbr.rel (0) target = $region13
    $region12: #{tpu_custom_call.1} parent=1 // pred_region
      %51 = vsyncadd [#allocation9], 0
      %s52 = sshll.u32 %s2, 4
      %s53 = int_to_ptr.hbm [resolvable:$true] %s52
      %s54 = sshll.u32 [#allocation10], 4
      %s55 = int_to_ptr.vmem [resolvable:$true] %s54
      %60 = dma.hbm_to_vmem [thread:$0]  %s53, 256, %s55, [#allocation9], 128, 128, 8
    $region13: #{tpu_custom_call.1} parent=1 // pred_fallthru
      _
    // Predicated region
    $region14: #{tpu_custom_call.1} parent=1 // pred_check
      _
    $region15: #{tpu_custom_call.1} parent=1 // pred_check_branch
      %62 = sbr.rel (0) target = $region17
    $region16: #{tpu_custom_call.1} parent=1 // pred_region
      %64 = vsyncadd [#allocation12], 0
      %s65 = sshll.u32 %s3, 4
      %s66 = int_to_ptr.hbm [resolvable:$true] %s65
      %s67 = sshll.u32 [#allocation11], 4
      %s68 = int_to_ptr.vmem [resolvable:$true] %s67
      %73 = dma.hbm_to_vmem [thread:$0]  %s66, 4096, %s68, [#allocation12], 256, 256, 16
    $region17: #{tpu_custom_call.1} parent=1 // pred_fallthru
      _
    // Predicated region
    $region18: #{tpu_custom_call.1} parent=1 // pred_check
      _
    $region19: #{tpu_custom_call.1} parent=1 // pred_check_branch
      %75 = sbr.rel (0) target = $region21
    $region20: #{tpu_custom_call.1} parent=1 // pred_region
      %77 = vsyncadd [#allocation12], 0
      %s79 = sshll.u32 %s4, 4
      %s80 = int_to_ptr.hbm [resolvable:$true] %s79
      %s81 = sshll.u32 [#allocation13], 4
      %s82 = int_to_ptr.vmem [resolvable:$true] %s81
      %84 = dma.hbm_to_vmem [thread:$0]  %s80, 64, %s82, [#allocation12]
    $region21: #{tpu_custom_call.1} parent=1 // pred_fallthru
      _
    // Predicated region
    $region22: #{tpu_custom_call.1} parent=1 // pred_check
      _
    $region23: #{tpu_custom_call.1} parent=1 // pred_check_branch
      %86 = sbr.rel (0) target = $region25
    $region24: #{tpu_custom_call.1} parent=1 // pred_region
      %88 = vsyncadd [#allocation15], 0
      %s89 = sshll.u32 %s5, 4
      %s90 = int_to_ptr.hbm [resolvable:$true] %s89
      %s91 = sshll.u32 [#allocation14], 4
      %s92 = int_to_ptr.vmem [resolvable:$true] %s91
      %97 = dma.hbm_to_vmem [thread:$0]  %s90, 4096, %s92, [#allocation15], 256, 256, 16
    $region25: #{tpu_custom_call.1} parent=1 // pred_fallthru
      _
    // Predicated region
    $region26: #{tpu_custom_call.1} parent=1 // pred_check
      _
    $region27: #{tpu_custom_call.1} parent=1 // pred_check_branch
      %99 = sbr.rel (0) target = $region29
    $region28: #{tpu_custom_call.1} parent=1 // pred_region
      %101 = vsyncadd [#allocation15], 0
      %s102 = sshll.u32 %s6, 4
      %s103 = int_to_ptr.hbm [resolvable:$true] %s102
      %s104 = sshll.u32 [#allocation16], 4
      %s105 = int_to_ptr.vmem [resolvable:$true] %s104
      %110 = dma.hbm_to_vmem [thread:$0]  %s103, 1024, %s105, [#allocation15], 64, 64, 4
    $region29: #{tpu_custom_call.1} parent=1 // pred_fallthru
      _
    // Predicated region
    $region30: #{tpu_custom_call.1} parent=1 // pred_check
      _
    $region31: #{tpu_custom_call.1} parent=1 // pred_check_branch
      %112 = sbr.rel (0) target = $region33
    $region32: #{tpu_custom_call.1} parent=1 // pred_region
      _
    $region33: #{tpu_custom_call.1} parent=1 // pred_fallthru
      _
    // Predicated region
    $region34: #{tpu_custom_call.1} parent=1 // pred_check
      _
    $region35: #{tpu_custom_call.1} parent=1 // pred_check_branch
      %114 = sbr.rel (0) target = $region37
    $region36: #{tpu_custom_call.1} parent=1 // pred_region
      %116 = dma.done [#allocation6], 1024
    $region37: #{tpu_custom_call.1} parent=1 // pred_fallthru
      _
    // Predicated region
    $region38: #{tpu_custom_call.1} parent=1 // pred_check
      _
    $region39: #{tpu_custom_call.1} parent=1 // pred_check_branch
      %118 = sbr.rel (0) target = $region41
    $region40: #{tpu_custom_call.1} parent=1 // pred_region
      %120 = dma.done [#allocation9], 256
    $region41: #{tpu_custom_call.1} parent=1 // pred_fallthru
      _
    // Predicated region
    $region42: #{tpu_custom_call.1} parent=1 // pred_check
      _
    $region43: #{tpu_custom_call.1} parent=1 // pred_check_branch
      %122 = sbr.rel (0) target = $region45
    $region44: #{tpu_custom_call.1} parent=1 // pred_region
      %124 = dma.done [#allocation9], 256
    $region45: #{tpu_custom_call.1} parent=1 // pred_fallthru
      _
    // Predicated region
    $region46: #{tpu_custom_call.1} parent=1 // pred_check
      _
    $region47: #{tpu_custom_call.1} parent=1 // pred_check_branch
      %126 = sbr.rel (0) target = $region49
    $region48: #{tpu_custom_call.1} parent=1 // pred_region
      %128 = dma.done [#allocation12], 4096
    $region49: #{tpu_custom_call.1} parent=1 // pred_fallthru
      _
    // Predicated region
    $region50: #{tpu_custom_call.1} parent=1 // pred_check
      _
    $region51: #{tpu_custom_call.1} parent=1 // pred_check_branch
      %130 = sbr.rel (0) target = $region53
    $region52: #{tpu_custom_call.1} parent=1 // pred_region
      %132 = dma.done [#allocation12], 64
    $region53: #{tpu_custom_call.1} parent=1 // pred_fallthru
      _
    // Predicated region
    $region54: #{tpu_custom_call.1} parent=1 // pred_check
      _
    $region55: #{tpu_custom_call.1} parent=1 // pred_check_branch
      %134 = sbr.rel (0) target = $region57
    $region56: #{tpu_custom_call.1} parent=1 // pred_region
      %136 = dma.done [#allocation15], 4096
    $region57: #{tpu_custom_call.1} parent=1 // pred_fallthru
      _
    // Predicated region
    $region58: #{tpu_custom_call.1} parent=1 // pred_check
      _
    $region59: #{tpu_custom_call.1} parent=1 // pred_check_branch
      %138 = sbr.rel (0) target = $region61
    $region60: #{tpu_custom_call.1} parent=1 // pred_region
      %140 = dma.done [#allocation15], 1024
    $region61: #{tpu_custom_call.1} parent=1 // pred_fallthru
      _
    %p141 = scmp.eq.s32.totalorder 0, 0
    // Predicated region
    $region62: #{tpu_custom_call.1} parent=1 // pred_check
      %p142 = pneg %p141
    $region63: #{tpu_custom_call.1} parent=1 // pred_check_branch
      %144 = sbr.rel (%p142) target = $region65
    $region64: #{tpu_custom_call.1} parent=1 // pred_region
      %v145 = vld [vmem:[#allocation8] sm:$0xff]
      %v146 = vld [vmem:[#allocation8 + $0x8] sm:$0xff]
      %147 = vst [vmem:[#allocation2] sm:$0xff] %v145
      %148 = vst [vmem:[#allocation2 + $0x8] sm:$0xff] %v146
      %v149 = vld [vmem:[#allocation10] sm:$0xff]
      %v150 = vld [vmem:[#allocation10 + $0x8] sm:$0xff]
      %151 = vst [vmem:[#allocation3] sm:$0xff] %v149
      %152 = vst [vmem:[#allocation3 + $0x8] sm:$0xff] %v150
    $region65: #{tpu_custom_call.1} parent=1 // pred_fallthru
      _
    %v153 = vld [vmem:[#allocation5] sm:$0xf]
    %v154 = vld [vmem:[#allocation5 + $0x4] sm:$0xf]
    %v155 = vld [vmem:[#allocation5 + $0x8] sm:$0xf]
    %v156 = vld [vmem:[#allocation5 + $0xc] sm:$0xf]
    %v157 = vld [vmem:[#allocation5 + $0x10] sm:$0xf]
    %v158 = vld [vmem:[#allocation5 + $0x14] sm:$0xf]
    %v159 = vld [vmem:[#allocation5 + $0x18] sm:$0xf]
    %v160 = vld [vmem:[#allocation5 + $0x1c] sm:$0xf]
    %v161 = vld [vmem:[#allocation5 + $0x20] sm:$0xf]
    %v162 = vld [vmem:[#allocation5 + $0x24] sm:$0xf]
    %v163 = vld [vmem:[#allocation5 + $0x28] sm:$0xf]
    %v164 = vld [vmem:[#allocation5 + $0x2c] sm:$0xf]
    %v165 = vld [vmem:[#allocation5 + $0x30] sm:$0xf]
    %v166 = vld [vmem:[#allocation5 + $0x34] sm:$0xf]
    %v167 = vld [vmem:[#allocation5 + $0x38] sm:$0xf]
    %v168 = vld [vmem:[#allocation5 + $0x3c] sm:$0xf]
    %v169 = vld [vmem:[#allocation11] sm:$0xff]
    %v170 = vld [vmem:[#allocation11 + $0x8] sm:$0xff]
    %v171 = vld [vmem:[#allocation11 + $0x10] sm:$0xff]
    %v172 = vld [vmem:[#allocation11 + $0x18] sm:$0xff]
    %v173 = vld [vmem:[#allocation11 + $0x20] sm:$0xff]
    %v174 = vld [vmem:[#allocation11 + $0x28] sm:$0xff]
    %v175 = vld [vmem:[#allocation11 + $0x30] sm:$0xff]
    %v176 = vld [vmem:[#allocation11 + $0x38] sm:$0xff]
    %v177 = vld [vmem:[#allocation11 + $0x40] sm:$0xff]
    %v178 = vld [vmem:[#allocation11 + $0x48] sm:$0xff]
    %v179 = vld [vmem:[#allocation11 + $0x50] sm:$0xff]
    %v180 = vld [vmem:[#allocation11 + $0x58] sm:$0xff]
    %v181 = vld [vmem:[#allocation11 + $0x60] sm:$0xff]
    %v182 = vld [vmem:[#allocation11 + $0x68] sm:$0xff]
    %v183 = vld [vmem:[#allocation11 + $0x70] sm:$0xff]
    %v184 = vld [vmem:[#allocation11 + $0x78] sm:$0xff]
    %v185 = vld [vmem:[#allocation11 + $0x80] sm:$0xff]
    %v186 = vld [vmem:[#allocation11 + $0x88] sm:$0xff]
    %v187 = vld [vmem:[#allocation11 + $0x90] sm:$0xff]
    %v188 = vld [vmem:[#allocation11 + $0x98] sm:$0xff]
    %v189 = vld [vmem:[#allocation11 + $0xa0] sm:$0xff]
    %v190 = vld [vmem:[#allocation11 + $0xa8] sm:$0xff]
    %v191 = vld [vmem:[#allocation11 + $0xb0] sm:$0xff]
    %v192 = vld [vmem:[#allocation11 + $0xb8] sm:$0xff]
    %v193 = vld [vmem:[#allocation11 + $0xc0] sm:$0xff]
    %v194 = vld [vmem:[#allocation11 + $0xc8] sm:$0xff]
    %v195 = vld [vmem:[#allocation11 + $0xd0] sm:$0xff]
    %v196 = vld [vmem:[#allocation11 + $0xd8] sm:$0xff]
    %v197 = vld [vmem:[#allocation11 + $0xe0] sm:$0xff]
    %v198 = vld [vmem:[#allocation11 + $0xe8] sm:$0xff]
    %v199 = vld [vmem:[#allocation11 + $0xf0] sm:$0xff]
    %v200 = vld [vmem:[#allocation11 + $0xf8] sm:$0xff]
    %v201 = vld [vmem:[#allocation13] sm:$0xf]
    %v203 = vperm.slane %v201, 0
    %v204 = vperm.slane %v201, 1
    %v205 = vperm.slane %v201, 2
    %v206 = vperm.slane %v201, 3
    %v227 = vunpack.c.l.b16 %v153
    %v228 = vunpack.c.l.b16 %v154
    %v229 = vunpack.c.l.b16 %v155
    %v230 = vunpack.c.l.b16 %v156
    %v231 = vunpack.c.l.b16 %v157
    %v232 = vunpack.c.l.b16 %v158
    %v233 = vunpack.c.l.b16 %v159
    %v234 = vunpack.c.l.b16 %v160
    %v235 = vunpack.c.l.b16 %v161
    %v236 = vunpack.c.l.b16 %v162
    %v237 = vunpack.c.l.b16 %v163
    %v238 = vunpack.c.l.b16 %v164
    %v239 = vunpack.c.l.b16 %v165
    %v240 = vunpack.c.l.b16 %v166
    %v241 = vunpack.c.l.b16 %v167
    %v242 = vunpack.c.l.b16 %v168
    %v243 = vpack.c.b16 %v228, %v227
    %v244 = vpack.c.b16 %v230, %v229
    %v245 = vpack.c.b16 %v232, %v231
    %v246 = vpack.c.b16 %v234, %v233
    %v247 = vpack.c.b16 %v236, %v235
    %v248 = vpack.c.b16 %v238, %v237
    %v249 = vpack.c.b16 %v240, %v239
    %v250 = vpack.c.b16 %v242, %v241
    %v291 = vunpack.c.l.b16 %v169
    %v292 = vunpack.c.h.b16 %v169
    %v293 = vunpack.c.l.b16 %v170
    %v294 = vunpack.c.h.b16 %v170
    %v295 = vunpack.c.l.b16 %v171
    %v296 = vunpack.c.h.b16 %v171
    %v297 = vunpack.c.l.b16 %v172
    %v298 = vunpack.c.h.b16 %v172
    %v299 = vunpack.c.l.b16 %v173
    %v300 = vunpack.c.h.b16 %v173
    %v301 = vunpack.c.l.b16 %v174
    %v302 = vunpack.c.h.b16 %v174
    %v303 = vunpack.c.l.b16 %v175
    %v304 = vunpack.c.h.b16 %v175
    %v305 = vunpack.c.l.b16 %v176
    %v306 = vunpack.c.h.b16 %v176
    %v307 = vunpack.c.l.b16 %v177
    %v308 = vunpack.c.h.b16 %v177
    %v309 = vunpack.c.l.b16 %v178
    %v310 = vunpack.c.h.b16 %v178
    %v311 = vunpack.c.l.b16 %v179
    %v312 = vunpack.c.h.b16 %v179
    %v313 = vunpack.c.l.b16 %v180
    %v314 = vunpack.c.h.b16 %v180
    %v315 = vunpack.c.l.b16 %v181
    %v316 = vunpack.c.h.b16 %v181
    %v317 = vunpack.c.l.b16 %v182
    %v318 = vunpack.c.h.b16 %v182
    %v319 = vunpack.c.l.b16 %v183
    %v320 = vunpack.c.h.b16 %v183
    %v321 = vunpack.c.l.b16 %v184
    %v322 = vunpack.c.h.b16 %v184
    %v323 = vunpack.c.l.b16 %v185
    %v324 = vunpack.c.h.b16 %v185
    %v325 = vunpack.c.l.b16 %v186
    %v326 = vunpack.c.h.b16 %v186
    %v327 = vunpack.c.l.b16 %v187
    %v328 = vunpack.c.h.b16 %v187
    %v329 = vunpack.c.l.b16 %v188
    %v330 = vunpack.c.h.b16 %v188
    %v331 = vunpack.c.l.b16 %v189
    %v332 = vunpack.c.h.b16 %v189
    %v333 = vunpack.c.l.b16 %v190
    %v334 = vunpack.c.h.b16 %v190
    %v335 = vunpack.c.l.b16 %v191
    %v336 = vunpack.c.h.b16 %v191
    %v337 = vunpack.c.l.b16 %v192
    %v338 = vunpack.c.h.b16 %v192
    %v339 = vunpack.c.l.b16 %v193
    %v340 = vunpack.c.h.b16 %v193
    %v341 = vunpack.c.l.b16 %v194
    %v342 = vunpack.c.h.b16 %v194
    %v343 = vunpack.c.l.b16 %v195
    %v344 = vunpack.c.h.b16 %v195
    %v345 = vunpack.c.l.b16 %v196
    %v346 = vunpack.c.h.b16 %v196
    %v347 = vunpack.c.l.b16 %v197
    %v348 = vunpack.c.h.b16 %v197
    %v349 = vunpack.c.l.b16 %v198
    %v350 = vunpack.c.h.b16 %v198
    %v351 = vunpack.c.l.b16 %v199
    %v352 = vunpack.c.h.b16 %v199
    %v353 = vunpack.c.l.b16 %v200
    %v354 = vunpack.c.h.b16 %v200
    %v355 = vpack.c.b16 %v295, %v291
    %v356 = vpack.c.b16 %v296, %v292
    %v357 = vpack.c.b16 %v297, %v293
    %v358 = vpack.c.b16 %v298, %v294
    %v359 = vpack.c.b16 %v303, %v299
    %v360 = vpack.c.b16 %v304, %v300
    %v361 = vpack.c.b16 %v305, %v301
    %v362 = vpack.c.b16 %v306, %v302
    %v363 = vpack.c.b16 %v311, %v307
    %v364 = vpack.c.b16 %v312, %v308
    %v365 = vpack.c.b16 %v313, %v309
    %v366 = vpack.c.b16 %v314, %v310
    %v367 = vpack.c.b16 %v319, %v315
    %v368 = vpack.c.b16 %v320, %v316
    %v369 = vpack.c.b16 %v321, %v317
    %v370 = vpack.c.b16 %v322, %v318
    %v371 = vpack.c.b16 %v327, %v323
    %v372 = vpack.c.b16 %v328, %v324
    %v373 = vpack.c.b16 %v329, %v325
    %v374 = vpack.c.b16 %v330, %v326
    %v375 = vpack.c.b16 %v335, %v331
    %v376 = vpack.c.b16 %v336, %v332
    %v377 = vpack.c.b16 %v337, %v333
    %v378 = vpack.c.b16 %v338, %v334
    %v379 = vpack.c.b16 %v343, %v339
    %v380 = vpack.c.b16 %v344, %v340
    %v381 = vpack.c.b16 %v345, %v341
    %v382 = vpack.c.b16 %v346, %v342
    %v383 = vpack.c.b16 %v351, %v347
    %v384 = vpack.c.b16 %v352, %v348
    %v385 = vpack.c.b16 %v353, %v349
    %v386 = vpack.c.b16 %v354, %v350
    %419 = vmatpush.bf16.msra.mxu0 %v383
    %420 = vmatpush.bf16.msra.mxu0 %v379
    %421 = vmatpush.bf16.msra.mxu0 %v375
    %422 = vmatpush.bf16.msra.mxu0 %v371
    %423 = vmatpush.bf16.msra.mxu0 %v367
    %424 = vmatpush.bf16.msra.mxu0 %v363
    %425 = vmatpush.bf16.msra.mxu0 %v359
    %426 = vmatpush.bf16.msra.mxu0 %v355
    %427 = vmatmul.bf16.gmra.mxu0 %v243
    %v428 = vpop.f32.mrf.mxu0
    %v429 = vadd.f32 %v203, %v428
    %v430 = vpop.f32.mrf.mxu0
    %v431 = vadd.f32 %v203, %v430
    %432 = vmatmul.bf16.gmra.mxu0 %v244
    %v433 = vpop.f32.mrf.mxu0
    %v434 = vadd.f32 %v203, %v433
    %v435 = vpop.f32.mrf.mxu0
    %v436 = vadd.f32 %v203, %v435
    %437 = vmatmul.bf16.gmra.mxu0 %v245
    %v438 = vpop.f32.mrf.mxu0
    %v439 = vadd.f32 %v203, %v438
    %v440 = vpop.f32.mrf.mxu0
    %v441 = vadd.f32 %v203, %v440
    %442 = vmatmul.bf16.gmra.mxu0 %v246
    %v443 = vpop.f32.mrf.mxu0
    %v444 = vadd.f32 %v203, %v443
    %v445 = vpop.f32.mrf.mxu0
    %v446 = vadd.f32 %v203, %v445
    %447 = vmatmul.bf16.gmra.mxu0 %v247
    %v448 = vpop.f32.mrf.mxu0
    %v449 = vadd.f32 %v203, %v448
    %v450 = vpop.f32.mrf.mxu0
    %v451 = vadd.f32 %v203, %v450
    %452 = vmatmul.bf16.gmra.mxu0 %v248
    %v453 = vpop.f32.mrf.mxu0
    %v454 = vadd.f32 %v203, %v453
    %v455 = vpop.f32.mrf.mxu0
    %v456 = vadd.f32 %v203, %v455
    %457 = vmatmul.bf16.gmra.mxu0 %v249
    %v458 = vpop.f32.mrf.mxu0
    %v459 = vadd.f32 %v203, %v458
    %v460 = vpop.f32.mrf.mxu0
    %v461 = vadd.f32 %v203, %v460
    %462 = vmatmul.bf16.gmra.mxu0 %v250
    %v463 = vpop.f32.mrf.mxu0
    %v464 = vadd.f32 %v203, %v463
    %v465 = vpop.f32.mrf.mxu0
    %v466 = vadd.f32 %v203, %v465
    %467 = vdwg.mxu0
    %468 = vmatpush.bf16.msra.mxu0 %v384
    %469 = vmatpush.bf16.msra.mxu0 %v380
    %470 = vmatpush.bf16.msra.mxu0 %v376
    %471 = vmatpush.bf16.msra.mxu0 %v372
    %472 = vmatpush.bf16.msra.mxu0 %v368
    %473 = vmatpush.bf16.msra.mxu0 %v364
    %474 = vmatpush.bf16.msra.mxu0 %v360
    %475 = vmatpush.bf16.msra.mxu0 %v356
    %476 = vmatmul.bf16.gmra.mxu0 %v243
    %v477 = vpop.f32.mrf.mxu0
    %v478 = vadd.f32 %v204, %v477
    %v479 = vpop.f32.mrf.mxu0
    %v480 = vadd.f32 %v204, %v479
    %481 = vmatmul.bf16.gmra.mxu0 %v244
    %v482 = vpop.f32.mrf.mxu0
    %v483 = vadd.f32 %v204, %v482
    %v484 = vpop.f32.mrf.mxu0
    %v485 = vadd.f32 %v204, %v484
    %486 = vmatmul.bf16.gmra.mxu0 %v245
    %v487 = vpop.f32.mrf.mxu0
    %v488 = vadd.f32 %v204, %v487
    %v489 = vpop.f32.mrf.mxu0
    %v490 = vadd.f32 %v204, %v489
    %491 = vmatmul.bf16.gmra.mxu0 %v246
    %v492 = vpop.f32.mrf.mxu0
    %v493 = vadd.f32 %v204, %v492
    %v494 = vpop.f32.mrf.mxu0
    %v495 = vadd.f32 %v204, %v494
    %496 = vmatmul.bf16.gmra.mxu0 %v247
    %v497 = vpop.f32.mrf.mxu0
    %v498 = vadd.f32 %v204, %v497
    %v499 = vpop.f32.mrf.mxu0
    %v500 = vadd.f32 %v204, %v499
    %501 = vmatmul.bf16.gmra.mxu0 %v248
    %v502 = vpop.f32.mrf.mxu0
    %v503 = vadd.f32 %v204, %v502
    %v504 = vpop.f32.mrf.mxu0
    %v505 = vadd.f32 %v204, %v504
    %506 = vmatmul.bf16.gmra.mxu0 %v249
    %v507 = vpop.f32.mrf.mxu0
    %v508 = vadd.f32 %v204, %v507
    %v509 = vpop.f32.mrf.mxu0
    %v510 = vadd.f32 %v204, %v509
    %511 = vmatmul.bf16.gmra.mxu0 %v250
    %v512 = vpop.f32.mrf.mxu0
    %v513 = vadd.f32 %v204, %v512
    %v514 = vpop.f32.mrf.mxu0
    %v515 = vadd.f32 %v204, %v514
    %516 = vdwg.mxu0
    %517 = vmatpush.bf16.msra.mxu0 %v385
    %518 = vmatpush.bf16.msra.mxu0 %v381
    %519 = vmatpush.bf16.msra.mxu0 %v377
    %520 = vmatpush.bf16.msra.mxu0 %v373
    %521 = vmatpush.bf16.msra.mxu0 %v369
    %522 = vmatpush.bf16.msra.mxu0 %v365
    %523 = vmatpush.bf16.msra.mxu0 %v361
    %524 = vmatpush.bf16.msra.mxu0 %v357
    %525 = vmatmul.bf16.gmra.mxu0 %v243
    %v526 = vpop.f32.mrf.mxu0
    %v527 = vadd.f32 %v205, %v526
    %v528 = vpop.f32.mrf.mxu0
    %v529 = vadd.f32 %v205, %v528
    %530 = vmatmul.bf16.gmra.mxu0 %v244
    %v531 = vpop.f32.mrf.mxu0
    %v532 = vadd.f32 %v205, %v531
    %v533 = vpop.f32.mrf.mxu0
    %v534 = vadd.f32 %v205, %v533
    %535 = vmatmul.bf16.gmra.mxu0 %v245
    %v536 = vpop.f32.mrf.mxu0
    %v537 = vadd.f32 %v205, %v536
    %v538 = vpop.f32.mrf.mxu0
    %v539 = vadd.f32 %v205, %v538
    %540 = vmatmul.bf16.gmra.mxu0 %v246
    %v541 = vpop.f32.mrf.mxu0
    %v542 = vadd.f32 %v205, %v541
    %v543 = vpop.f32.mrf.mxu0
    %v544 = vadd.f32 %v205, %v543
    %545 = vmatmul.bf16.gmra.mxu0 %v247
    %v546 = vpop.f32.mrf.mxu0
    %v547 = vadd.f32 %v205, %v546
    %v548 = vpop.f32.mrf.mxu0
    %v549 = vadd.f32 %v205, %v548
    %550 = vmatmul.bf16.gmra.mxu0 %v248
    %v551 = vpop.f32.mrf.mxu0
    %v552 = vadd.f32 %v205, %v551
    %v553 = vpop.f32.mrf.mxu0
    %v554 = vadd.f32 %v205, %v553
    %555 = vmatmul.bf16.gmra.mxu0 %v249
    %v556 = vpop.f32.mrf.mxu0
    %v557 = vadd.f32 %v205, %v556
    %v558 = vpop.f32.mrf.mxu0
    %v559 = vadd.f32 %v205, %v558
    %560 = vmatmul.bf16.gmra.mxu0 %v250
    %v561 = vpop.f32.mrf.mxu0
    %v562 = vadd.f32 %v205, %v561
    %v563 = vpop.f32.mrf.mxu0
    %v564 = vadd.f32 %v205, %v563
    %565 = vdwg.mxu0
    %566 = vmatpush.bf16.msra.mxu0 %v386
    %567 = vmatpush.bf16.msra.mxu0 %v382
    %568 = vmatpush.bf16.msra.mxu0 %v378
    %569 = vmatpush.bf16.msra.mxu0 %v374
    %570 = vmatpush.bf16.msra.mxu0 %v370
    %571 = vmatpush.bf16.msra.mxu0 %v366
    %572 = vmatpush.bf16.msra.mxu0 %v362
    %573 = vmatpush.bf16.msra.mxu0 %v358
    %574 = vmatmul.bf16.gmra.mxu0 %v243
    %v575 = vpop.f32.mrf.mxu0
    %v576 = vadd.f32 %v206, %v575
    %v577 = vpop.f32.mrf.mxu0
    %v578 = vadd.f32 %v206, %v577
    %579 = vmatmul.bf16.gmra.mxu0 %v244
    %v580 = vpop.f32.mrf.mxu0
    %v581 = vadd.f32 %v206, %v580
    %v582 = vpop.f32.mrf.mxu0
    %v583 = vadd.f32 %v206, %v582
    %584 = vmatmul.bf16.gmra.mxu0 %v245
    %v585 = vpop.f32.mrf.mxu0
    %v586 = vadd.f32 %v206, %v585
    %v587 = vpop.f32.mrf.mxu0
    %v588 = vadd.f32 %v206, %v587
    %589 = vmatmul.bf16.gmra.mxu0 %v246
    %v590 = vpop.f32.mrf.mxu0
    %v591 = vadd.f32 %v206, %v590
    %v592 = vpop.f32.mrf.mxu0
    %v593 = vadd.f32 %v206, %v592
    %594 = vmatmul.bf16.gmra.mxu0 %v247
    %v595 = vpop.f32.mrf.mxu0
    %v596 = vadd.f32 %v206, %v595
    %v597 = vpop.f32.mrf.mxu0
    %v598 = vadd.f32 %v206, %v597
    %599 = vmatmul.bf16.gmra.mxu0 %v248
    %v600 = vpop.f32.mrf.mxu0
    %v601 = vadd.f32 %v206, %v600
    %v602 = vpop.f32.mrf.mxu0
    %v603 = vadd.f32 %v206, %v602
    %604 = vmatmul.bf16.gmra.mxu0 %v249
    %v605 = vpop.f32.mrf.mxu0
    %v606 = vadd.f32 %v206, %v605
    %v607 = vpop.f32.mrf.mxu0
    %v608 = vadd.f32 %v206, %v607
    %609 = vmatmul.bf16.gmra.mxu0 %v250
    %v610 = vpop.f32.mrf.mxu0
    %v611 = vadd.f32 %v206, %v610
    %v612 = vpop.f32.mrf.mxu0
    %v613 = vadd.f32 %v206, %v612
    %614 = vdwg.mxu0
    %615 = vst [vmem:[#allocation4] sm:$0xff] %v429
    %616 = vst [vmem:[#allocation4 + $0x8] sm:$0xff] %v478
    %617 = vst [vmem:[#allocation4 + $0x10] sm:$0xff] %v527
    %618 = vst [vmem:[#allocation4 + $0x18] sm:$0xff] %v576
    %619 = vst [vmem:[#allocation4 + $0x20] sm:$0xff] %v431
    %620 = vst [vmem:[#allocation4 + $0x28] sm:$0xff] %v480
    %621 = vst [vmem:[#allocation4 + $0x30] sm:$0xff] %v529
    %622 = vst [vmem:[#allocation4 + $0x38] sm:$0xff] %v578
    %623 = vst [vmem:[#allocation4 + $0x40] sm:$0xff] %v434
    %624 = vst [vmem:[#allocation4 + $0x48] sm:$0xff] %v483
    %625 = vst [vmem:[#allocation4 + $0x50] sm:$0xff] %v532
    %626 = vst [vmem:[#allocation4 + $0x58] sm:$0xff] %v581
    %627 = vst [vmem:[#allocation4 + $0x60] sm:$0xff] %v436
    %628 = vst [vmem:[#allocation4 + $0x68] sm:$0xff] %v485
    %629 = vst [vmem:[#allocation4 + $0x70] sm:$0xff] %v534
    %630 = vst [vmem:[#allocation4 + $0x78] sm:$0xff] %v583
    %631 = vst [vmem:[#allocation4 + $0x80] sm:$0xff] %v439
    %632 = vst [vmem:[#allocation4 + $0x88] sm:$0xff] %v488
    %633 = vst [vmem:[#allocation4 + $0x90] sm:$0xff] %v537
    %634 = vst [vmem:[#allocation4 + $0x98] sm:$0xff] %v586
    %635 = vst [vmem:[#allocation4 + $0xa0] sm:$0xff] %v441
    %636 = vst [vmem:[#allocation4 + $0xa8] sm:$0xff] %v490
    %637 = vst [vmem:[#allocation4 + $0xb0] sm:$0xff] %v539
    %638 = vst [vmem:[#allocation4 + $0xb8] sm:$0xff] %v588
    %639 = vst [vmem:[#allocation4 + $0xc0] sm:$0xff] %v444
    %640 = vst [vmem:[#allocation4 + $0xc8] sm:$0xff] %v493
    %641 = vst [vmem:[#allocation4 + $0xd0] sm:$0xff] %v542
    %642 = vst [vmem:[#allocation4 + $0xd8] sm:$0xff] %v591
    %643 = vst [vmem:[#allocation4 + $0xe0] sm:$0xff] %v446
    %644 = vst [vmem:[#allocation4 + $0xe8] sm:$0xff] %v495
    %645 = vst [vmem:[#allocation4 + $0xf0] sm:$0xff] %v544
    %646 = vst [vmem:[#allocation4 + $0xf8] sm:$0xff] %v593
    %647 = vst [vmem:[#allocation4 + $0x100] sm:$0xff] %v449
    %648 = vst [vmem:[#allocation4 + $0x108] sm:$0xff] %v498
    %649 = vst [vmem:[#allocation4 + $0x110] sm:$0xff] %v547
    %650 = vst [vmem:[#allocation4 + $0x118] sm:$0xff] %v596
    %651 = vst [vmem:[#allocation4 + $0x120] sm:$0xff] %v451
    %652 = vst [vmem:[#allocation4 + $0x128] sm:$0xff] %v500
    %653 = vst [vmem:[#allocation4 + $0x130] sm:$0xff] %v549
    %654 = vst [vmem:[#allocation4 + $0x138] sm:$0xff] %v598
    %655 = vst [vmem:[#allocation4 + $0x140] sm:$0xff] %v454
    %656 = vst [vmem:[#allocation4 + $0x148] sm:$0xff] %v503
    %657 = vst [vmem:[#allocation4 + $0x150] sm:$0xff] %v552
    %658 = vst [vmem:[#allocation4 + $0x158] sm:$0xff] %v601
    %659 = vst [vmem:[#allocation4 + $0x160] sm:$0xff] %v456
    %660 = vst [vmem:[#allocation4 + $0x168] sm:$0xff] %v505
    %661 = vst [vmem:[#allocation4 + $0x170] sm:$0xff] %v554
    %662 = vst [vmem:[#allocation4 + $0x178] sm:$0xff] %v603
    %663 = vst [vmem:[#allocation4 + $0x180] sm:$0xff] %v459
    %664 = vst [vmem:[#allocation4 + $0x188] sm:$0xff] %v508
    %665 = vst [vmem:[#allocation4 + $0x190] sm:$0xff] %v557
    %666 = vst [vmem:[#allocation4 + $0x198] sm:$0xff] %v606
    %667 = vst [vmem:[#allocation4 + $0x1a0] sm:$0xff] %v461
    %668 = vst [vmem:[#allocation4 + $0x1a8] sm:$0xff] %v510
    %669 = vst [vmem:[#allocation4 + $0x1b0] sm:$0xff] %v559
    %670 = vst [vmem:[#allocation4 + $0x1b8] sm:$0xff] %v608
    %671 = vst [vmem:[#allocation4 + $0x1c0] sm:$0xff] %v464
    %672 = vst [vmem:[#allocation4 + $0x1c8] sm:$0xff] %v513
    %673 = vst [vmem:[#allocation4 + $0x1d0] sm:$0xff] %v562
    %674 = vst [vmem:[#allocation4 + $0x1d8] sm:$0xff] %v611
    %675 = vst [vmem:[#allocation4 + $0x1e0] sm:$0xff] %v466
    %676 = vst [vmem:[#allocation4 + $0x1e8] sm:$0xff] %v515
    %677 = vst [vmem:[#allocation4 + $0x1f0] sm:$0xff] %v564
    %678 = vst [vmem:[#allocation4 + $0x1f8] sm:$0xff] %v613
    %v679 = vld [vmem:[#allocation14] sm:$0xff]
    %v680 = vld [vmem:[#allocation14 + $0x8] sm:$0xff]
    %v681 = vld [vmem:[#allocation14 + $0x10] sm:$0xff]
    %v682 = vld [vmem:[#allocation14 + $0x18] sm:$0xff]
    %v683 = vld [vmem:[#allocation14 + $0x20] sm:$0xff]
    %v684 = vld [vmem:[#allocation14 + $0x28] sm:$0xff]
    %v685 = vld [vmem:[#allocation14 + $0x30] sm:$0xff]
    %v686 = vld [vmem:[#allocation14 + $0x38] sm:$0xff]
    %v687 = vld [vmem:[#allocation14 + $0x40] sm:$0xff]
    %v688 = vld [vmem:[#allocation14 + $0x48] sm:$0xff]
    %v689 = vld [vmem:[#allocation14 + $0x50] sm:$0xff]
    %v690 = vld [vmem:[#allocation14 + $0x58] sm:$0xff]
    %v691 = vld [vmem:[#allocation14 + $0x60] sm:$0xff]
    %v692 = vld [vmem:[#allocation14 + $0x68] sm:$0xff]
    %v693 = vld [vmem:[#allocation14 + $0x70] sm:$0xff]
    %v694 = vld [vmem:[#allocation14 + $0x78] sm:$0xff]
    %v695 = vld [vmem:[#allocation14 + $0x80] sm:$0xff]
    %v696 = vld [vmem:[#allocation14 + $0x88] sm:$0xff]
    %v697 = vld [vmem:[#allocation14 + $0x90] sm:$0xff]
    %v698 = vld [vmem:[#allocation14 + $0x98] sm:$0xff]
    %v699 = vld [vmem:[#allocation14 + $0xa0] sm:$0xff]
    %v700 = vld [vmem:[#allocation14 + $0xa8] sm:$0xff]
    %v701 = vld [vmem:[#allocation14 + $0xb0] sm:$0xff]
    %v702 = vld [vmem:[#allocation14 + $0xb8] sm:$0xff]
    %v703 = vld [vmem:[#allocation14 + $0xc0] sm:$0xff]
    %v704 = vld [vmem:[#allocation14 + $0xc8] sm:$0xff]
    %v705 = vld [vmem:[#allocation14 + $0xd0] sm:$0xff]
    %v706 = vld [vmem:[#allocation14 + $0xd8] sm:$0xff]
    %v707 = vld [vmem:[#allocation14 + $0xe0] sm:$0xff]
    %v708 = vld [vmem:[#allocation14 + $0xe8] sm:$0xff]
    %v709 = vld [vmem:[#allocation14 + $0xf0] sm:$0xff]
    %v710 = vld [vmem:[#allocation14 + $0xf8] sm:$0xff]
    %v711 = vld [vmem:[#allocation2] sm:$0xff]
    %v712 = vld [vmem:[#allocation2 + $0x8] sm:$0xff]
    %v713 = vld [vmem:[#allocation3] sm:$0xff]
    %v714 = vld [vmem:[#allocation3 + $0x8] sm:$0xff]
    %v715 = vld [vmem:[#allocation4] sm:$0xff]
    %v716 = vld [vmem:[#allocation4 + $0x8] sm:$0xff]
    %v717 = vld [vmem:[#allocation4 + $0x10] sm:$0xff]
    %v718 = vld [vmem:[#allocation4 + $0x18] sm:$0xff]
    %v719 = vld [vmem:[#allocation4 + $0x20] sm:$0xff]
    %v720 = vld [vmem:[#allocation4 + $0x28] sm:$0xff]
    %v721 = vld [vmem:[#allocation4 + $0x30] sm:$0xff]
    %v722 = vld [vmem:[#allocation4 + $0x38] sm:$0xff]
    %v723 = vpack.c.bf16 %v712, %v711
    %v756 = vunpack.c.l.b16 %v679
    %v757 = vunpack.c.h.b16 %v679
    %v758 = vunpack.c.l.b16 %v680
    %v759 = vunpack.c.h.b16 %v680
    %v760 = vunpack.c.l.b16 %v681
    %v761 = vunpack.c.h.b16 %v681
    %v762 = vunpack.c.l.b16 %v682
    %v763 = vunpack.c.h.b16 %v682
    %v764 = vunpack.c.l.b16 %v683
    %v765 = vunpack.c.h.b16 %v683
    %v766 = vunpack.c.l.b16 %v684
    %v767 = vunpack.c.h.b16 %v684
    %v768 = vunpack.c.l.b16 %v685
    %v769 = vunpack.c.h.b16 %v685
    %v770 = vunpack.c.l.b16 %v686
    %v771 = vunpack.c.h.b16 %v686
    %v772 = vunpack.c.l.b16 %v687
    %v773 = vunpack.c.h.b16 %v687
    %v774 = vunpack.c.l.b16 %v688
    %v775 = vunpack.c.h.b16 %v688
    %v776 = vunpack.c.l.b16 %v689
    %v777 = vunpack.c.h.b16 %v689
    %v778 = vunpack.c.l.b16 %v690
    %v779 = vunpack.c.h.b16 %v690
    %v780 = vunpack.c.l.b16 %v691
    %v781 = vunpack.c.h.b16 %v691
    %v782 = vunpack.c.l.b16 %v692
    %v783 = vunpack.c.h.b16 %v692
    %v784 = vunpack.c.l.b16 %v693
    %v785 = vunpack.c.h.b16 %v693
    %v786 = vunpack.c.l.b16 %v694
    %v787 = vunpack.c.h.b16 %v694
    %v788 = vunpack.c.l.b16 %v695
    %v789 = vunpack.c.h.b16 %v695
    %v790 = vunpack.c.l.b16 %v696
    %v791 = vunpack.c.h.b16 %v696
    %v792 = vunpack.c.l.b16 %v697
    %v793 = vunpack.c.h.b16 %v697
    %v794 = vunpack.c.l.b16 %v698
    %v795 = vunpack.c.h.b16 %v698
    %v796 = vunpack.c.l.b16 %v699
    %v797 = vunpack.c.h.b16 %v699
    %v798 = vunpack.c.l.b16 %v700
    %v799 = vunpack.c.h.b16 %v700
    %v800 = vunpack.c.l.b16 %v701
    %v801 = vunpack.c.h.b16 %v701
    %v802 = vunpack.c.l.b16 %v702
    %v803 = vunpack.c.h.b16 %v702
    %v804 = vunpack.c.l.b16 %v703
    %v805 = vunpack.c.h.b16 %v703
    %v806 = vunpack.c.l.b16 %v704
    %v807 = vunpack.c.h.b16 %v704
    %v808 = vunpack.c.l.b16 %v705
    %v809 = vunpack.c.h.b16 %v705
    %v810 = vunpack.c.l.b16 %v706
    %v811 = vunpack.c.h.b16 %v706
    %v812 = vunpack.c.l.b16 %v707
    %v813 = vunpack.c.h.b16 %v707
    %v814 = vunpack.c.l.b16 %v708
    %v815 = vunpack.c.h.b16 %v708
    %v816 = vunpack.c.l.b16 %v709
    %v817 = vunpack.c.h.b16 %v709
    %v818 = vunpack.c.l.b16 %v710
    %v819 = vunpack.c.h.b16 %v710
    %v820 = vpack.c.b16 %v760, %v756
    %v821 = vpack.c.b16 %v761, %v757
    %v822 = vpack.c.b16 %v762, %v758
    %v823 = vpack.c.b16 %v763, %v759
    %v824 = vpack.c.b16 %v768, %v764
    %v825 = vpack.c.b16 %v769, %v765
    %v826 = vpack.c.b16 %v770, %v766
    %v827 = vpack.c.b16 %v771, %v767
    %v828 = vpack.c.b16 %v776, %v772
    %v829 = vpack.c.b16 %v777, %v773
    %v830 = vpack.c.b16 %v778, %v774
    %v831 = vpack.c.b16 %v779, %v775
    %v832 = vpack.c.b16 %v784, %v780
    %v833 = vpack.c.b16 %v785, %v781
    %v834 = vpack.c.b16 %v786, %v782
    %v835 = vpack.c.b16 %v787, %v783
    %v836 = vpack.c.b16 %v792, %v788
    %v837 = vpack.c.b16 %v793, %v789
    %v838 = vpack.c.b16 %v794, %v790
    %v839 = vpack.c.b16 %v795, %v791
    %v840 = vpack.c.b16 %v800, %v796
    %v841 = vpack.c.b16 %v801, %v797
    %v842 = vpack.c.b16 %v802, %v798
    %v843 = vpack.c.b16 %v803, %v799
    %v844 = vpack.c.b16 %v808, %v804
    %v845 = vpack.c.b16 %v809, %v805
    %v846 = vpack.c.b16 %v810, %v806
    %v847 = vpack.c.b16 %v811, %v807
    %v848 = vpack.c.b16 %v816, %v812
    %v849 = vpack.c.b16 %v817, %v813
    %v850 = vpack.c.b16 %v818, %v814
    %v851 = vpack.c.b16 %v819, %v815
    %884 = vmatpush.bf16.msra.mxu0 %v848
    %885 = vmatpush.bf16.msra.mxu0 %v844
    %886 = vmatpush.bf16.msra.mxu0 %v840
    %887 = vmatpush.bf16.msra.mxu0 %v836
    %888 = vmatpush.bf16.msra.mxu0 %v832
    %889 = vmatpush.bf16.msra.mxu0 %v828
    %890 = vmatpush.bf16.msra.mxu0 %v824
    %891 = vmatpush.bf16.msra.mxu0 %v820
    %892 = vmatmul.bf16.gmra.mxu0 %v723
    %v893 = vpop.f32.mrf.mxu0
    %v894 = vadd.f32 0.0, %v893
    %v895 = vpop.f32.mrf.mxu0
    %v896 = vadd.f32 0.0, %v895
    %897 = vdwg.mxu0
    %898 = vmatpush.bf16.msra.mxu0 %v849
    %899 = vmatpush.bf16.msra.mxu0 %v845
    %900 = vmatpush.bf16.msra.mxu0 %v841
    %901 = vmatpush.bf16.msra.mxu0 %v837
    %902 = vmatpush.bf16.msra.mxu0 %v833
    %903 = vmatpush.bf16.msra.mxu0 %v829
    %904 = vmatpush.bf16.msra.mxu0 %v825
    %905 = vmatpush.bf16.msra.mxu0 %v821
    %906 = vmatmul.bf16.gmra.mxu0 %v723
    %v907 = vpop.f32.mrf.mxu0
    %v908 = vadd.f32 0.0, %v907
    %v909 = vpop.f32.mrf.mxu0
    %v910 = vadd.f32 0.0, %v909
    %911 = vdwg.mxu0
    %912 = vmatpush.bf16.msra.mxu0 %v850
    %913 = vmatpush.bf16.msra.mxu0 %v846
    %914 = vmatpush.bf16.msra.mxu0 %v842
    %915 = vmatpush.bf16.msra.mxu0 %v838
    %916 = vmatpush.bf16.msra.mxu0 %v834
    %917 = vmatpush.bf16.msra.mxu0 %v830
    %918 = vmatpush.bf16.msra.mxu0 %v826
    %919 = vmatpush.bf16.msra.mxu0 %v822
    %920 = vmatmul.bf16.gmra.mxu0 %v723
    %v921 = vpop.f32.mrf.mxu0
    %v922 = vadd.f32 0.0, %v921
    %v923 = vpop.f32.mrf.mxu0
    %v924 = vadd.f32 0.0, %v923
    %925 = vdwg.mxu0
    %926 = vmatpush.bf16.msra.mxu0 %v851
    %927 = vmatpush.bf16.msra.mxu0 %v847
    %928 = vmatpush.bf16.msra.mxu0 %v843
    %929 = vmatpush.bf16.msra.mxu0 %v839
    %930 = vmatpush.bf16.msra.mxu0 %v835
    %931 = vmatpush.bf16.msra.mxu0 %v831
    %932 = vmatpush.bf16.msra.mxu0 %v827
    %933 = vmatpush.bf16.msra.mxu0 %v823
    %934 = vmatmul.bf16.gmra.mxu0 %v723
    %v935 = vpop.f32.mrf.mxu0
    %v936 = vadd.f32 0.0, %v935
    %v937 = vpop.f32.mrf.mxu0
    %v938 = vadd.f32 0.0, %v937
    %939 = vdwg.mxu0
    %v940 = vadd.f32 %v715, %v894
    %v941 = vadd.f32 %v716, %v908
    %v942 = vadd.f32 %v717, %v922
    %v943 = vadd.f32 %v718, %v936
    %v944 = vadd.f32 %v719, %v896
    %v945 = vadd.f32 %v720, %v910
    %v946 = vadd.f32 %v721, %v924
    %v947 = vadd.f32 %v722, %v938
    %v948 = vxor.u32 %v940, 2147483648
    %v949 = vxor.u32 %v944, 2147483648
    %v950 = vmul.f32 %v948, 1.442695
    %v951 = vpow.pop %v950
    %v952 = vmul.f32 %v949, 1.442695
    %v953 = vpow.pop %v952
    %v954 = vadd.f32 %v951, 1.0
    %v955 = vadd.f32 %v953, 1.0
    %v956 = vrcp.pop %v954
    %v957 = vmul.f32 %v954, %v956
    %v958 = vsub.f32 1.0, %v957
    %v959 = vmul.f32 %v956, %v958
    %v960 = vadd.f32 %v956, %v959
    %vm961 = vweird.f32 %v954
    %vm962 = vweird.f32 %v956
    %vm963 = vmor %vm961, %vm962
    %v964 = vsel %vm963, %v956, %v960
    %v965 = vand.u32 2147483647, %v954
    %vm966 = vcmp.eq.f32.partialorder %v965, 8.507059e+37
    %v967 = vand.u32 %v954, 2147483648
    %v968 = vor.u32 1.1754944e-38, %v967
    %v969 = vsel %vm966, %v968, %v964
    %v970 = vmul.f32 1.0, %v969
    %v971 = vrcp.pop %v955
    %v972 = vmul.f32 %v955, %v971
    %v973 = vsub.f32 1.0, %v972
    %v974 = vmul.f32 %v971, %v973
    %v975 = vadd.f32 %v971, %v974
    %vm976 = vweird.f32 %v955
    %vm977 = vweird.f32 %v971
    %vm978 = vmor %vm976, %vm977
    %v979 = vsel %vm978, %v971, %v975
    %v980 = vand.u32 2147483647, %v955
    %vm981 = vcmp.eq.f32.partialorder %v980, 8.507059e+37
    %v982 = vand.u32 %v955, 2147483648
    %v983 = vor.u32 1.1754944e-38, %v982
    %v984 = vsel %vm981, %v983, %v979
    %v985 = vmul.f32 1.0, %v984
    %v986 = vxor.u32 %v941, 2147483648
    %v987 = vxor.u32 %v945, 2147483648
    %v988 = vmul.f32 %v986, 1.442695
    %v989 = vpow.pop %v988
    %v990 = vmul.f32 %v987, 1.442695
    %v991 = vpow.pop %v990
    %v992 = vadd.f32 %v989, 1.0
    %v993 = vadd.f32 %v991, 1.0
    %v994 = vrcp.pop %v992
    %v995 = vmul.f32 %v992, %v994
    %v996 = vsub.f32 1.0, %v995
    %v997 = vmul.f32 %v994, %v996
    %v998 = vadd.f32 %v994, %v997
    %vm999 = vweird.f32 %v992
    %vm1000 = vweird.f32 %v994
    %vm1001 = vmor %vm999, %vm1000
    %v1002 = vsel %vm1001, %v994, %v998
    %v1003 = vand.u32 2147483647, %v992
    %vm1004 = vcmp.eq.f32.partialorder %v1003, 8.507059e+37
    %v1005 = vand.u32 %v992, 2147483648
    %v1006 = vor.u32 1.1754944e-38, %v1005
    %v1007 = vsel %vm1004, %v1006, %v1002
    %v1008 = vmul.f32 1.0, %v1007
    %v1009 = vrcp.pop %v993
    %v1010 = vmul.f32 %v993, %v1009
    %v1011 = vsub.f32 1.0, %v1010
    %v1012 = vmul.f32 %v1009, %v1011
    %v1013 = vadd.f32 %v1009, %v1012
    %vm1014 = vweird.f32 %v993
    %vm1015 = vweird.f32 %v1009
    %vm1016 = vmor %vm1014, %vm1015
    %v1017 = vsel %vm1016, %v1009, %v1013
    %v1018 = vand.u32 2147483647, %v993
    %vm1019 = vcmp.eq.f32.partialorder %v1018, 8.507059e+37
    %v1020 = vand.u32 %v993, 2147483648
    %v1021 = vor.u32 1.1754944e-38, %v1020
    %v1022 = vsel %vm1019, %v1021, %v1017
    %v1023 = vmul.f32 1.0, %v1022
    %v1024 = vtanh.pop %v942
    %v1025 = vtanh.pop %v946
    %v1026 = vxor.u32 %v943, 2147483648
    %v1027 = vxor.u32 %v947, 2147483648
    %v1028 = vmul.f32 %v1026, 1.442695
    %v1029 = vpow.pop %v1028
    %v1030 = vmul.f32 %v1027, 1.442695
    %v1031 = vpow.pop %v1030
    %v1032 = vadd.f32 %v1029, 1.0
    %v1033 = vadd.f32 %v1031, 1.0
    %v1034 = vrcp.pop %v1032
    %v1035 = vmul.f32 %v1032, %v1034
    %v1036 = vsub.f32 1.0, %v1035
    %v1037 = vmul.f32 %v1034, %v1036
    %v1038 = vadd.f32 %v1034, %v1037
    %vm1039 = vweird.f32 %v1032
    %vm1040 = vweird.f32 %v1034
    %vm1041 = vmor %vm1039, %vm1040
    %v1042 = vsel %vm1041, %v1034, %v1038
    %v1043 = vand.u32 2147483647, %v1032
    %vm1044 = vcmp.eq.f32.partialorder %v1043, 8.507059e+37
    %v1045 = vand.u32 %v1032, 2147483648
    %v1046 = vor.u32 1.1754944e-38, %v1045
    %v1047 = vsel %vm1044, %v1046, %v1042
    %v1048 = vmul.f32 1.0, %v1047
    %v1049 = vrcp.pop %v1033
    %v1050 = vmul.f32 %v1033, %v1049
    %v1051 = vsub.f32 1.0, %v1050
    %v1052 = vmul.f32 %v1049, %v1051
    %v1053 = vadd.f32 %v1049, %v1052
    %vm1054 = vweird.f32 %v1033
    %vm1055 = vweird.f32 %v1049
    %vm1056 = vmor %vm1054, %vm1055
    %v1057 = vsel %vm1056, %v1049, %v1053
    %v1058 = vand.u32 2147483647, %v1033
    %vm1059 = vcmp.eq.f32.partialorder %v1058, 8.507059e+37
    %v1060 = vand.u32 %v1033, 2147483648
    %v1061 = vor.u32 1.1754944e-38, %v1060
    %v1062 = vsel %vm1059, %v1061, %v1057
    %v1063 = vmul.f32 1.0, %v1062
    %v1064 = vmul.f32 %v1008, %v713
    %v1065 = vmul.f32 %v1023, %v714
    %v1066 = vmul.f32 %v970, %v1024
    %v1067 = vmul.f32 %v985, %v1025
    %v1068 = vadd.f32 %v1064, %v1066
    %v1069 = vadd.f32 %v1065, %v1067
    %v1070 = vtanh.pop %v1068
    %v1071 = vtanh.pop %v1069
    %v1072 = vmul.f32 %v1048, %v1070
    %v1073 = vmul.f32 %v1063, %v1071
    %s1074 = scalar_lea.vmem [#allocation4], 64
    %v1075 = vld [vmem:[%s1074] sm:$0xff]
    %v1076 = vld [vmem:[%s1074 + $0x8] sm:$0xff]
    %v1077 = vld [vmem:[%s1074 + $0x10] sm:$0xff]
    %v1078 = vld [vmem:[%s1074 + $0x18] sm:$0xff]
    %v1079 = vld [vmem:[%s1074 + $0x20] sm:$0xff]
    %v1080 = vld [vmem:[%s1074 + $0x28] sm:$0xff]
    %v1081 = vld [vmem:[%s1074 + $0x30] sm:$0xff]
    %v1082 = vld [vmem:[%s1074 + $0x38] sm:$0xff]
    %v1083 = vpack.c.bf16 %v1073, %v1072
    %1084 = vmatpush.bf16.msra.mxu0 %v848
    %1085 = vmatpush.bf16.msra.mxu0 %v844
    %1086 = vmatpush.bf16.msra.mxu0 %v840
    %1087 = vmatpush.bf16.msra.mxu0 %v836
    %1088 = vmatpush.bf16.msra.mxu0 %v832
    %1089 = vmatpush.bf16.msra.mxu0 %v828
    %1090 = vmatpush.bf16.msra.mxu0 %v824
    %1091 = vmatpush.bf16.msra.mxu0 %v820
    %1092 = vmatmul.bf16.gmra.mxu0 %v1083
    %v1093 = vpop.f32.mrf.mxu0
    %v1094 = vadd.f32 0.0, %v1093
    %v1095 = vpop.f32.mrf.mxu0
    %v1096 = vadd.f32 0.0, %v1095
    %1097 = vdwg.mxu0
    %1098 = vmatpush.bf16.msra.mxu0 %v849
    %1099 = vmatpush.bf16.msra.mxu0 %v845
    %1100 = vmatpush.bf16.msra.mxu0 %v841
    %1101 = vmatpush.bf16.msra.mxu0 %v837
    %1102 = vmatpush.bf16.msra.mxu0 %v833
    %1103 = vmatpush.bf16.msra.mxu0 %v829
    %1104 = vmatpush.bf16.msra.mxu0 %v825
    %1105 = vmatpush.bf16.msra.mxu0 %v821
    %1106 = vmatmul.bf16.gmra.mxu0 %v1083
    %v1107 = vpop.f32.mrf.mxu0
    %v1108 = vadd.f32 0.0, %v1107
    %v1109 = vpop.f32.mrf.mxu0
    %v1110 = vadd.f32 0.0, %v1109
    %1111 = vdwg.mxu0
    %1112 = vmatpush.bf16.msra.mxu0 %v850
    %1113 = vmatpush.bf16.msra.mxu0 %v846
    %1114 = vmatpush.bf16.msra.mxu0 %v842
    %1115 = vmatpush.bf16.msra.mxu0 %v838
    %1116 = vmatpush.bf16.msra.mxu0 %v834
    %1117 = vmatpush.bf16.msra.mxu0 %v830
    %1118 = vmatpush.bf16.msra.mxu0 %v826
    %1119 = vmatpush.bf16.msra.mxu0 %v822
    %1120 = vmatmul.bf16.gmra.mxu0 %v1083
    %v1121 = vpop.f32.mrf.mxu0
    %v1122 = vadd.f32 0.0, %v1121
    %v1123 = vpop.f32.mrf.mxu0
    %v1124 = vadd.f32 0.0, %v1123
    %1125 = vdwg.mxu0
    %1126 = vmatpush.bf16.msra.mxu0 %v851
    %1127 = vmatpush.bf16.msra.mxu0 %v847
    %1128 = vmatpush.bf16.msra.mxu0 %v843
    %1129 = vmatpush.bf16.msra.mxu0 %v839
    %1130 = vmatpush.bf16.msra.mxu0 %v835
    %1131 = vmatpush.bf16.msra.mxu0 %v831
    %1132 = vmatpush.bf16.msra.mxu0 %v827
    %1133 = vmatpush.bf16.msra.mxu0 %v823
    %1134 = vmatmul.bf16.gmra.mxu0 %v1083
    %v1135 = vpop.f32.mrf.mxu0
    %v1136 = vadd.f32 0.0, %v1135
    %v1137 = vpop.f32.mrf.mxu0
    %v1138 = vadd.f32 0.0, %v1137
    %1139 = vdwg.mxu0
    %v1140 = vadd.f32 %v1075, %v1094
    %v1141 = vadd.f32 %v1076, %v1108
    %v1142 = vadd.f32 %v1077, %v1122
    %v1143 = vadd.f32 %v1078, %v1136
    %v1144 = vadd.f32 %v1079, %v1096
    %v1145 = vadd.f32 %v1080, %v1110
    %v1146 = vadd.f32 %v1081, %v1124
    %v1147 = vadd.f32 %v1082, %v1138
    %v1148 = vxor.u32 %v1140, 2147483648
    %v1149 = vxor.u32 %v1144, 2147483648
    %v1150 = vmul.f32 %v1148, 1.442695
    %v1151 = vpow.pop %v1150
    %v1152 = vmul.f32 %v1149, 1.442695
    %v1153 = vpow.pop %v1152
    %v1154 = vadd.f32 %v1151, 1.0
    %v1155 = vadd.f32 %v1153, 1.0
    %v1156 = vrcp.pop %v1154
    %v1157 = vmul.f32 %v1154, %v1156
    %v1158 = vsub.f32 1.0, %v1157
    %v1159 = vmul.f32 %v1156, %v1158
    %v1160 = vadd.f32 %v1156, %v1159
    %vm1161 = vweird.f32 %v1154
    %vm1162 = vweird.f32 %v1156
    %vm1163 = vmor %vm1161, %vm1162
    %v1164 = vsel %vm1163, %v1156, %v1160
    %v1165 = vand.u32 2147483647, %v1154
    %vm1166 = vcmp.eq.f32.partialorder %v1165, 8.507059e+37
    %v1167 = vand.u32 %v1154, 2147483648
    %v1168 = vor.u32 1.1754944e-38, %v1167
    %v1169 = vsel %vm1166, %v1168, %v1164
    %v1170 = vmul.f32 1.0, %v1169
    %v1171 = vrcp.pop %v1155
    %v1172 = vmul.f32 %v1155, %v1171
    %v1173 = vsub.f32 1.0, %v1172
    %v1174 = vmul.f32 %v1171, %v1173
    %v1175 = vadd.f32 %v1171, %v1174
    %vm1176 = vweird.f32 %v1155
    %vm1177 = vweird.f32 %v1171
    %vm1178 = vmor %vm1176, %vm1177
    %v1179 = vsel %vm1178, %v1171, %v1175
    %v1180 = vand.u32 2147483647, %v1155
    %vm1181 = vcmp.eq.f32.partialorder %v1180, 8.507059e+37
    %v1182 = vand.u32 %v1155, 2147483648
    %v1183 = vor.u32 1.1754944e-38, %v1182
    %v1184 = vsel %vm1181, %v1183, %v1179
    %v1185 = vmul.f32 1.0, %v1184
    %v1186 = vxor.u32 %v1141, 2147483648
    %v1187 = vxor.u32 %v1145, 2147483648
    %v1188 = vmul.f32 %v1186, 1.442695
    %v1189 = vpow.pop %v1188
    %v1190 = vmul.f32 %v1187, 1.442695
    %v1191 = vpow.pop %v1190
    %v1192 = vadd.f32 %v1189, 1.0
    %v1193 = vadd.f32 %v1191, 1.0
    %v1194 = vrcp.pop %v1192
    %v1195 = vmul.f32 %v1192, %v1194
    %v1196 = vsub.f32 1.0, %v1195
    %v1197 = vmul.f32 %v1194, %v1196
    %v1198 = vadd.f32 %v1194, %v1197
    %vm1199 = vweird.f32 %v1192
    %vm1200 = vweird.f32 %v1194
    %vm1201 = vmor %vm1199, %vm1200
    %v1202 = vsel %vm1201, %v1194, %v1198
    %v1203 = vand.u32 2147483647, %v1192
    %vm1204 = vcmp.eq.f32.partialorder %v1203, 8.507059e+37
    %v1205 = vand.u32 %v1192, 2147483648
    %v1206 = vor.u32 1.1754944e-38, %v1205
    %v1207 = vsel %vm1204, %v1206, %v1202
    %v1208 = vmul.f32 1.0, %v1207
    %v1209 = vrcp.pop %v1193
    %v1210 = vmul.f32 %v1193, %v1209
    %v1211 = vsub.f32 1.0, %v1210
    %v1212 = vmul.f32 %v1209, %v1211
    %v1213 = vadd.f32 %v1209, %v1212
    %vm1214 = vweird.f32 %v1193
    %vm1215 = vweird.f32 %v1209
    %vm1216 = vmor %vm1214, %vm1215
    %v1217 = vsel %vm1216, %v1209, %v1213
    %v1218 = vand.u32 2147483647, %v1193
    %vm1219 = vcmp.eq.f32.partialorder %v1218, 8.507059e+37
    %v1220 = vand.u32 %v1193, 2147483648
    %v1221 = vor.u32 1.1754944e-38, %v1220
    %v1222 = vsel %vm1219, %v1221, %v1217
    %v1223 = vmul.f32 1.0, %v1222
    %v1224 = vtanh.pop %v1142
    %v1225 = vtanh.pop %v1146
    %v1226 = vxor.u32 %v1143, 2147483648
    %v1227 = vxor.u32 %v1147, 2147483648
    %v1228 = vmul.f32 %v1226, 1.442695
    %v1229 = vpow.pop %v1228
    %v1230 = vmul.f32 %v1227, 1.442695
    %v1231 = vpow.pop %v1230
    %v1232 = vadd.f32 %v1229, 1.0
    %v1233 = vadd.f32 %v1231, 1.0
    %v1234 = vrcp.pop %v1232
    %v1235 = vmul.f32 %v1232, %v1234
    %v1236 = vsub.f32 1.0, %v1235
    %v1237 = vmul.f32 %v1234, %v1236
    %v1238 = vadd.f32 %v1234, %v1237
    %vm1239 = vweird.f32 %v1232
    %vm1240 = vweird.f32 %v1234
    %vm1241 = vmor %vm1239, %vm1240
    %v1242 = vsel %vm1241, %v1234, %v1238
    %v1243 = vand.u32 2147483647, %v1232
    %vm1244 = vcmp.eq.f32.partialorder %v1243, 8.507059e+37
    %v1245 = vand.u32 %v1232, 2147483648
    %v1246 = vor.u32 1.1754944e-38, %v1245
    %v1247 = vsel %vm1244, %v1246, %v1242
    %v1248 = vmul.f32 1.0, %v1247
    %v1249 = vrcp.pop %v1233
    %v1250 = vmul.f32 %v1233, %v1249
    %v1251 = vsub.f32 1.0, %v1250
    %v1252 = vmul.f32 %v1249, %v1251
    %v1253 = vadd.f32 %v1249, %v1252
    %vm1254 = vweird.f32 %v1233
    %vm1255 = vweird.f32 %v1249
    %vm1256 = vmor %vm1254, %vm1255
    %v1257 = vsel %vm1256, %v1249, %v1253
    %v1258 = vand.u32 2147483647, %v1233
    %vm1259 = vcmp.eq.f32.partialorder %v1258, 8.507059e+37
    %v1260 = vand.u32 %v1233, 2147483648
    %v1261 = vor.u32 1.1754944e-38, %v1260
    %v1262 = vsel %vm1259, %v1261, %v1257
    %v1263 = vmul.f32 1.0, %v1262
    %v1264 = vmul.f32 %v1208, %v1068
    %v1265 = vmul.f32 %v1223, %v1069
    %v1266 = vmul.f32 %v1170, %v1224
    %v1267 = vmul.f32 %v1185, %v1225
    %v1268 = vadd.f32 %v1264, %v1266
    %v1269 = vadd.f32 %v1265, %v1267
    %v1270 = vtanh.pop %v1268
    %v1271 = vtanh.pop %v1269
    %v1272 = vmul.f32 %v1248, %v1270
    %v1273 = vmul.f32 %v1263, %v1271
    %s1274 = scalar_lea.vmem [#allocation4], 128
    %v1275 = vld [vmem:[%s1274] sm:$0xff]
    %v1276 = vld [vmem:[%s1274 + $0x8] sm:$0xff]
    %v1277 = vld [vmem:[%s1274 + $0x10] sm:$0xff]
    %v1278 = vld [vmem:[%s1274 + $0x18] sm:$0xff]
    %v1279 = vld [vmem:[%s1274 + $0x20] sm:$0xff]
    %v1280 = vld [vmem:[%s1274 + $0x28] sm:$0xff]
    %v1281 = vld [vmem:[%s1274 + $0x30] sm:$0xff]
    %v1282 = vld [vmem:[%s1274 + $0x38] sm:$0xff]
    %v1283 = vpack.c.bf16 %v1273, %v1272
    %1284 = vmatpush.bf16.msra.mxu0 %v848
    %1285 = vmatpush.bf16.msra.mxu0 %v844
    %1286 = vmatpush.bf16.msra.mxu0 %v840
    %1287 = vmatpush.bf16.msra.mxu0 %v836
    %1288 = vmatpush.bf16.msra.mxu0 %v832
    %1289 = vmatpush.bf16.msra.mxu0 %v828
    %1290 = vmatpush.bf16.msra.mxu0 %v824
    %1291 = vmatpush.bf16.msra.mxu0 %v820
    %1292 = vmatmul.bf16.gmra.mxu0 %v1283
    %v1293 = vpop.f32.mrf.mxu0
    %v1294 = vadd.f32 0.0, %v1293
    %v1295 = vpop.f32.mrf.mxu0
    %v1296 = vadd.f32 0.0, %v1295
    %1297 = vdwg.mxu0
    %1298 = vmatpush.bf16.msra.mxu0 %v849
    %1299 = vmatpush.bf16.msra.mxu0 %v845
    %1300 = vmatpush.bf16.msra.mxu0 %v841
    %1301 = vmatpush.bf16.msra.mxu0 %v837
    %1302 = vmatpush.bf16.msra.mxu0 %v833
    %1303 = vmatpush.bf16.msra.mxu0 %v829
    %1304 = vmatpush.bf16.msra.mxu0 %v825
    %1305 = vmatpush.bf16.msra.mxu0 %v821
    %1306 = vmatmul.bf16.gmra.mxu0 %v1283
    %v1307 = vpop.f32.mrf.mxu0
    %v1308 = vadd.f32 0.0, %v1307
    %v1309 = vpop.f32.mrf.mxu0
    %v1310 = vadd.f32 0.0, %v1309
    %1311 = vdwg.mxu0
    %1312 = vmatpush.bf16.msra.mxu0 %v850
    %1313 = vmatpush.bf16.msra.mxu0 %v846
    %1314 = vmatpush.bf16.msra.mxu0 %v842
    %1315 = vmatpush.bf16.msra.mxu0 %v838
    %1316 = vmatpush.bf16.msra.mxu0 %v834
    %1317 = vmatpush.bf16.msra.mxu0 %v830
    %1318 = vmatpush.bf16.msra.mxu0 %v826
    %1319 = vmatpush.bf16.msra.mxu0 %v822
    %1320 = vmatmul.bf16.gmra.mxu0 %v1283
    %v1321 = vpop.f32.mrf.mxu0
    %v1322 = vadd.f32 0.0, %v1321
    %v1323 = vpop.f32.mrf.mxu0
    %v1324 = vadd.f32 0.0, %v1323
    %1325 = vdwg.mxu0
    %1326 = vmatpush.bf16.msra.mxu0 %v851
    %1327 = vmatpush.bf16.msra.mxu0 %v847
    %1328 = vmatpush.bf16.msra.mxu0 %v843
    %1329 = vmatpush.bf16.msra.mxu0 %v839
    %1330 = vmatpush.bf16.msra.mxu0 %v835
    %1331 = vmatpush.bf16.msra.mxu0 %v831
    %1332 = vmatpush.bf16.msra.mxu0 %v827
    %1333 = vmatpush.bf16.msra.mxu0 %v823
    %1334 = vmatmul.bf16.gmra.mxu0 %v1283
    %v1335 = vpop.f32.mrf.mxu0
    %v1336 = vadd.f32 0.0, %v1335
    %v1337 = vpop.f32.mrf.mxu0
    %v1338 = vadd.f32 0.0, %v1337
    %1339 = vdwg.mxu0
    %v1340 = vadd.f32 %v1275, %v1294
    %v1341 = vadd.f32 %v1276, %v1308
    %v1342 = vadd.f32 %v1277, %v1322
    %v1343 = vadd.f32 %v1278, %v1336
    %v1344 = vadd.f32 %v1279, %v1296
    %v1345 = vadd.f32 %v1280, %v1310
    %v1346 = vadd.f32 %v1281, %v1324
    %v1347 = vadd.f32 %v1282, %v1338
    %v1348 = vxor.u32 %v1340, 2147483648
    %v1349 = vxor.u32 %v1344, 2147483648
    %v1350 = vmul.f32 %v1348, 1.442695
    %v1351 = vpow.pop %v1350
    %v1352 = vmul.f32 %v1349, 1.442695
    %v1353 = vpow.pop %v1352
    %v1354 = vadd.f32 %v1351, 1.0
    %v1355 = vadd.f32 %v1353, 1.0
    %v1356 = vrcp.pop %v1354
    %v1357 = vmul.f32 %v1354, %v1356
    %v1358 = vsub.f32 1.0, %v1357
    %v1359 = vmul.f32 %v1356, %v1358
    %v1360 = vadd.f32 %v1356, %v1359
    %vm1361 = vweird.f32 %v1354
    %vm1362 = vweird.f32 %v1356
    %vm1363 = vmor %vm1361, %vm1362
    %v1364 = vsel %vm1363, %v1356, %v1360
    %v1365 = vand.u32 2147483647, %v1354
    %vm1366 = vcmp.eq.f32.partialorder %v1365, 8.507059e+37
    %v1367 = vand.u32 %v1354, 2147483648
    %v1368 = vor.u32 1.1754944e-38, %v1367
    %v1369 = vsel %vm1366, %v1368, %v1364
    %v1370 = vmul.f32 1.0, %v1369
    %v1371 = vrcp.pop %v1355
    %v1372 = vmul.f32 %v1355, %v1371
    %v1373 = vsub.f32 1.0, %v1372
    %v1374 = vmul.f32 %v1371, %v1373
    %v1375 = vadd.f32 %v1371, %v1374
    %vm1376 = vweird.f32 %v1355
    %vm1377 = vweird.f32 %v1371
    %vm1378 = vmor %vm1376, %vm1377
    %v1379 = vsel %vm1378, %v1371, %v1375
    %v1380 = vand.u32 2147483647, %v1355
    %vm1381 = vcmp.eq.f32.partialorder %v1380, 8.507059e+37
    %v1382 = vand.u32 %v1355, 2147483648
    %v1383 = vor.u32 1.1754944e-38, %v1382
    %v1384 = vsel %vm1381, %v1383, %v1379
    %v1385 = vmul.f32 1.0, %v1384
    %v1386 = vxor.u32 %v1341, 2147483648
    %v1387 = vxor.u32 %v1345, 2147483648
    %v1388 = vmul.f32 %v1386, 1.442695
    %v1389 = vpow.pop %v1388
    %v1390 = vmul.f32 %v1387, 1.442695
    %v1391 = vpow.pop %v1390
    %v1392 = vadd.f32 %v1389, 1.0
    %v1393 = vadd.f32 %v1391, 1.0
    %v1394 = vrcp.pop %v1392
    %v1395 = vmul.f32 %v1392, %v1394
    %v1396 = vsub.f32 1.0, %v1395
    %v1397 = vmul.f32 %v1394, %v1396
    %v1398 = vadd.f32 %v1394, %v1397
    %vm1399 = vweird.f32 %v1392
    %vm1400 = vweird.f32 %v1394
    %vm1401 = vmor %vm1399, %vm1400
    %v1402 = vsel %vm1401, %v1394, %v1398
    %v1403 = vand.u32 2147483647, %v1392
    %vm1404 = vcmp.eq.f32.partialorder %v1403, 8.507059e+37
    %v1405 = vand.u32 %v1392, 2147483648
    %v1406 = vor.u32 1.1754944e-38, %v1405
    %v1407 = vsel %vm1404, %v1406, %v1402
    %v1408 = vmul.f32 1.0, %v1407
    %v1409 = vrcp.pop %v1393
    %v1410 = vmul.f32 %v1393, %v1409
    %v1411 = vsub.f32 1.0, %v1410
    %v1412 = vmul.f32 %v1409, %v1411
    %v1413 = vadd.f32 %v1409, %v1412
    %vm1414 = vweird.f32 %v1393
    %vm1415 = vweird.f32 %v1409
    %vm1416 = vmor %vm1414, %vm1415
    %v1417 = vsel %vm1416, %v1409, %v1413
    %v1418 = vand.u32 2147483647, %v1393
    %vm1419 = vcmp.eq.f32.partialorder %v1418, 8.507059e+37
    %v1420 = vand.u32 %v1393, 2147483648
    %v1421 = vor.u32 1.1754944e-38, %v1420
    %v1422 = vsel %vm1419, %v1421, %v1417
    %v1423 = vmul.f32 1.0, %v1422
    %v1424 = vtanh.pop %v1342
    %v1425 = vtanh.pop %v1346
    %v1426 = vxor.u32 %v1343, 2147483648
    %v1427 = vxor.u32 %v1347, 2147483648
    %v1428 = vmul.f32 %v1426, 1.442695
    %v1429 = vpow.pop %v1428
    %v1430 = vmul.f32 %v1427, 1.442695
    %v1431 = vpow.pop %v1430
    %v1432 = vadd.f32 %v1429, 1.0
    %v1433 = vadd.f32 %v1431, 1.0
    %v1434 = vrcp.pop %v1432
    %v1435 = vmul.f32 %v1432, %v1434
    %v1436 = vsub.f32 1.0, %v1435
    %v1437 = vmul.f32 %v1434, %v1436
    %v1438 = vadd.f32 %v1434, %v1437
    %vm1439 = vweird.f32 %v1432
    %vm1440 = vweird.f32 %v1434
    %vm1441 = vmor %vm1439, %vm1440
    %v1442 = vsel %vm1441, %v1434, %v1438
    %v1443 = vand.u32 2147483647, %v1432
    %vm1444 = vcmp.eq.f32.partialorder %v1443, 8.507059e+37
    %v1445 = vand.u32 %v1432, 2147483648
    %v1446 = vor.u32 1.1754944e-38, %v1445
    %v1447 = vsel %vm1444, %v1446, %v1442
    %v1448 = vmul.f32 1.0, %v1447
    %v1449 = vrcp.pop %v1433
    %v1450 = vmul.f32 %v1433, %v1449
    %v1451 = vsub.f32 1.0, %v1450
    %v1452 = vmul.f32 %v1449, %v1451
    %v1453 = vadd.f32 %v1449, %v1452
    %vm1454 = vweird.f32 %v1433
    %vm1455 = vweird.f32 %v1449
    %vm1456 = vmor %vm1454, %vm1455
    %v1457 = vsel %vm1456, %v1449, %v1453
    %v1458 = vand.u32 2147483647, %v1433
    %vm1459 = vcmp.eq.f32.partialorder %v1458, 8.507059e+37
    %v1460 = vand.u32 %v1433, 2147483648
    %v1461 = vor.u32 1.1754944e-38, %v1460
    %v1462 = vsel %vm1459, %v1461, %v1457
    %v1463 = vmul.f32 1.0, %v1462
    %v1464 = vmul.f32 %v1408, %v1268
    %v1465 = vmul.f32 %v1423, %v1269
    %v1466 = vmul.f32 %v1370, %v1424
    %v1467 = vmul.f32 %v1385, %v1425
    %v1468 = vadd.f32 %v1464, %v1466
    %v1469 = vadd.f32 %v1465, %v1467
    %v1470 = vtanh.pop %v1468
    %v1471 = vtanh.pop %v1469
    %v1472 = vmul.f32 %v1448, %v1470
    %v1473 = vmul.f32 %v1463, %v1471
    %s1474 = scalar_lea.vmem [#allocation4], 192
    %v1475 = vld [vmem:[%s1474] sm:$0xff]
    %v1476 = vld [vmem:[%s1474 + $0x8] sm:$0xff]
    %v1477 = vld [vmem:[%s1474 + $0x10] sm:$0xff]
    %v1478 = vld [vmem:[%s1474 + $0x18] sm:$0xff]
    %v1479 = vld [vmem:[%s1474 + $0x20] sm:$0xff]
    %v1480 = vld [vmem:[%s1474 + $0x28] sm:$0xff]
    %v1481 = vld [vmem:[%s1474 + $0x30] sm:$0xff]
    %v1482 = vld [vmem:[%s1474 + $0x38] sm:$0xff]
    %v1483 = vpack.c.bf16 %v1473, %v1472
    %1484 = vmatpush.bf16.msra.mxu0 %v848
    %1485 = vmatpush.bf16.msra.mxu0 %v844
    %1486 = vmatpush.bf16.msra.mxu0 %v840
    %1487 = vmatpush.bf16.msra.mxu0 %v836
    %1488 = vmatpush.bf16.msra.mxu0 %v832
    %1489 = vmatpush.bf16.msra.mxu0 %v828
    %1490 = vmatpush.bf16.msra.mxu0 %v824
    %1491 = vmatpush.bf16.msra.mxu0 %v820
    %1492 = vmatmul.bf16.gmra.mxu0 %v1483
    %v1493 = vpop.f32.mrf.mxu0
    %v1494 = vadd.f32 0.0, %v1493
    %v1495 = vpop.f32.mrf.mxu0
    %v1496 = vadd.f32 0.0, %v1495
    %1497 = vdwg.mxu0
    %1498 = vmatpush.bf16.msra.mxu0 %v849
    %1499 = vmatpush.bf16.msra.mxu0 %v845
    %1500 = vmatpush.bf16.msra.mxu0 %v841
    %1501 = vmatpush.bf16.msra.mxu0 %v837
    %1502 = vmatpush.bf16.msra.mxu0 %v833
    %1503 = vmatpush.bf16.msra.mxu0 %v829
    %1504 = vmatpush.bf16.msra.mxu0 %v825
    %1505 = vmatpush.bf16.msra.mxu0 %v821
    %1506 = vmatmul.bf16.gmra.mxu0 %v1483
    %v1507 = vpop.f32.mrf.mxu0
    %v1508 = vadd.f32 0.0, %v1507
    %v1509 = vpop.f32.mrf.mxu0
    %v1510 = vadd.f32 0.0, %v1509
    %1511 = vdwg.mxu0
    %1512 = vmatpush.bf16.msra.mxu0 %v850
    %1513 = vmatpush.bf16.msra.mxu0 %v846
    %1514 = vmatpush.bf16.msra.mxu0 %v842
    %1515 = vmatpush.bf16.msra.mxu0 %v838
    %1516 = vmatpush.bf16.msra.mxu0 %v834
    %1517 = vmatpush.bf16.msra.mxu0 %v830
    %1518 = vmatpush.bf16.msra.mxu0 %v826
    %1519 = vmatpush.bf16.msra.mxu0 %v822
    %1520 = vmatmul.bf16.gmra.mxu0 %v1483
    %v1521 = vpop.f32.mrf.mxu0
    %v1522 = vadd.f32 0.0, %v1521
    %v1523 = vpop.f32.mrf.mxu0
    %v1524 = vadd.f32 0.0, %v1523
    %1525 = vdwg.mxu0
    %1526 = vmatpush.bf16.msra.mxu0 %v851
    %1527 = vmatpush.bf16.msra.mxu0 %v847
    %1528 = vmatpush.bf16.msra.mxu0 %v843
    %1529 = vmatpush.bf16.msra.mxu0 %v839
    %1530 = vmatpush.bf16.msra.mxu0 %v835
    %1531 = vmatpush.bf16.msra.mxu0 %v831
    %1532 = vmatpush.bf16.msra.mxu0 %v827
    %1533 = vmatpush.bf16.msra.mxu0 %v823
    %1534 = vmatmul.bf16.gmra.mxu0 %v1483
    %v1535 = vpop.f32.mrf.mxu0
    %v1536 = vadd.f32 0.0, %v1535
    %v1537 = vpop.f32.mrf.mxu0
    %v1538 = vadd.f32 0.0, %v1537
    %1539 = vdwg.mxu0
    %v1540 = vadd.f32 %v1475, %v1494
    %v1541 = vadd.f32 %v1476, %v1508
    %v1542 = vadd.f32 %v1477, %v1522
    %v1543 = vadd.f32 %v1478, %v1536
    %v1544 = vadd.f32 %v1479, %v1496
    %v1545 = vadd.f32 %v1480, %v1510
    %v1546 = vadd.f32 %v1481, %v1524
    %v1547 = vadd.f32 %v1482, %v1538
    %v1548 = vxor.u32 %v1540, 2147483648
    %v1549 = vxor.u32 %v1544, 2147483648
    %v1550 = vmul.f32 %v1548, 1.442695
    %v1551 = vpow.pop %v1550
    %v1552 = vmul.f32 %v1549, 1.442695
    %v1553 = vpow.pop %v1552
    %v1554 = vadd.f32 %v1551, 1.0
    %v1555 = vadd.f32 %v1553, 1.0
    %v1556 = vrcp.pop %v1554
    %v1557 = vmul.f32 %v1554, %v1556
    %v1558 = vsub.f32 1.0, %v1557
    %v1559 = vmul.f32 %v1556, %v1558
    %v1560 = vadd.f32 %v1556, %v1559
    %vm1561 = vweird.f32 %v1554
    %vm1562 = vweird.f32 %v1556
    %vm1563 = vmor %vm1561, %vm1562
    %v1564 = vsel %vm1563, %v1556, %v1560
    %v1565 = vand.u32 2147483647, %v1554
    %vm1566 = vcmp.eq.f32.partialorder %v1565, 8.507059e+37
    %v1567 = vand.u32 %v1554, 2147483648
    %v1568 = vor.u32 1.1754944e-38, %v1567
    %v1569 = vsel %vm1566, %v1568, %v1564
    %v1570 = vmul.f32 1.0, %v1569
    %v1571 = vrcp.pop %v1555
    %v1572 = vmul.f32 %v1555, %v1571
    %v1573 = vsub.f32 1.0, %v1572
    %v1574 = vmul.f32 %v1571, %v1573
    %v1575 = vadd.f32 %v1571, %v1574
    %vm1576 = vweird.f32 %v1555
    %vm1577 = vweird.f32 %v1571
    %vm1578 = vmor %vm1576, %vm1577
    %v1579 = vsel %vm1578, %v1571, %v1575
    %v1580 = vand.u32 2147483647, %v1555
    %vm1581 = vcmp.eq.f32.partialorder %v1580, 8.507059e+37
    %v1582 = vand.u32 %v1555, 2147483648
    %v1583 = vor.u32 1.1754944e-38, %v1582
    %v1584 = vsel %vm1581, %v1583, %v1579
    %v1585 = vmul.f32 1.0, %v1584
    %v1586 = vxor.u32 %v1541, 2147483648
    %v1587 = vxor.u32 %v1545, 2147483648
    %v1588 = vmul.f32 %v1586, 1.442695
    %v1589 = vpow.pop %v1588
    %v1590 = vmul.f32 %v1587, 1.442695
    %v1591 = vpow.pop %v1590
    %v1592 = vadd.f32 %v1589, 1.0
    %v1593 = vadd.f32 %v1591, 1.0
    %v1594 = vrcp.pop %v1592
    %v1595 = vmul.f32 %v1592, %v1594
    %v1596 = vsub.f32 1.0, %v1595
    %v1597 = vmul.f32 %v1594, %v1596
    %v1598 = vadd.f32 %v1594, %v1597
    %vm1599 = vweird.f32 %v1592
    %vm1600 = vweird.f32 %v1594
    %vm1601 = vmor %vm1599, %vm1600
    %v1602 = vsel %vm1601, %v1594, %v1598
    %v1603 = vand.u32 2147483647, %v1592
    %vm1604 = vcmp.eq.f32.partialorder %v1603, 8.507059e+37
    %v1605 = vand.u32 %v1592, 2147483648
    %v1606 = vor.u32 1.1754944e-38, %v1605
    %v1607 = vsel %vm1604, %v1606, %v1602
    %v1608 = vmul.f32 1.0, %v1607
    %v1609 = vrcp.pop %v1593
    %v1610 = vmul.f32 %v1593, %v1609
    %v1611 = vsub.f32 1.0, %v1610
    %v1612 = vmul.f32 %v1609, %v1611
    %v1613 = vadd.f32 %v1609, %v1612
    %vm1614 = vweird.f32 %v1593
    %vm1615 = vweird.f32 %v1609
    %vm1616 = vmor %vm1614, %vm1615
    %v1617 = vsel %vm1616, %v1609, %v1613
    %v1618 = vand.u32 2147483647, %v1593
    %vm1619 = vcmp.eq.f32.partialorder %v1618, 8.507059e+37
    %v1620 = vand.u32 %v1593, 2147483648
    %v1621 = vor.u32 1.1754944e-38, %v1620
    %v1622 = vsel %vm1619, %v1621, %v1617
    %v1623 = vmul.f32 1.0, %v1622
    %v1624 = vtanh.pop %v1542
    %v1625 = vtanh.pop %v1546
    %v1626 = vxor.u32 %v1543, 2147483648
    %v1627 = vxor.u32 %v1547, 2147483648
    %v1628 = vmul.f32 %v1626, 1.442695
    %v1629 = vpow.pop %v1628
    %v1630 = vmul.f32 %v1627, 1.442695
    %v1631 = vpow.pop %v1630
    %v1632 = vadd.f32 %v1629, 1.0
    %v1633 = vadd.f32 %v1631, 1.0
    %v1634 = vrcp.pop %v1632
    %v1635 = vmul.f32 %v1632, %v1634
    %v1636 = vsub.f32 1.0, %v1635
    %v1637 = vmul.f32 %v1634, %v1636
    %v1638 = vadd.f32 %v1634, %v1637
    %vm1639 = vweird.f32 %v1632
    %vm1640 = vweird.f32 %v1634
    %vm1641 = vmor %vm1639, %vm1640
    %v1642 = vsel %vm1641, %v1634, %v1638
    %v1643 = vand.u32 2147483647, %v1632
    %vm1644 = vcmp.eq.f32.partialorder %v1643, 8.507059e+37
    %v1645 = vand.u32 %v1632, 2147483648
    %v1646 = vor.u32 1.1754944e-38, %v1645
    %v1647 = vsel %vm1644, %v1646, %v1642
    %v1648 = vmul.f32 1.0, %v1647
    %v1649 = vrcp.pop %v1633
    %v1650 = vmul.f32 %v1633, %v1649
    %v1651 = vsub.f32 1.0, %v1650
    %v1652 = vmul.f32 %v1649, %v1651
    %v1653 = vadd.f32 %v1649, %v1652
    %vm1654 = vweird.f32 %v1633
    %vm1655 = vweird.f32 %v1649
    %vm1656 = vmor %vm1654, %vm1655
    %v1657 = vsel %vm1656, %v1649, %v1653
    %v1658 = vand.u32 2147483647, %v1633
    %vm1659 = vcmp.eq.f32.partialorder %v1658, 8.507059e+37
    %v1660 = vand.u32 %v1633, 2147483648
    %v1661 = vor.u32 1.1754944e-38, %v1660
    %v1662 = vsel %vm1659, %v1661, %v1657
    %v1663 = vmul.f32 1.0, %v1662
    %v1664 = vmul.f32 %v1608, %v1468
    %v1665 = vmul.f32 %v1623, %v1469
    %v1666 = vmul.f32 %v1570, %v1624
    %v1667 = vmul.f32 %v1585, %v1625
    %v1668 = vadd.f32 %v1664, %v1666
    %v1669 = vadd.f32 %v1665, %v1667
    %v1670 = vtanh.pop %v1668
    %v1671 = vtanh.pop %v1669
    %v1672 = vmul.f32 %v1648, %v1670
    %v1673 = vmul.f32 %v1663, %v1671
    %s1674 = scalar_lea.vmem [#allocation4], 256
    %v1675 = vld [vmem:[%s1674] sm:$0xff]
    %v1676 = vld [vmem:[%s1674 + $0x8] sm:$0xff]
    %v1677 = vld [vmem:[%s1674 + $0x10] sm:$0xff]
    %v1678 = vld [vmem:[%s1674 + $0x18] sm:$0xff]
    %v1679 = vld [vmem:[%s1674 + $0x20] sm:$0xff]
    %v1680 = vld [vmem:[%s1674 + $0x28] sm:$0xff]
    %v1681 = vld [vmem:[%s1674 + $0x30] sm:$0xff]
    %v1682 = vld [vmem:[%s1674 + $0x38] sm:$0xff]
    %v1683 = vpack.c.bf16 %v1673, %v1672
    %1684 = vmatpush.bf16.msra.mxu0 %v848
    %1685 = vmatpush.bf16.msra.mxu0 %v844
    %1686 = vmatpush.bf16.msra.mxu0 %v840
    %1687 = vmatpush.bf16.msra.mxu0 %v836
    %1688 = vmatpush.bf16.msra.mxu0 %v832
    %1689 = vmatpush.bf16.msra.mxu0 %v828
    %1690 = vmatpush.bf16.msra.mxu0 %v824
    %1691 = vmatpush.bf16.msra.mxu0 %v820
    %1692 = vmatmul.bf16.gmra.mxu0 %v1683
    %v1693 = vpop.f32.mrf.mxu0
    %v1694 = vadd.f32 0.0, %v1693
    %v1695 = vpop.f32.mrf.mxu0
    %v1696 = vadd.f32 0.0, %v1695
    %1697 = vdwg.mxu0
    %1698 = vmatpush.bf16.msra.mxu0 %v849
    %1699 = vmatpush.bf16.msra.mxu0 %v845
    %1700 = vmatpush.bf16.msra.mxu0 %v841
    %1701 = vmatpush.bf16.msra.mxu0 %v837
    %1702 = vmatpush.bf16.msra.mxu0 %v833
    %1703 = vmatpush.bf16.msra.mxu0 %v829
    %1704 = vmatpush.bf16.msra.mxu0 %v825
    %1705 = vmatpush.bf16.msra.mxu0 %v821
    %1706 = vmatmul.bf16.gmra.mxu0 %v1683
    %v1707 = vpop.f32.mrf.mxu0
    %v1708 = vadd.f32 0.0, %v1707
    %v1709 = vpop.f32.mrf.mxu0
    %v1710 = vadd.f32 0.0, %v1709
    %1711 = vdwg.mxu0
    %1712 = vmatpush.bf16.msra.mxu0 %v850
    %1713 = vmatpush.bf16.msra.mxu0 %v846
    %1714 = vmatpush.bf16.msra.mxu0 %v842
    %1715 = vmatpush.bf16.msra.mxu0 %v838
    %1716 = vmatpush.bf16.msra.mxu0 %v834
    %1717 = vmatpush.bf16.msra.mxu0 %v830
    %1718 = vmatpush.bf16.msra.mxu0 %v826
    %1719 = vmatpush.bf16.msra.mxu0 %v822
    %1720 = vmatmul.bf16.gmra.mxu0 %v1683
    %v1721 = vpop.f32.mrf.mxu0
    %v1722 = vadd.f32 0.0, %v1721
    %v1723 = vpop.f32.mrf.mxu0
    %v1724 = vadd.f32 0.0, %v1723
    %1725 = vdwg.mxu0
    %1726 = vmatpush.bf16.msra.mxu0 %v851
    %1727 = vmatpush.bf16.msra.mxu0 %v847
    %1728 = vmatpush.bf16.msra.mxu0 %v843
    %1729 = vmatpush.bf16.msra.mxu0 %v839
    %1730 = vmatpush.bf16.msra.mxu0 %v835
    %1731 = vmatpush.bf16.msra.mxu0 %v831
    %1732 = vmatpush.bf16.msra.mxu0 %v827
    %1733 = vmatpush.bf16.msra.mxu0 %v823
    %1734 = vmatmul.bf16.gmra.mxu0 %v1683
    %v1735 = vpop.f32.mrf.mxu0
    %v1736 = vadd.f32 0.0, %v1735
    %v1737 = vpop.f32.mrf.mxu0
    %v1738 = vadd.f32 0.0, %v1737
    %1739 = vdwg.mxu0
    %v1740 = vadd.f32 %v1675, %v1694
    %v1741 = vadd.f32 %v1676, %v1708
    %v1742 = vadd.f32 %v1677, %v1722
    %v1743 = vadd.f32 %v1678, %v1736
    %v1744 = vadd.f32 %v1679, %v1696
    %v1745 = vadd.f32 %v1680, %v1710
    %v1746 = vadd.f32 %v1681, %v1724
    %v1747 = vadd.f32 %v1682, %v1738
    %v1748 = vxor.u32 %v1740, 2147483648
    %v1749 = vxor.u32 %v1744, 2147483648
    %v1750 = vmul.f32 %v1748, 1.442695
    %v1751 = vpow.pop %v1750
    %v1752 = vmul.f32 %v1749, 1.442695
    %v1753 = vpow.pop %v1752
    %v1754 = vadd.f32 %v1751, 1.0
    %v1755 = vadd.f32 %v1753, 1.0
    %v1756 = vrcp.pop %v1754
    %v1757 = vmul.f32 %v1754, %v1756
    %v1758 = vsub.f32 1.0, %v1757
    %v1759 = vmul.f32 %v1756, %v1758
    %v1760 = vadd.f32 %v1756, %v1759
    %vm1761 = vweird.f32 %v1754
    %vm1762 = vweird.f32 %v1756
    %vm1763 = vmor %vm1761, %vm1762
    %v1764 = vsel %vm1763, %v1756, %v1760
    %v1765 = vand.u32 2147483647, %v1754
    %vm1766 = vcmp.eq.f32.partialorder %v1765, 8.507059e+37
    %v1767 = vand.u32 %v1754, 2147483648
    %v1768 = vor.u32 1.1754944e-38, %v1767
    %v1769 = vsel %vm1766, %v1768, %v1764
    %v1770 = vmul.f32 1.0, %v1769
    %v1771 = vrcp.pop %v1755
    %v1772 = vmul.f32 %v1755, %v1771
    %v1773 = vsub.f32 1.0, %v1772
    %v1774 = vmul.f32 %v1771, %v1773
    %v1775 = vadd.f32 %v1771, %v1774
    %vm1776 = vweird.f32 %v1755
    %vm1777 = vweird.f32 %v1771
    %vm1778 = vmor %vm1776, %vm1777
    %v1779 = vsel %vm1778, %v1771, %v1775
    %v1780 = vand.u32 2147483647, %v1755
    %vm1781 = vcmp.eq.f32.partialorder %v1780, 8.507059e+37
    %v1782 = vand.u32 %v1755, 2147483648
    %v1783 = vor.u32 1.1754944e-38, %v1782
    %v1784 = vsel %vm1781, %v1783, %v1779
    %v1785 = vmul.f32 1.0, %v1784
    %v1786 = vxor.u32 %v1741, 2147483648
    %v1787 = vxor.u32 %v1745, 2147483648
    %v1788 = vmul.f32 %v1786, 1.442695
    %v1789 = vpow.pop %v1788
    %v1790 = vmul.f32 %v1787, 1.442695
    %v1791 = vpow.pop %v1790
    %v1792 = vadd.f32 %v1789, 1.0
    %v1793 = vadd.f32 %v1791, 1.0
    %v1794 = vrcp.pop %v1792
    %v1795 = vmul.f32 %v1792, %v1794
    %v1796 = vsub.f32 1.0, %v1795
    %v1797 = vmul.f32 %v1794, %v1796
    %v1798 = vadd.f32 %v1794, %v1797
    %vm1799 = vweird.f32 %v1792
    %vm1800 = vweird.f32 %v1794
    %vm1801 = vmor %vm1799, %vm1800
    %v1802 = vsel %vm1801, %v1794, %v1798
    %v1803 = vand.u32 2147483647, %v1792
    %vm1804 = vcmp.eq.f32.partialorder %v1803, 8.507059e+37
    %v1805 = vand.u32 %v1792, 2147483648
    %v1806 = vor.u32 1.1754944e-38, %v1805
    %v1807 = vsel %vm1804, %v1806, %v1802
    %v1808 = vmul.f32 1.0, %v1807
    %v1809 = vrcp.pop %v1793
    %v1810 = vmul.f32 %v1793, %v1809
    %v1811 = vsub.f32 1.0, %v1810
    %v1812 = vmul.f32 %v1809, %v1811
    %v1813 = vadd.f32 %v1809, %v1812
    %vm1814 = vweird.f32 %v1793
    %vm1815 = vweird.f32 %v1809
    %vm1816 = vmor %vm1814, %vm1815
    %v1817 = vsel %vm1816, %v1809, %v1813
    %v1818 = vand.u32 2147483647, %v1793
    %vm1819 = vcmp.eq.f32.partialorder %v1818, 8.507059e+37
    %v1820 = vand.u32 %v1793, 2147483648
    %v1821 = vor.u32 1.1754944e-38, %v1820
    %v1822 = vsel %vm1819, %v1821, %v1817
    %v1823 = vmul.f32 1.0, %v1822
    %v1824 = vtanh.pop %v1742
    %v1825 = vtanh.pop %v1746
    %v1826 = vxor.u32 %v1743, 2147483648
    %v1827 = vxor.u32 %v1747, 2147483648
    %v1828 = vmul.f32 %v1826, 1.442695
    %v1829 = vpow.pop %v1828
    %v1830 = vmul.f32 %v1827, 1.442695
    %v1831 = vpow.pop %v1830
    %v1832 = vadd.f32 %v1829, 1.0
    %v1833 = vadd.f32 %v1831, 1.0
    %v1834 = vrcp.pop %v1832
    %v1835 = vmul.f32 %v1832, %v1834
    %v1836 = vsub.f32 1.0, %v1835
    %v1837 = vmul.f32 %v1834, %v1836
    %v1838 = vadd.f32 %v1834, %v1837
    %vm1839 = vweird.f32 %v1832
    %vm1840 = vweird.f32 %v1834
    %vm1841 = vmor %vm1839, %vm1840
    %v1842 = vsel %vm1841, %v1834, %v1838
    %v1843 = vand.u32 2147483647, %v1832
    %vm1844 = vcmp.eq.f32.partialorder %v1843, 8.507059e+37
    %v1845 = vand.u32 %v1832, 2147483648
    %v1846 = vor.u32 1.1754944e-38, %v1845
    %v1847 = vsel %vm1844, %v1846, %v1842
    %v1848 = vmul.f32 1.0, %v1847
    %v1849 = vrcp.pop %v1833
    %v1850 = vmul.f32 %v1833, %v1849
    %v1851 = vsub.f32 1.0, %v1850
    %v1852 = vmul.f32 %v1849, %v1851
    %v1853 = vadd.f32 %v1849, %v1852
    %vm1854 = vweird.f32 %v1833
    %vm1855 = vweird.f32 %v1849
    %vm1856 = vmor %vm1854, %vm1855
    %v1857 = vsel %vm1856, %v1849, %v1853
    %v1858 = vand.u32 2147483647, %v1833
    %vm1859 = vcmp.eq.f32.partialorder %v1858, 8.507059e+37
    %v1860 = vand.u32 %v1833, 2147483648
    %v1861 = vor.u32 1.1754944e-38, %v1860
    %v1862 = vsel %vm1859, %v1861, %v1857
    %v1863 = vmul.f32 1.0, %v1862
    %v1864 = vmul.f32 %v1808, %v1668
    %v1865 = vmul.f32 %v1823, %v1669
    %v1866 = vmul.f32 %v1770, %v1824
    %v1867 = vmul.f32 %v1785, %v1825
    %v1868 = vadd.f32 %v1864, %v1866
    %v1869 = vadd.f32 %v1865, %v1867
    %v1870 = vtanh.pop %v1868
    %v1871 = vtanh.pop %v1869
    %v1872 = vmul.f32 %v1848, %v1870
    %v1873 = vmul.f32 %v1863, %v1871
    %s1874 = scalar_lea.vmem [#allocation4], 320
    %v1875 = vld [vmem:[%s1874] sm:$0xff]
    %v1876 = vld [vmem:[%s1874 + $0x8] sm:$0xff]
    %v1877 = vld [vmem:[%s1874 + $0x10] sm:$0xff]
    %v1878 = vld [vmem:[%s1874 + $0x18] sm:$0xff]
    %v1879 = vld [vmem:[%s1874 + $0x20] sm:$0xff]
    %v1880 = vld [vmem:[%s1874 + $0x28] sm:$0xff]
    %v1881 = vld [vmem:[%s1874 + $0x30] sm:$0xff]
    %v1882 = vld [vmem:[%s1874 + $0x38] sm:$0xff]
    %v1883 = vpack.c.bf16 %v1873, %v1872
    %1884 = vmatpush.bf16.msra.mxu0 %v848
    %1885 = vmatpush.bf16.msra.mxu0 %v844
    %1886 = vmatpush.bf16.msra.mxu0 %v840
    %1887 = vmatpush.bf16.msra.mxu0 %v836
    %1888 = vmatpush.bf16.msra.mxu0 %v832
    %1889 = vmatpush.bf16.msra.mxu0 %v828
    %1890 = vmatpush.bf16.msra.mxu0 %v824
    %1891 = vmatpush.bf16.msra.mxu0 %v820
    %1892 = vmatmul.bf16.gmra.mxu0 %v1883
    %v1893 = vpop.f32.mrf.mxu0
    %v1894 = vadd.f32 0.0, %v1893
    %v1895 = vpop.f32.mrf.mxu0
    %v1896 = vadd.f32 0.0, %v1895
    %1897 = vdwg.mxu0
    %1898 = vmatpush.bf16.msra.mxu0 %v849
    %1899 = vmatpush.bf16.msra.mxu0 %v845
    %1900 = vmatpush.bf16.msra.mxu0 %v841
    %1901 = vmatpush.bf16.msra.mxu0 %v837
    %1902 = vmatpush.bf16.msra.mxu0 %v833
    %1903 = vmatpush.bf16.msra.mxu0 %v829
    %1904 = vmatpush.bf16.msra.mxu0 %v825
    %1905 = vmatpush.bf16.msra.mxu0 %v821
    %1906 = vmatmul.bf16.gmra.mxu0 %v1883
    %v1907 = vpop.f32.mrf.mxu0
    %v1908 = vadd.f32 0.0, %v1907
    %v1909 = vpop.f32.mrf.mxu0
    %v1910 = vadd.f32 0.0, %v1909
    %1911 = vdwg.mxu0
    %1912 = vmatpush.bf16.msra.mxu0 %v850
    %1913 = vmatpush.bf16.msra.mxu0 %v846
    %1914 = vmatpush.bf16.msra.mxu0 %v842
    %1915 = vmatpush.bf16.msra.mxu0 %v838
    %1916 = vmatpush.bf16.msra.mxu0 %v834
    %1917 = vmatpush.bf16.msra.mxu0 %v830
    %1918 = vmatpush.bf16.msra.mxu0 %v826
    %1919 = vmatpush.bf16.msra.mxu0 %v822
    %1920 = vmatmul.bf16.gmra.mxu0 %v1883
    %v1921 = vpop.f32.mrf.mxu0
    %v1922 = vadd.f32 0.0, %v1921
    %v1923 = vpop.f32.mrf.mxu0
    %v1924 = vadd.f32 0.0, %v1923
    %1925 = vdwg.mxu0
    %1926 = vmatpush.bf16.msra.mxu0 %v851
    %1927 = vmatpush.bf16.msra.mxu0 %v847
    %1928 = vmatpush.bf16.msra.mxu0 %v843
    %1929 = vmatpush.bf16.msra.mxu0 %v839
    %1930 = vmatpush.bf16.msra.mxu0 %v835
    %1931 = vmatpush.bf16.msra.mxu0 %v831
    %1932 = vmatpush.bf16.msra.mxu0 %v827
    %1933 = vmatpush.bf16.msra.mxu0 %v823
    %1934 = vmatmul.bf16.gmra.mxu0 %v1883
    %v1935 = vpop.f32.mrf.mxu0
    %v1936 = vadd.f32 0.0, %v1935
    %v1937 = vpop.f32.mrf.mxu0
    %v1938 = vadd.f32 0.0, %v1937
    %1939 = vdwg.mxu0
    %v1940 = vadd.f32 %v1875, %v1894
    %v1941 = vadd.f32 %v1876, %v1908
    %v1942 = vadd.f32 %v1877, %v1922
    %v1943 = vadd.f32 %v1878, %v1936
    %v1944 = vadd.f32 %v1879, %v1896
    %v1945 = vadd.f32 %v1880, %v1910
    %v1946 = vadd.f32 %v1881, %v1924
    %v1947 = vadd.f32 %v1882, %v1938
    %v1948 = vxor.u32 %v1940, 2147483648
    %v1949 = vxor.u32 %v1944, 2147483648
    %v1950 = vmul.f32 %v1948, 1.442695
    %v1951 = vpow.pop %v1950
    %v1952 = vmul.f32 %v1949, 1.442695
    %v1953 = vpow.pop %v1952
    %v1954 = vadd.f32 %v1951, 1.0
    %v1955 = vadd.f32 %v1953, 1.0
    %v1956 = vrcp.pop %v1954
    %v1957 = vmul.f32 %v1954, %v1956
    %v1958 = vsub.f32 1.0, %v1957
    %v1959 = vmul.f32 %v1956, %v1958
    %v1960 = vadd.f32 %v1956, %v1959
    %vm1961 = vweird.f32 %v1954
    %vm1962 = vweird.f32 %v1956
    %vm1963 = vmor %vm1961, %vm1962
    %v1964 = vsel %vm1963, %v1956, %v1960
    %v1965 = vand.u32 2147483647, %v1954
    %vm1966 = vcmp.eq.f32.partialorder %v1965, 8.507059e+37
    %v1967 = vand.u32 %v1954, 2147483648
    %v1968 = vor.u32 1.1754944e-38, %v1967
    %v1969 = vsel %vm1966, %v1968, %v1964
    %v1970 = vmul.f32 1.0, %v1969
    %v1971 = vrcp.pop %v1955
    %v1972 = vmul.f32 %v1955, %v1971
    %v1973 = vsub.f32 1.0, %v1972
    %v1974 = vmul.f32 %v1971, %v1973
    %v1975 = vadd.f32 %v1971, %v1974
    %vm1976 = vweird.f32 %v1955
    %vm1977 = vweird.f32 %v1971
    %vm1978 = vmor %vm1976, %vm1977
    %v1979 = vsel %vm1978, %v1971, %v1975
    %v1980 = vand.u32 2147483647, %v1955
    %vm1981 = vcmp.eq.f32.partialorder %v1980, 8.507059e+37
    %v1982 = vand.u32 %v1955, 2147483648
    %v1983 = vor.u32 1.1754944e-38, %v1982
    %v1984 = vsel %vm1981, %v1983, %v1979
    %v1985 = vmul.f32 1.0, %v1984
    %v1986 = vxor.u32 %v1941, 2147483648
    %v1987 = vxor.u32 %v1945, 2147483648
    %v1988 = vmul.f32 %v1986, 1.442695
    %v1989 = vpow.pop %v1988
    %v1990 = vmul.f32 %v1987, 1.442695
    %v1991 = vpow.pop %v1990
    %v1992 = vadd.f32 %v1989, 1.0
    %v1993 = vadd.f32 %v1991, 1.0
    %v1994 = vrcp.pop %v1992
    %v1995 = vmul.f32 %v1992, %v1994
    %v1996 = vsub.f32 1.0, %v1995
    %v1997 = vmul.f32 %v1994, %v1996
    %v1998 = vadd.f32 %v1994, %v1997
    %vm1999 = vweird.f32 %v1992
    %vm2000 = vweird.f32 %v1994
    %vm2001 = vmor %vm1999, %vm2000
    %v2002 = vsel %vm2001, %v1994, %v1998
    %v2003 = vand.u32 2147483647, %v1992
    %vm2004 = vcmp.eq.f32.partialorder %v2003, 8.507059e+37
    %v2005 = vand.u32 %v1992, 2147483648
    %v2006 = vor.u32 1.1754944e-38, %v2005
    %v2007 = vsel %vm2004, %v2006, %v2002
    %v2008 = vmul.f32 1.0, %v2007
    %v2009 = vrcp.pop %v1993
    %v2010 = vmul.f32 %v1993, %v2009
    %v2011 = vsub.f32 1.0, %v2010
    %v2012 = vmul.f32 %v2009, %v2011
    %v2013 = vadd.f32 %v2009, %v2012
    %vm2014 = vweird.f32 %v1993
    %vm2015 = vweird.f32 %v2009
    %vm2016 = vmor %vm2014, %vm2015
    %v2017 = vsel %vm2016, %v2009, %v2013
    %v2018 = vand.u32 2147483647, %v1993
    %vm2019 = vcmp.eq.f32.partialorder %v2018, 8.507059e+37
    %v2020 = vand.u32 %v1993, 2147483648
    %v2021 = vor.u32 1.1754944e-38, %v2020
    %v2022 = vsel %vm2019, %v2021, %v2017
    %v2023 = vmul.f32 1.0, %v2022
    %v2024 = vtanh.pop %v1942
    %v2025 = vtanh.pop %v1946
    %v2026 = vxor.u32 %v1943, 2147483648
    %v2027 = vxor.u32 %v1947, 2147483648
    %v2028 = vmul.f32 %v2026, 1.442695
    %v2029 = vpow.pop %v2028
    %v2030 = vmul.f32 %v2027, 1.442695
    %v2031 = vpow.pop %v2030
    %v2032 = vadd.f32 %v2029, 1.0
    %v2033 = vadd.f32 %v2031, 1.0
    %v2034 = vrcp.pop %v2032
    %v2035 = vmul.f32 %v2032, %v2034
    %v2036 = vsub.f32 1.0, %v2035
    %v2037 = vmul.f32 %v2034, %v2036
    %v2038 = vadd.f32 %v2034, %v2037
    %vm2039 = vweird.f32 %v2032
    %vm2040 = vweird.f32 %v2034
    %vm2041 = vmor %vm2039, %vm2040
    %v2042 = vsel %vm2041, %v2034, %v2038
    %v2043 = vand.u32 2147483647, %v2032
    %vm2044 = vcmp.eq.f32.partialorder %v2043, 8.507059e+37
    %v2045 = vand.u32 %v2032, 2147483648
    %v2046 = vor.u32 1.1754944e-38, %v2045
    %v2047 = vsel %vm2044, %v2046, %v2042
    %v2048 = vmul.f32 1.0, %v2047
    %v2049 = vrcp.pop %v2033
    %v2050 = vmul.f32 %v2033, %v2049
    %v2051 = vsub.f32 1.0, %v2050
    %v2052 = vmul.f32 %v2049, %v2051
    %v2053 = vadd.f32 %v2049, %v2052
    %vm2054 = vweird.f32 %v2033
    %vm2055 = vweird.f32 %v2049
    %vm2056 = vmor %vm2054, %vm2055
    %v2057 = vsel %vm2056, %v2049, %v2053
    %v2058 = vand.u32 2147483647, %v2033
    %vm2059 = vcmp.eq.f32.partialorder %v2058, 8.507059e+37
    %v2060 = vand.u32 %v2033, 2147483648
    %v2061 = vor.u32 1.1754944e-38, %v2060
    %v2062 = vsel %vm2059, %v2061, %v2057
    %v2063 = vmul.f32 1.0, %v2062
    %v2064 = vmul.f32 %v2008, %v1868
    %v2065 = vmul.f32 %v2023, %v1869
    %v2066 = vmul.f32 %v1970, %v2024
    %v2067 = vmul.f32 %v1985, %v2025
    %v2068 = vadd.f32 %v2064, %v2066
    %v2069 = vadd.f32 %v2065, %v2067
    %v2070 = vtanh.pop %v2068
    %v2071 = vtanh.pop %v2069
    %v2072 = vmul.f32 %v2048, %v2070
    %v2073 = vmul.f32 %v2063, %v2071
    %s2074 = scalar_lea.vmem [#allocation4], 384
    %v2075 = vld [vmem:[%s2074] sm:$0xff]
    %v2076 = vld [vmem:[%s2074 + $0x8] sm:$0xff]
    %v2077 = vld [vmem:[%s2074 + $0x10] sm:$0xff]
    %v2078 = vld [vmem:[%s2074 + $0x18] sm:$0xff]
    %v2079 = vld [vmem:[%s2074 + $0x20] sm:$0xff]
    %v2080 = vld [vmem:[%s2074 + $0x28] sm:$0xff]
    %v2081 = vld [vmem:[%s2074 + $0x30] sm:$0xff]
    %v2082 = vld [vmem:[%s2074 + $0x38] sm:$0xff]
    %v2083 = vpack.c.bf16 %v2073, %v2072
    %2084 = vmatpush.bf16.msra.mxu0 %v848
    %2085 = vmatpush.bf16.msra.mxu0 %v844
    %2086 = vmatpush.bf16.msra.mxu0 %v840
    %2087 = vmatpush.bf16.msra.mxu0 %v836
    %2088 = vmatpush.bf16.msra.mxu0 %v832
    %2089 = vmatpush.bf16.msra.mxu0 %v828
    %2090 = vmatpush.bf16.msra.mxu0 %v824
    %2091 = vmatpush.bf16.msra.mxu0 %v820
    %2092 = vmatmul.bf16.gmra.mxu0 %v2083
    %v2093 = vpop.f32.mrf.mxu0
    %v2094 = vadd.f32 0.0, %v2093
    %v2095 = vpop.f32.mrf.mxu0
    %v2096 = vadd.f32 0.0, %v2095
    %2097 = vdwg.mxu0
    %2098 = vmatpush.bf16.msra.mxu0 %v849
    %2099 = vmatpush.bf16.msra.mxu0 %v845
    %2100 = vmatpush.bf16.msra.mxu0 %v841
    %2101 = vmatpush.bf16.msra.mxu0 %v837
    %2102 = vmatpush.bf16.msra.mxu0 %v833
    %2103 = vmatpush.bf16.msra.mxu0 %v829
    %2104 = vmatpush.bf16.msra.mxu0 %v825
    %2105 = vmatpush.bf16.msra.mxu0 %v821
    %2106 = vmatmul.bf16.gmra.mxu0 %v2083
    %v2107 = vpop.f32.mrf.mxu0
    %v2108 = vadd.f32 0.0, %v2107
    %v2109 = vpop.f32.mrf.mxu0
    %v2110 = vadd.f32 0.0, %v2109
    %2111 = vdwg.mxu0
    %2112 = vmatpush.bf16.msra.mxu0 %v850
    %2113 = vmatpush.bf16.msra.mxu0 %v846
    %2114 = vmatpush.bf16.msra.mxu0 %v842
    %2115 = vmatpush.bf16.msra.mxu0 %v838
    %2116 = vmatpush.bf16.msra.mxu0 %v834
    %2117 = vmatpush.bf16.msra.mxu0 %v830
    %2118 = vmatpush.bf16.msra.mxu0 %v826
    %2119 = vmatpush.bf16.msra.mxu0 %v822
    %2120 = vmatmul.bf16.gmra.mxu0 %v2083
    %v2121 = vpop.f32.mrf.mxu0
    %v2122 = vadd.f32 0.0, %v2121
    %v2123 = vpop.f32.mrf.mxu0
    %v2124 = vadd.f32 0.0, %v2123
    %2125 = vdwg.mxu0
    %2126 = vmatpush.bf16.msra.mxu0 %v851
    %2127 = vmatpush.bf16.msra.mxu0 %v847
    %2128 = vmatpush.bf16.msra.mxu0 %v843
    %2129 = vmatpush.bf16.msra.mxu0 %v839
    %2130 = vmatpush.bf16.msra.mxu0 %v835
    %2131 = vmatpush.bf16.msra.mxu0 %v831
    %2132 = vmatpush.bf16.msra.mxu0 %v827
    %2133 = vmatpush.bf16.msra.mxu0 %v823
    %2134 = vmatmul.bf16.gmra.mxu0 %v2083
    %v2135 = vpop.f32.mrf.mxu0
    %v2136 = vadd.f32 0.0, %v2135
    %v2137 = vpop.f32.mrf.mxu0
    %v2138 = vadd.f32 0.0, %v2137
    %2139 = vdwg.mxu0
    %v2140 = vadd.f32 %v2075, %v2094
    %v2141 = vadd.f32 %v2076, %v2108
    %v2142 = vadd.f32 %v2077, %v2122
    %v2143 = vadd.f32 %v2078, %v2136
    %v2144 = vadd.f32 %v2079, %v2096
    %v2145 = vadd.f32 %v2080, %v2110
    %v2146 = vadd.f32 %v2081, %v2124
    %v2147 = vadd.f32 %v2082, %v2138
    %v2148 = vxor.u32 %v2140, 2147483648
    %v2149 = vxor.u32 %v2144, 2147483648
    %v2150 = vmul.f32 %v2148, 1.442695
    %v2151 = vpow.pop %v2150
    %v2152 = vmul.f32 %v2149, 1.442695
    %v2153 = vpow.pop %v2152
    %v2154 = vadd.f32 %v2151, 1.0
    %v2155 = vadd.f32 %v2153, 1.0
    %v2156 = vrcp.pop %v2154
    %v2157 = vmul.f32 %v2154, %v2156
    %v2158 = vsub.f32 1.0, %v2157
    %v2159 = vmul.f32 %v2156, %v2158
    %v2160 = vadd.f32 %v2156, %v2159
    %vm2161 = vweird.f32 %v2154
    %vm2162 = vweird.f32 %v2156
    %vm2163 = vmor %vm2161, %vm2162
    %v2164 = vsel %vm2163, %v2156, %v2160
    %v2165 = vand.u32 2147483647, %v2154
    %vm2166 = vcmp.eq.f32.partialorder %v2165, 8.507059e+37
    %v2167 = vand.u32 %v2154, 2147483648
    %v2168 = vor.u32 1.1754944e-38, %v2167
    %v2169 = vsel %vm2166, %v2168, %v2164
    %v2170 = vmul.f32 1.0, %v2169
    %v2171 = vrcp.pop %v2155
    %v2172 = vmul.f32 %v2155, %v2171
    %v2173 = vsub.f32 1.0, %v2172
    %v2174 = vmul.f32 %v2171, %v2173
    %v2175 = vadd.f32 %v2171, %v2174
    %vm2176 = vweird.f32 %v2155
    %vm2177 = vweird.f32 %v2171
    %vm2178 = vmor %vm2176, %vm2177
    %v2179 = vsel %vm2178, %v2171, %v2175
    %v2180 = vand.u32 2147483647, %v2155
    %vm2181 = vcmp.eq.f32.partialorder %v2180, 8.507059e+37
    %v2182 = vand.u32 %v2155, 2147483648
    %v2183 = vor.u32 1.1754944e-38, %v2182
    %v2184 = vsel %vm2181, %v2183, %v2179
    %v2185 = vmul.f32 1.0, %v2184
    %v2186 = vxor.u32 %v2141, 2147483648
    %v2187 = vxor.u32 %v2145, 2147483648
    %v2188 = vmul.f32 %v2186, 1.442695
    %v2189 = vpow.pop %v2188
    %v2190 = vmul.f32 %v2187, 1.442695
    %v2191 = vpow.pop %v2190
    %v2192 = vadd.f32 %v2189, 1.0
    %v2193 = vadd.f32 %v2191, 1.0
    %v2194 = vrcp.pop %v2192
    %v2195 = vmul.f32 %v2192, %v2194
    %v2196 = vsub.f32 1.0, %v2195
    %v2197 = vmul.f32 %v2194, %v2196
    %v2198 = vadd.f32 %v2194, %v2197
    %vm2199 = vweird.f32 %v2192
    %vm2200 = vweird.f32 %v2194
    %vm2201 = vmor %vm2199, %vm2200
    %v2202 = vsel %vm2201, %v2194, %v2198
    %v2203 = vand.u32 2147483647, %v2192
    %vm2204 = vcmp.eq.f32.partialorder %v2203, 8.507059e+37
    %v2205 = vand.u32 %v2192, 2147483648
    %v2206 = vor.u32 1.1754944e-38, %v2205
    %v2207 = vsel %vm2204, %v2206, %v2202
    %v2208 = vmul.f32 1.0, %v2207
    %v2209 = vrcp.pop %v2193
    %v2210 = vmul.f32 %v2193, %v2209
    %v2211 = vsub.f32 1.0, %v2210
    %v2212 = vmul.f32 %v2209, %v2211
    %v2213 = vadd.f32 %v2209, %v2212
    %vm2214 = vweird.f32 %v2193
    %vm2215 = vweird.f32 %v2209
    %vm2216 = vmor %vm2214, %vm2215
    %v2217 = vsel %vm2216, %v2209, %v2213
    %v2218 = vand.u32 2147483647, %v2193
    %vm2219 = vcmp.eq.f32.partialorder %v2218, 8.507059e+37
    %v2220 = vand.u32 %v2193, 2147483648
    %v2221 = vor.u32 1.1754944e-38, %v2220
    %v2222 = vsel %vm2219, %v2221, %v2217
    %v2223 = vmul.f32 1.0, %v2222
    %v2224 = vtanh.pop %v2142
    %v2225 = vtanh.pop %v2146
    %v2226 = vxor.u32 %v2143, 2147483648
    %v2227 = vxor.u32 %v2147, 2147483648
    %v2228 = vmul.f32 %v2226, 1.442695
    %v2229 = vpow.pop %v2228
    %v2230 = vmul.f32 %v2227, 1.442695
    %v2231 = vpow.pop %v2230
    %v2232 = vadd.f32 %v2229, 1.0
    %v2233 = vadd.f32 %v2231, 1.0
    %v2234 = vrcp.pop %v2232
    %v2235 = vmul.f32 %v2232, %v2234
    %v2236 = vsub.f32 1.0, %v2235
    %v2237 = vmul.f32 %v2234, %v2236
    %v2238 = vadd.f32 %v2234, %v2237
    %vm2239 = vweird.f32 %v2232
    %vm2240 = vweird.f32 %v2234
    %vm2241 = vmor %vm2239, %vm2240
    %v2242 = vsel %vm2241, %v2234, %v2238
    %v2243 = vand.u32 2147483647, %v2232
    %vm2244 = vcmp.eq.f32.partialorder %v2243, 8.507059e+37
    %v2245 = vand.u32 %v2232, 2147483648
    %v2246 = vor.u32 1.1754944e-38, %v2245
    %v2247 = vsel %vm2244, %v2246, %v2242
    %v2248 = vmul.f32 1.0, %v2247
    %v2249 = vrcp.pop %v2233
    %v2250 = vmul.f32 %v2233, %v2249
    %v2251 = vsub.f32 1.0, %v2250
    %v2252 = vmul.f32 %v2249, %v2251
    %v2253 = vadd.f32 %v2249, %v2252
    %vm2254 = vweird.f32 %v2233
    %vm2255 = vweird.f32 %v2249
    %vm2256 = vmor %vm2254, %vm2255
    %v2257 = vsel %vm2256, %v2249, %v2253
    %v2258 = vand.u32 2147483647, %v2233
    %vm2259 = vcmp.eq.f32.partialorder %v2258, 8.507059e+37
    %v2260 = vand.u32 %v2233, 2147483648
    %v2261 = vor.u32 1.1754944e-38, %v2260
    %v2262 = vsel %vm2259, %v2261, %v2257
    %v2263 = vmul.f32 1.0, %v2262
    %v2264 = vmul.f32 %v2208, %v2068
    %v2265 = vmul.f32 %v2223, %v2069
    %v2266 = vmul.f32 %v2170, %v2224
    %v2267 = vmul.f32 %v2185, %v2225
    %v2268 = vadd.f32 %v2264, %v2266
    %v2269 = vadd.f32 %v2265, %v2267
    %v2270 = vtanh.pop %v2268
    %v2271 = vtanh.pop %v2269
    %v2272 = vmul.f32 %v2248, %v2270
    %v2273 = vmul.f32 %v2263, %v2271
    %s2274 = scalar_lea.vmem [#allocation4], 448
    %v2275 = vld [vmem:[%s2274] sm:$0xff]
    %v2276 = vld [vmem:[%s2274 + $0x8] sm:$0xff]
    %v2277 = vld [vmem:[%s2274 + $0x10] sm:$0xff]
    %v2278 = vld [vmem:[%s2274 + $0x18] sm:$0xff]
    %v2279 = vld [vmem:[%s2274 + $0x20] sm:$0xff]
    %v2280 = vld [vmem:[%s2274 + $0x28] sm:$0xff]
    %v2281 = vld [vmem:[%s2274 + $0x30] sm:$0xff]
    %v2282 = vld [vmem:[%s2274 + $0x38] sm:$0xff]
    %v2283 = vpack.c.bf16 %v2273, %v2272
    %2284 = vmatpush.bf16.msra.mxu0 %v848
    %2285 = vmatpush.bf16.msra.mxu0 %v844
    %2286 = vmatpush.bf16.msra.mxu0 %v840
    %2287 = vmatpush.bf16.msra.mxu0 %v836
    %2288 = vmatpush.bf16.msra.mxu0 %v832
    %2289 = vmatpush.bf16.msra.mxu0 %v828
    %2290 = vmatpush.bf16.msra.mxu0 %v824
    %2291 = vmatpush.bf16.msra.mxu0 %v820
    %2292 = vmatmul.bf16.gmra.mxu0 %v2283
    %v2293 = vpop.f32.mrf.mxu0
    %v2294 = vadd.f32 0.0, %v2293
    %v2295 = vpop.f32.mrf.mxu0
    %v2296 = vadd.f32 0.0, %v2295
    %2297 = vdwg.mxu0
    %2298 = vmatpush.bf16.msra.mxu0 %v849
    %2299 = vmatpush.bf16.msra.mxu0 %v845
    %2300 = vmatpush.bf16.msra.mxu0 %v841
    %2301 = vmatpush.bf16.msra.mxu0 %v837
    %2302 = vmatpush.bf16.msra.mxu0 %v833
    %2303 = vmatpush.bf16.msra.mxu0 %v829
    %2304 = vmatpush.bf16.msra.mxu0 %v825
    %2305 = vmatpush.bf16.msra.mxu0 %v821
    %2306 = vmatmul.bf16.gmra.mxu0 %v2283
    %v2307 = vpop.f32.mrf.mxu0
    %v2308 = vadd.f32 0.0, %v2307
    %v2309 = vpop.f32.mrf.mxu0
    %v2310 = vadd.f32 0.0, %v2309
    %2311 = vdwg.mxu0
    %2312 = vmatpush.bf16.msra.mxu0 %v850
    %2313 = vmatpush.bf16.msra.mxu0 %v846
    %2314 = vmatpush.bf16.msra.mxu0 %v842
    %2315 = vmatpush.bf16.msra.mxu0 %v838
    %2316 = vmatpush.bf16.msra.mxu0 %v834
    %2317 = vmatpush.bf16.msra.mxu0 %v830
    %2318 = vmatpush.bf16.msra.mxu0 %v826
    %2319 = vmatpush.bf16.msra.mxu0 %v822
    %2320 = vmatmul.bf16.gmra.mxu0 %v2283
    %v2321 = vpop.f32.mrf.mxu0
    %v2322 = vadd.f32 0.0, %v2321
    %v2323 = vpop.f32.mrf.mxu0
    %v2324 = vadd.f32 0.0, %v2323
    %2325 = vdwg.mxu0
    %2326 = vmatpush.bf16.msra.mxu0 %v851
    %2327 = vmatpush.bf16.msra.mxu0 %v847
    %2328 = vmatpush.bf16.msra.mxu0 %v843
    %2329 = vmatpush.bf16.msra.mxu0 %v839
    %2330 = vmatpush.bf16.msra.mxu0 %v835
    %2331 = vmatpush.bf16.msra.mxu0 %v831
    %2332 = vmatpush.bf16.msra.mxu0 %v827
    %2333 = vmatpush.bf16.msra.mxu0 %v823
    %2334 = vmatmul.bf16.gmra.mxu0 %v2283
    %v2335 = vpop.f32.mrf.mxu0
    %v2336 = vadd.f32 0.0, %v2335
    %v2337 = vpop.f32.mrf.mxu0
    %v2338 = vadd.f32 0.0, %v2337
    %2339 = vdwg.mxu0
    %v2340 = vadd.f32 %v2275, %v2294
    %v2341 = vadd.f32 %v2276, %v2308
    %v2342 = vadd.f32 %v2277, %v2322
    %v2343 = vadd.f32 %v2278, %v2336
    %v2344 = vadd.f32 %v2279, %v2296
    %v2345 = vadd.f32 %v2280, %v2310
    %v2346 = vadd.f32 %v2281, %v2324
    %v2347 = vadd.f32 %v2282, %v2338
    %v2348 = vxor.u32 %v2340, 2147483648
    %v2349 = vxor.u32 %v2344, 2147483648
    %v2350 = vmul.f32 %v2348, 1.442695
    %v2351 = vpow.pop %v2350
    %v2352 = vmul.f32 %v2349, 1.442695
    %v2353 = vpow.pop %v2352
    %v2354 = vadd.f32 %v2351, 1.0
    %v2355 = vadd.f32 %v2353, 1.0
    %v2356 = vrcp.pop %v2354
    %v2357 = vmul.f32 %v2354, %v2356
    %v2358 = vsub.f32 1.0, %v2357
    %v2359 = vmul.f32 %v2356, %v2358
    %v2360 = vadd.f32 %v2356, %v2359
    %vm2361 = vweird.f32 %v2354
    %vm2362 = vweird.f32 %v2356
    %vm2363 = vmor %vm2361, %vm2362
    %v2364 = vsel %vm2363, %v2356, %v2360
    %v2365 = vand.u32 2147483647, %v2354
    %vm2366 = vcmp.eq.f32.partialorder %v2365, 8.507059e+37
    %v2367 = vand.u32 %v2354, 2147483648
    %v2368 = vor.u32 1.1754944e-38, %v2367
    %v2369 = vsel %vm2366, %v2368, %v2364
    %v2370 = vmul.f32 1.0, %v2369
    %v2371 = vrcp.pop %v2355
    %v2372 = vmul.f32 %v2355, %v2371
    %v2373 = vsub.f32 1.0, %v2372
    %v2374 = vmul.f32 %v2371, %v2373
    %v2375 = vadd.f32 %v2371, %v2374
    %vm2376 = vweird.f32 %v2355
    %vm2377 = vweird.f32 %v2371
    %vm2378 = vmor %vm2376, %vm2377
    %v2379 = vsel %vm2378, %v2371, %v2375
    %v2380 = vand.u32 2147483647, %v2355
    %vm2381 = vcmp.eq.f32.partialorder %v2380, 8.507059e+37
    %v2382 = vand.u32 %v2355, 2147483648
    %v2383 = vor.u32 1.1754944e-38, %v2382
    %v2384 = vsel %vm2381, %v2383, %v2379
    %v2385 = vmul.f32 1.0, %v2384
    %v2386 = vxor.u32 %v2341, 2147483648
    %v2387 = vxor.u32 %v2345, 2147483648
    %v2388 = vmul.f32 %v2386, 1.442695
    %v2389 = vpow.pop %v2388
    %v2390 = vmul.f32 %v2387, 1.442695
    %v2391 = vpow.pop %v2390
    %v2392 = vadd.f32 %v2389, 1.0
    %v2393 = vadd.f32 %v2391, 1.0
    %v2394 = vrcp.pop %v2392
    %v2395 = vmul.f32 %v2392, %v2394
    %v2396 = vsub.f32 1.0, %v2395
    %v2397 = vmul.f32 %v2394, %v2396
    %v2398 = vadd.f32 %v2394, %v2397
    %vm2399 = vweird.f32 %v2392
    %vm2400 = vweird.f32 %v2394
    %vm2401 = vmor %vm2399, %vm2400
    %v2402 = vsel %vm2401, %v2394, %v2398
    %v2403 = vand.u32 2147483647, %v2392
    %vm2404 = vcmp.eq.f32.partialorder %v2403, 8.507059e+37
    %v2405 = vand.u32 %v2392, 2147483648
    %v2406 = vor.u32 1.1754944e-38, %v2405
    %v2407 = vsel %vm2404, %v2406, %v2402
    %v2408 = vmul.f32 1.0, %v2407
    %v2409 = vrcp.pop %v2393
    %v2410 = vmul.f32 %v2393, %v2409
    %v2411 = vsub.f32 1.0, %v2410
    %v2412 = vmul.f32 %v2409, %v2411
    %v2413 = vadd.f32 %v2409, %v2412
    %vm2414 = vweird.f32 %v2393
    %vm2415 = vweird.f32 %v2409
    %vm2416 = vmor %vm2414, %vm2415
    %v2417 = vsel %vm2416, %v2409, %v2413
    %v2418 = vand.u32 2147483647, %v2393
    %vm2419 = vcmp.eq.f32.partialorder %v2418, 8.507059e+37
    %v2420 = vand.u32 %v2393, 2147483648
    %v2421 = vor.u32 1.1754944e-38, %v2420
    %v2422 = vsel %vm2419, %v2421, %v2417
    %v2423 = vmul.f32 1.0, %v2422
    %v2424 = vtanh.pop %v2342
    %v2425 = vtanh.pop %v2346
    %v2426 = vxor.u32 %v2343, 2147483648
    %v2427 = vxor.u32 %v2347, 2147483648
    %v2428 = vmul.f32 %v2426, 1.442695
    %v2429 = vpow.pop %v2428
    %v2430 = vmul.f32 %v2427, 1.442695
    %v2431 = vpow.pop %v2430
    %v2432 = vadd.f32 %v2429, 1.0
    %v2433 = vadd.f32 %v2431, 1.0
    %v2434 = vrcp.pop %v2432
    %v2435 = vmul.f32 %v2432, %v2434
    %v2436 = vsub.f32 1.0, %v2435
    %v2437 = vmul.f32 %v2434, %v2436
    %v2438 = vadd.f32 %v2434, %v2437
    %vm2439 = vweird.f32 %v2432
    %vm2440 = vweird.f32 %v2434
    %vm2441 = vmor %vm2439, %vm2440
    %v2442 = vsel %vm2441, %v2434, %v2438
    %v2443 = vand.u32 2147483647, %v2432
    %vm2444 = vcmp.eq.f32.partialorder %v2443, 8.507059e+37
    %v2445 = vand.u32 %v2432, 2147483648
    %v2446 = vor.u32 1.1754944e-38, %v2445
    %v2447 = vsel %vm2444, %v2446, %v2442
    %v2448 = vmul.f32 1.0, %v2447
    %v2449 = vrcp.pop %v2433
    %v2450 = vmul.f32 %v2433, %v2449
    %v2451 = vsub.f32 1.0, %v2450
    %v2452 = vmul.f32 %v2449, %v2451
    %v2453 = vadd.f32 %v2449, %v2452
    %vm2454 = vweird.f32 %v2433
    %vm2455 = vweird.f32 %v2449
    %vm2456 = vmor %vm2454, %vm2455
    %v2457 = vsel %vm2456, %v2449, %v2453
    %v2458 = vand.u32 2147483647, %v2433
    %vm2459 = vcmp.eq.f32.partialorder %v2458, 8.507059e+37
    %v2460 = vand.u32 %v2433, 2147483648
    %v2461 = vor.u32 1.1754944e-38, %v2460
    %v2462 = vsel %vm2459, %v2461, %v2457
    %v2463 = vmul.f32 1.0, %v2462
    %v2464 = vmul.f32 %v2408, %v2268
    %v2465 = vmul.f32 %v2423, %v2269
    %v2466 = vmul.f32 %v2370, %v2424
    %v2467 = vmul.f32 %v2385, %v2425
    %v2468 = vadd.f32 %v2464, %v2466
    %v2469 = vadd.f32 %v2465, %v2467
    %v2470 = vtanh.pop %v2468
    %v2471 = vtanh.pop %v2469
    %v2472 = vmul.f32 %v2448, %v2470
    %v2473 = vmul.f32 %v2463, %v2471
    %2474 = vst [vmem:[#allocation2] sm:$0xff] %v2472
    %2475 = vst [vmem:[#allocation2 + $0x8] sm:$0xff] %v2473
    %2476 = vst [vmem:[#allocation3] sm:$0xff] %v2468
    %2477 = vst [vmem:[#allocation3 + $0x8] sm:$0xff] %v2469
    // Predicated region
    $region66: #{tpu_custom_call.1} parent=1 // pred_check
      %p2478 = pneg %p141
    $region67: #{tpu_custom_call.1} parent=1 // pred_check_branch
      %2480 = sbr.rel (%p2478) target = $region69
    $region68: #{tpu_custom_call.1} parent=1 // pred_region
      %v2481 = vpack.c.bf16 %v2473, %v2472
      %v2482 = vld [vmem:[#allocation16] sm:$0xf]
      %v2483 = vld [vmem:[#allocation16 + $0x4] sm:$0xf]
      %v2484 = vld [vmem:[#allocation16 + $0x8] sm:$0xf]
      %v2485 = vld [vmem:[#allocation16 + $0xc] sm:$0xf]
      %v2486 = vld [vmem:[#allocation16 + $0x10] sm:$0xf]
      %v2487 = vld [vmem:[#allocation16 + $0x14] sm:$0xf]
      %v2488 = vld [vmem:[#allocation16 + $0x18] sm:$0xf]
      %v2489 = vld [vmem:[#allocation16 + $0x1c] sm:$0xf]
      %v2490 = vld [vmem:[#allocation16 + $0x20] sm:$0xf]
      %v2491 = vld [vmem:[#allocation16 + $0x24] sm:$0xf]
      %v2492 = vld [vmem:[#allocation16 + $0x28] sm:$0xf]
      %v2493 = vld [vmem:[#allocation16 + $0x2c] sm:$0xf]
      %v2494 = vld [vmem:[#allocation16 + $0x30] sm:$0xf]
      %v2495 = vld [vmem:[#allocation16 + $0x34] sm:$0xf]
      %v2496 = vld [vmem:[#allocation16 + $0x38] sm:$0xf]
      %v2497 = vld [vmem:[#allocation16 + $0x3c] sm:$0xf]
      %v2498 = vld [vmem:[%s7] sm:$0x1]
      %v2500 = vperm.slane %v2498, 0
      %v2518 = vunpack.c.l.b16 %v2482
      %v2519 = vunpack.c.l.b16 %v2483
      %v2520 = vunpack.c.l.b16 %v2484
      %v2521 = vunpack.c.l.b16 %v2485
      %v2522 = vunpack.c.l.b16 %v2486
      %v2523 = vunpack.c.l.b16 %v2487
      %v2524 = vunpack.c.l.b16 %v2488
      %v2525 = vunpack.c.l.b16 %v2489
      %v2526 = vunpack.c.l.b16 %v2490
      %v2527 = vunpack.c.l.b16 %v2491
      %v2528 = vunpack.c.l.b16 %v2492
      %v2529 = vunpack.c.l.b16 %v2493
      %v2530 = vunpack.c.l.b16 %v2494
      %v2531 = vunpack.c.l.b16 %v2495
      %v2532 = vunpack.c.l.b16 %v2496
      %v2533 = vunpack.c.l.b16 %v2497
      %v2534 = vpack.c.b16 %v2519, %v2518
      %v2535 = vpack.c.b16 %v2521, %v2520
      %v2536 = vpack.c.b16 %v2523, %v2522
      %v2537 = vpack.c.b16 %v2525, %v2524
      %v2538 = vpack.c.b16 %v2527, %v2526
      %v2539 = vpack.c.b16 %v2529, %v2528
      %v2540 = vpack.c.b16 %v2531, %v2530
      %v2541 = vpack.c.b16 %v2533, %v2532
      %2550 = vmatpush.bf16.msra.mxu0 %v2541
      %2551 = vmatpush.bf16.msra.mxu0 %v2540
      %2552 = vmatpush.bf16.msra.mxu0 %v2539
      %2553 = vmatpush.bf16.msra.mxu0 %v2538
      %2554 = vmatpush.bf16.msra.mxu0 %v2537
      %2555 = vmatpush.bf16.msra.mxu0 %v2536
      %2556 = vmatpush.bf16.msra.mxu0 %v2535
      %2557 = vmatpush.bf16.msra.mxu0 %v2534
      %2558 = vmatmul.bf16.gmra.mxu0 %v2481
      %v2559 = vpop.f32.mrf.mxu0
      %v2560 = vadd.f32 %v2500, %v2559
      %v2561 = vpop.f32.mrf.mxu0
      %v2562 = vadd.f32 %v2500, %v2561
      %2563 = vdwg.mxu0
      %2564 = vmax.xlane.f32.xlu0 %v2560
      %v2565 = vpop.xlane.xlu0 %2564
      %2566 = vmax.xlane.f32.xlu0 %v2562
      %v2567 = vpop.xlane.xlu0 %2566
      %v2568 = vsub.f32 %v2560, %v2565
      %v2569 = vsub.f32 %v2562, %v2567
      %v2570 = vmul.f32 %v2568, 1.442695
      %v2571 = vpow.pop %v2570
      %v2572 = vmul.f32 %v2569, 1.442695
      %v2573 = vpow.pop %v2572
      %2574 = vadd.xlane.f32.xlu0 %v2571
      %v2575 = vpop.xlane.xlu0 %2574
      %2576 = vadd.xlane.f32.xlu0 %v2573
      %v2577 = vpop.xlane.xlu0 %2576
      %v2578 = vlog2.pop %v2575
      %v2579 = vmul.f32 %v2578, 0.6931472
      %v2580 = vlog2.pop %v2577
      %v2581 = vmul.f32 %v2580, 0.6931472
      %v2582 = vsub.f32 %v2568, %v2579
      %v2583 = vsub.f32 %v2569, %v2581
      %2584 = vst [vmem:[#allocation17] sm:$0xff] %v2582
      %2585 = vst [vmem:[#allocation17 + $0x8] sm:$0xff] %v2583
      %2586 = vst [vmem:[#allocation18] sm:$0xff] %v2472
      %2587 = vst [vmem:[#allocation18 + $0x8] sm:$0xff] %v2473
      %2588 = vst [vmem:[#allocation20] sm:$0xff] %v2468
      %2589 = vst [vmem:[#allocation20 + $0x8] sm:$0xff] %v2469
    $region69: #{tpu_custom_call.1} parent=1 // pred_fallthru
      _
    // Predicated region
    $region70: #{tpu_custom_call.1} parent=1 // pred_check
      _
    $region71: #{tpu_custom_call.1} parent=1 // pred_check_branch
      %2591 = sbr.rel (0) target = $region73
    $region72: #{tpu_custom_call.1} parent=1 // pred_region
      %2593 = vsyncadd [#allocation7], 0
      %s2594 = sshll.u32 [#allocation17], 4
      %s2595 = int_to_ptr.vmem [resolvable:$true] %s2594
      %s2596 = sshll.u32 %s8, 4
      %s2597 = int_to_ptr.hbm [resolvable:$true] %s2596
      %2602 = dma.vmem_to_hbm [thread:$0]  %s2595, 256, %s2597, [#allocation7], 128, 128, 8
    $region73: #{tpu_custom_call.1} parent=1 // pred_fallthru
      _
    // Predicated region
    $region74: #{tpu_custom_call.1} parent=1 // pred_check
      _
    $region75: #{tpu_custom_call.1} parent=1 // pred_check_branch
      %2604 = sbr.rel (0) target = $region77
    $region76: #{tpu_custom_call.1} parent=1 // pred_region
      %2606 = vsyncadd [#allocation19], 0
      %s2607 = sshll.u32 [#allocation18], 4
      %s2608 = int_to_ptr.vmem [resolvable:$true] %s2607
      %s2609 = sshll.u32 %s9, 4
      %s2610 = int_to_ptr.hbm [resolvable:$true] %s2609
      %2615 = dma.vmem_to_hbm [thread:$0]  %s2608, 256, %s2610, [#allocation19], 128, 128, 8
    $region77: #{tpu_custom_call.1} parent=1 // pred_fallthru
      _
    // Predicated region
    $region78: #{tpu_custom_call.1} parent=1 // pred_check
      _
    $region79: #{tpu_custom_call.1} parent=1 // pred_check_branch
      %2617 = sbr.rel (0) target = $region81
    $region80: #{tpu_custom_call.1} parent=1 // pred_region
      %2619 = vsyncadd [#allocation19], 0
      %s2620 = sshll.u32 [#allocation20], 4
      %s2621 = int_to_ptr.vmem [resolvable:$true] %s2620
      %s2622 = sshll.u32 %s10, 4
      %s2623 = int_to_ptr.hbm [resolvable:$true] %s2622
      %2628 = dma.vmem_to_hbm [thread:$0]  %s2621, 256, %s2623, [#allocation19], 128, 128, 8
    $region81: #{tpu_custom_call.1} parent=1 // pred_fallthru
      _
    // Predicated region
    $region82: #{tpu_custom_call.1} parent=1 // pred_check
      _
    $region83: #{tpu_custom_call.1} parent=1 // pred_check_branch
      %2630 = sbr.rel (0) target = $region85
    $region84: #{tpu_custom_call.1} parent=1 // pred_region
      %2632 = dma.done [#allocation7], 256
    $region85: #{tpu_custom_call.1} parent=1 // pred_fallthru
      _
    // Predicated region
    $region86: #{tpu_custom_call.1} parent=1 // pred_check
      _
    $region87: #{tpu_custom_call.1} parent=1 // pred_check_branch
      %2634 = sbr.rel (0) target = $region89
    $region88: #{tpu_custom_call.1} parent=1 // pred_region
      %2636 = dma.done [#allocation19], 256
    $region89: #{tpu_custom_call.1} parent=1 // pred_fallthru
      _
    // Predicated region
    $region90: #{tpu_custom_call.1} parent=1 // pred_check
      _
    $region91: #{tpu_custom_call.1} parent=1 // pred_check_branch
      %2638 = sbr.rel (0) target = $region93
    $region92: #{tpu_custom_call.1} parent=1 // pred_region
      %2640 = dma.done [#allocation19], 256
    $region93: #{tpu_custom_call.1} parent=1 // pred_fallthru
      _
    %2641 = vsyncpa [#allocation6], 1
    %2642 = vsyncpa [#allocation9], 1
    %2643 = vsyncpa [#allocation12], 1
    %2644 = vsyncpa [#allocation15], 1
    %2645 = vsyncpa [#allocation7], 1
    %2646 = vsyncpa [#allocation19], 1

</llo_original>
